<compile_context>
chip_gen: v7x
topology: tpu7x:2x2x1
jax: 0.10.0
libtpu: 0.0.40
codegen_flags: <defaults>
</compile_context>

<pallas_src>
import math
import functools

import jax
import jax.numpy as jnp
import numpy as np
from jax.experimental import pallas as pl
from jax.experimental.pallas import tpu as pltpu

# slot order of the packed (8, c, c) weight / (8, 1, c) bias stacks
_QD, _KA, _VA, _PD, _QA, _KD, _VD, _PA = range(8)


def _erf(x):
    # Abramowitz & Stegun 7.1.26 (max abs err ~1.5e-7) -- matches
    # torch.nn.GELU()'s exact-erf GELU to ~f32 precision using only
    # exp / mul / add / approx-reciprocal, all of which lower on Mosaic.
    a1, a2, a3, a4, a5 = (0.254829592, -0.284496736, 1.421413741,
                          -1.453152027, 1.061405429)
    p = 0.3275911
    sgn = jnp.where(x >= 0.0, 1.0, -1.0)
    z = jnp.abs(x)
    t = pl.reciprocal(1.0 + p * z, approx=True)   # EUP slot, otherwise idle
    poly = ((((a5 * t + a4) * t + a3) * t + a2) * t + a1) * t
    return sgn * (1.0 - poly * jnp.exp(-z * z))


def _gelu(x):
    # exact (erf-based) GELU in f32, like torch.nn.GELU() default.
    # TODO(synk): on v5e, if a bundle dump shows VALU saturation, swap for the
    # tanh-form GELU (1 EUP tanh + ~5 VALU ops); it no longer matches exact erf.
    return 0.5 * x * (1.0 + _erf(x * 0.7071067811865476))


def _wave_kernel(x_ref, w_ref, b_ref, out_ref, *, num_head, pairs):
    f32, bf16 = jnp.float32, jnp.bfloat16
    g = pairs
    _, _, hw, c = x_ref.shape
    hd = c // num_head

    x = x_ref[...]                              # (g, 2, hw, c) f32
    xa = x[:, 0].reshape(g * hw, c)             # even-T tokens (original x_a)
    xd = x[:, 1].reshape(g * hw, c)             # odd-T tokens  (original x_d)
    xa_b = xa.astype(bf16)
    xd_b = xd.astype(bf16)

    def lin(z_b, idx):
        # bf16 x bf16 -> f32 accumulate on the MXU; bias added in f32.
        return jnp.dot(z_b, w_ref[idx], preferred_element_type=f32) + b_ref[idx]

    def attn_proj(q, k, v, proj_idx):
        # Multi-head attention with per-head contraction over head_dim only
        # (no num_head x FLOP inflation), fused with the output projection:
        #   Linear(concat_h(o_h)) == sum_h o_h @ Wp[h*hd:(h+1)*hd, :] + bp
        # so no lane-axis concatenate of head outputs is needed; the Wp row
        # slices are sublane slices at multiples of hd (cheap).
        # TODO(synk): if production hw is not a multiple of 8 (e.g. 14x14=196),
        # pad hw up to a multiple of 8 in the wrapper so the (g, hw, c)
        # reshapes / per-head slabs stay on vreg tile boundaries.
        q3 = q.reshape(g, hw, c).astype(bf16)
        k3 = k.reshape(g, hw, c).astype(bf16)
        v3 = v.reshape(g, hw, c).astype(bf16)
        wp = w_ref[proj_idx]                                    # (c, c) bf16
        acc = jnp.zeros((g * hw, c), f32)
        for h in range(num_head):                               # static unroll
            lo, hi = h * hd, (h + 1) * hd
            s = jnp.einsum('gqd,gkd->gqk', q3[..., lo:hi], k3[..., lo:hi],
                           preferred_element_type=f32)          # (g, hw, hw)
            s = s - jnp.max(s, axis=-1, keepdims=True)
            e = jnp.exp(s)
            p = e * pl.reciprocal(jnp.sum(e, axis=-1, keepdims=True),
                                  approx=True)
            oh = jnp.einsum('gqk,gkd->gqd', p.astype(bf16), v3[..., lo:hi],
                            preferred_element_type=f32)         # (g, hw, hd)
            acc = acc + jnp.dot(oh.reshape(g * hw, hd).astype(bf16),
                                wp[lo:hi, :], preferred_element_type=f32)
        return acc + b_ref[proj_idx]

    # --- detail branch: x_d = x_d - GELU(project_d(Attn(q_d(x_d), kv_a(x_a)))) ---
    d_upd = _gelu(attn_proj(lin(xd_b, _QD), lin(xa_b, _KA), lin(xa_b, _VA), _PD))
    xd_new = xd - d_upd                     # f32 (dropout = identity in eval)

    # --- approx branch: x_a = x_a + GELU(project_a(Attn(q_a(x_a), kv_d(x_d)))) ---
    xdn_b = xd_new.astype(bf16)
    a_upd = _gelu(attn_proj(lin(xa_b, _QA), lin(xdn_b, _KD), lin(xdn_b, _VD), _PA))
    xa_new = xa + a_upd

    # relaxed_constrain outputs, fused into ONE lane-dense (1, 2*g*hw) row:
    #   [0 : g*hw)      mean_c(avg_pool_T(x_skip)) - mean_c(x_a_new)
    #   [g*hw : 2*g*hw) mean_c(x_d_new)                       (SSL=False)
    # A single (1, c) x (2*g*hw, c)^T matmul produces both halves lane-major,
    # written with one wide store.
    ones_c = jnp.full((1, c), 1.0 / c, dtype=f32)
    y = jnp.concatenate([0.5 * (xa + xd) - xa_new, xd_new], axis=0)  # (2*g*hw, c)
    rows = jnp.einsum('xc,nc->xn', ones_c, y, preferred_element_type=f32)
    out_ref[...] = rows[None]               # (1, 1, 2*g*hw)


def _choose_pairs_per_step(num_pairs, hw, c, vmem_budget_bytes=24 << 20):
    """Largest divisor G of num_pairs whose per-step VMEM high-water estimate
    (double-buffered input block + f32 intermediates + per-head score blocks)
    fits the budget; among those, prefer even step counts >= 4 so both v7x
    TensorCores get work and each can pipeline activation DMAs."""
    per_pair = 2 * (2 * hw * c * 4)       # (2, hw, c) f32 input block, 2 buffers
    per_pair += 14 * hw * c * 4           # q/k/v/attn/gelu/residual f32 temps
    per_pair += 4 * hw * hw * 4           # per-head scores / probs / exp temps
    g_cap = max(1, vmem_budget_bytes // per_pair)
    divs = [g for g in range(1, num_pairs + 1)
            if num_pairs % g == 0 and g <= g_cap] or [1]

    def rank(g):
        steps = num_pairs // g
        return (steps % 2 == 0 and steps >= 4, steps % 2 == 0, g)

    return max(divs, key=rank)


def init_params(key, embed_dim):
    """Deterministic torch-Linear-style init (uniform +-1/sqrt(fan_in)).
    Weights stored transposed, i.e. (in, out), so y = x @ W + b.
    Layout matches the PyTorch module (kv weights fused, scaler not folded);
    the wrapper does the kernel-side re-packing."""
    c = embed_dim

    def linear(k, fan_in, fan_out):
        k1, k2 = jax.random.split(k)
        bound = 1.0 / math.sqrt(fan_in)
        w = jax.random.uniform(k1, (fan_in, fan_out), jnp.float32, -bound, bound)
        b = jax.random.uniform(k2, (1, fan_out), jnp.float32, -bound, bound)
        return w, b

    keys = jax.random.split(key, 6)
    p = {}
    p['wqd'], p['bqd'] = linear(keys[0], c, c)          # q_d
    p['wkva'], p['bkva'] = linear(keys[1], c, 2 * c)    # kv_a
    p['wqa'], p['bqa'] = linear(keys[2], c, c)          # q_a
    p['wkvd'], p['bkvd'] = linear(keys[3], c, 2 * c)    # kv_d
    p['wpd'], p['bpd'] = linear(keys[4], c, c)          # project_d (Linear part)
    p['wpa'], p['bpa'] = linear(keys[5], c, c)          # project_a (Linear part)
    return p
    # TODO(synk): norm_x / norm_d / norm_a / out_project exist in __init__ but
    # are unused in forward (change_x=False), so they are not materialized.


def wave_sf_vit_region(x_in, params, *, T, H, W, embed_dim, num_head,
                       pairs_per_step=None):
    b, n, c = x_in.shape
    assert n == T * H * W and c == embed_dim and T % 2 == 0
    hw = H * W
    t = T // 2
    head_dim = embed_dim // num_head
    scaler = 1.0 / math.sqrt(head_dim)
    num_pairs = b * t
    f32, bf16 = jnp.float32, jnp.bfloat16

    G = pairs_per_step or _choose_pairs_per_step(num_pairs, hw, c)
    assert num_pairs % G == 0
    steps = num_pairs // G

    # (B, T*HW, C) -> (num_pairs, 2, HW, C) is a pure row-major regrouping --
    # no strided even/odd copies hit HBM; the kernel block covers both the
    # even (x_a) and odd (x_d) slice of each time pair.
    x_pairs = x_in.reshape(num_pairs, 2, hw, c)

    # Weight prep (exact re-packing of the PyTorch checkpoint layout):
    #  * attention scaler folded into q_d / q_a weights + biases,
    #  * fused kv weights split into lane-aligned k / v halves,
    #  * 8 (c, c) matmul weights packed into ONE bf16 (8, c, c) stack and the
    #    8 biases into one f32 (8, 1, c) stack (fewer DMA descriptors, one
    #    resident buffer to single-buffer).
    wlist = [params['wqd'] * scaler, params['wkva'][:, :c], params['wkva'][:, c:],
             params['wpd'], params['wqa'] * scaler, params['wkvd'][:, :c],
             params['wkvd'][:, c:], params['wpa']]
    blist = [params['bqd'] * scaler, params['bkva'][:, :c], params['bkva'][:, c:],
             params['bpd'], params['bqa'] * scaler, params['bkvd'][:, :c],
             params['bkvd'][:, c:], params['bpa']]
    wstack = jnp.stack(wlist, axis=0).astype(bf16)      # (8, c, c)
    bstack = jnp.stack(blist, axis=0).astype(f32)       # (8, 1, c)
    # TODO(synk): on v5e, optionally ship x_pairs as bf16 (upcast in-kernel for
    # the residuals / means) to halve activation DMA bytes.

    kernel = functools.partial(_wave_kernel, num_head=num_head, pairs=G)

    x_spec = pl.BlockSpec((G, 2, hw, c), lambda i: (i, 0, 0, 0))
    out_spec = pl.BlockSpec((1, 1, 2 * G * hw), lambda i: (i, 0, 0))

    nh = num_head
    flops = steps * (16 * G * hw * c * c        # 6 qkv + 2 output projections
                     + 8 * G * hw * hw * c      # 2 x (per-head QK^T + PV)
                     + 4 * G * hw * c)          # fused channel-mean matmul
    transc = steps * (2 * G * nh * hw * hw      # softmax exp
                      + 4 * G * hw * c          # gelu exp + erf recip
                      + 2 * G * nh * hw)        # softmax recip
    bytes_accessed = (int(x_pairs.size) * 4
                      + int(wstack.size) * 2 + int(bstack.size) * 4
                      + steps * 2 * G * hw * 4)

    # explicit scoped-VMEM request: resident (single-buffered) weight stack +
    # double-buffered activation block + f32 intermediates, with 2x headroom.
    weight_bytes = int(wstack.size) * 2 + int(bstack.size) * 4
    act_bytes = (2 * G * 2 * hw * c * 4) + 14 * G * hw * c * 4 + 4 * G * hw * hw * 4
    vmem_limit = int(min(64 << 20, max(16 << 20, 2 * (weight_bytes + act_bytes))))

    def build_call(single_buffer_weights):
        kw = dict(pipeline_mode=pl.Buffered(1)) if single_buffer_weights else {}
        w_spec = pl.BlockSpec((8, c, c), lambda i: (0, 0, 0), **kw)
        b_spec = pl.BlockSpec((8, 1, c), lambda i: (0, 0, 0), **kw)
        return pl.pallas_call(
            kernel,
            out_shape=jax.ShapeDtypeStruct((steps, 1, 2 * G * hw), f32),
            grid_spec=pltpu.PrefetchScalarGridSpec(
                num_scalar_prefetch=0,
                grid=(steps,),
                in_specs=[x_spec, w_spec, b_spec],
                out_specs=out_spec,
            ),
            compiler_params=pltpu.CompilerParams(
                dimension_semantics=("parallel",),
                vmem_limit_bytes=vmem_limit),
            cost_estimate=pl.CostEstimate(flops=int(flops),
                                          transcendentals=int(transc),
                                          bytes_accessed=int(bytes_accessed)),
        )

    try:
        fused = build_call(True)(x_pairs, wstack, bstack)
    except Exception:
        # TODO(synk): pl.Buffered(1) single-buffering of the constant-index
        # weight stack is the intended config (perf-review item); fall back to
        # default double buffering if this jax/Mosaic build rejects the hint.
        fused = build_call(False)(x_pairs, wstack, bstack)

    fused = fused.reshape(steps, 2, G * hw)
    pool_a = fused[:, 0, :].reshape(b, t, hw)                     # (B, T/2, HW)
    x_d_out = fused[:, 1, :].reshape(b, t, hw)[:, None, :, :]     # (B, 1, T/2, HW)
    return pool_a, x_d_out


def reference(x_in, params, *, T, H, W, embed_dim, num_head):
    """Pure-JAX f32 mirror of the PyTorch forward (eval mode)."""
    b, n, c = x_in.shape
    hw = H * W
    t = T // 2
    hd = embed_dim // num_head
    scaler = 1.0 / math.sqrt(hd)
    x = x_in.reshape(b, T, hw, c)
    xa = x[:, 0::2]
    xd = x[:, 1::2]

    def mha(q, k, v):
        qh = q.reshape(b, t, hw, num_head, hd).transpose(0, 1, 3, 2, 4)
        kh = k.reshape(b, t, hw, num_head, hd).transpose(0, 1, 3, 2, 4)
        vh = v.reshape(b, t, hw, num_head, hd).transpose(0, 1, 3, 2, 4)
        s = jnp.einsum('bthqd,bthkd->bthqk', scaler * qh, kh)
        p = jax.nn.softmax(s, axis=-1)
        o = jnp.einsum('bthqk,bthkd->bthqd', p, vh)
        return o.transpose(0, 1, 3, 2, 4).reshape(b, t, hw, c)

    def lin(z, w, bias):
        return z @ w + bias[0]

    q = lin(xd, params['wqd'], params['bqd'])
    kv = lin(xa, params['wkva'], params['bkva'])
    _d = mha(q, kv[..., :c], kv[..., c:])
    _d = jax.nn.gelu(lin(_d, params['wpd'], params['bpd']), approximate=False)
    xd_new = xd - _d

    q = lin(xa, params['wqa'], params['bqa'])
    kv = lin(xd_new, params['wkvd'], params['bkvd'])
    _a = mha(q, kv[..., :c], kv[..., c:])
    _a = jax.nn.gelu(lin(_a, params['wpa'], params['bpa']), approximate=False)
    xa_new = xa + _a

    pool_a = jnp.mean(0.5 * (xa + xd), axis=-1) - jnp.mean(xa_new, axis=-1)
    xd_out = jnp.mean(xd_new, axis=-1)[:, None]  # (b, 1, t, hw)
    return pool_a, xd_out


if __name__ == "__main__":
    B, T, H, W = 2, 4, 4, 4          # input_size = [T, H, W]
    EMBED, HEADS = 32, 4

    key = jax.random.PRNGKey(0)
    kx, kp = jax.random.split(key)
    x_in = jax.random.normal(kx, (B, T * H * W, EMBED), jnp.float32)  # (B, N, C)
    params = init_params(kp, EMBED)

    pool_a, x_d = wave_sf_vit_region(x_in, params, T=T, H=H, W=W,
                                     embed_dim=EMBED, num_head=HEADS)
    jax.block_until_ready((pool_a, x_d))

    ref_pool_a, ref_x_d = reference(x_in, params, T=T, H=H, W=W,
                                    embed_dim=EMBED, num_head=HEADS)
    # kernel uses bf16 matmul operands + EUP approx reciprocals; f32 reference
    # matches within a slightly loosened bar.
    np.testing.assert_allclose(np.asarray(pool_a), np.asarray(ref_pool_a),
                               rtol=1e-2, atol=1e-2)
    np.testing.assert_allclose(np.asarray(x_d), np.asarray(ref_x_d),
                               rtol=1e-2, atol=1e-2)
    print("KERNEL_OK")
</pallas_src>

<mosaic_0001>
module attributes {stable_mosaic.version = 11 : i64} {
  func.func @_wave_kernel(%arg0: i32, %arg1: memref<1x2x16x32xf32, #tpu.memory_space<vmem>>, %arg2: memref<8x32x32xbf16, #tpu.memory_space<vmem>>, %arg3: memref<8x1x32xf32, #tpu.memory_space<vmem>>, %arg4: memref<1x1x32xf32, #tpu.memory_space<vmem>>) attributes {dimension_semantics = [#tpu.dimension_semantics<parallel>], iteration_bounds = array<i64: 4>, scalar_prefetch = 0 : i64, scratch_operands = 0 : i64, tpu.core_type = #tpu.core_type<tc>, window_params = [{transform_indices = @transform_0, window_bounds = array<i64: 1, 2, 16, 32>}, {pipeline_mode = #tpu.pipeline_mode<synchronous>, transform_indices = @transform_1, window_bounds = array<i64: 8, 32, 32>}, {pipeline_mode = #tpu.pipeline_mode<synchronous>, transform_indices = @transform_2, window_bounds = array<i64: 8, 1, 32>}, {transform_indices = @transform_3, window_bounds = array<i64: 1, 1, 32>}]} {
    %c0 = arith.constant 0 : index
    %c0_0 = arith.constant 0 : index
    %c0_1 = arith.constant 0 : index
    %c0_2 = arith.constant 0 : index
    %0 = vector.load %arg1[%c0, %c0_0, %c0_1, %c0_2] : memref<1x2x16x32xf32, #tpu.memory_space<vmem>>, vector<1x2x16x32xf32>
    %1 = vector.extract_strided_slice %0 {offsets = [0, 0, 0, 0], sizes = [1, 1, 16, 32], strides = [1, 1, 1, 1]} : vector<1x2x16x32xf32> to vector<1x1x16x32xf32>
    %2 = vector.shape_cast %1 : vector<1x1x16x32xf32> to vector<1x16x32xf32>
    %3 = vector.shape_cast %2 : vector<1x16x32xf32> to vector<16x32xf32>
    %4 = vector.extract_strided_slice %0 {offsets = [0, 1, 0, 0], sizes = [1, 1, 16, 32], strides = [1, 1, 1, 1]} : vector<1x2x16x32xf32> to vector<1x1x16x32xf32>
    %5 = vector.shape_cast %4 : vector<1x1x16x32xf32> to vector<1x16x32xf32>
    %6 = vector.shape_cast %5 : vector<1x16x32xf32> to vector<16x32xf32>
    %7 = arith.truncf %3 : vector<16x32xf32> to vector<16x32xbf16>
    %8 = arith.truncf %6 : vector<16x32xf32> to vector<16x32xbf16>
    %c0_3 = arith.constant 0 : index
    %c0_4 = arith.constant 0 : index
    %c0_5 = arith.constant 0 : index
    %9 = vector.load %arg2[%c0_3, %c0_4, %c0_5] : memref<8x32x32xbf16, #tpu.memory_space<vmem>>, vector<1x32x32xbf16>
    %10 = vector.shape_cast %9 : vector<1x32x32xbf16> to vector<32x32xbf16>
    %cst = arith.constant dense<0.000000e+00> : vector<16x32xf32>
    %11 = tpu.matmul %8, %10, %cst {dimension_numbers = #tpu.dot_dimension_numbers<[1], [0], [0], [1], [0, 0, 1, 1], [], []>} : vector<16x32xbf16>, vector<32x32xbf16>, vector<16x32xf32> -> vector<16x32xf32>
    %c0_6 = arith.constant 0 : index
    %c0_7 = arith.constant 0 : index
    %c0_8 = arith.constant 0 : index
    %12 = vector.load %arg3[%c0_6, %c0_7, %c0_8] : memref<8x1x32xf32, #tpu.memory_space<vmem>>, vector<1x1x32xf32>
    %13 = vector.shape_cast %12 : vector<1x1x32xf32> to vector<1x32xf32>
    %14 = vector.broadcast %13 : vector<1x32xf32> to vector<16x32xf32>
    %15 = arith.addf %11, %14 : vector<16x32xf32>
    %c1 = arith.constant 1 : index
    %c0_9 = arith.constant 0 : index
    %c0_10 = arith.constant 0 : index
    %16 = vector.load %arg2[%c1, %c0_9, %c0_10] : memref<8x32x32xbf16, #tpu.memory_space<vmem>>, vector<1x32x32xbf16>
    %17 = vector.shape_cast %16 : vector<1x32x32xbf16> to vector<32x32xbf16>
    %cst_11 = arith.constant dense<0.000000e+00> : vector<16x32xf32>
    %18 = tpu.matmul %7, %17, %cst_11 {dimension_numbers = #tpu.dot_dimension_numbers<[1], [0], [0], [1], [0, 0, 1, 1], [], []>} : vector<16x32xbf16>, vector<32x32xbf16>, vector<16x32xf32> -> vector<16x32xf32>
    %c1_12 = arith.constant 1 : index
    %c0_13 = arith.constant 0 : index
    %c0_14 = arith.constant 0 : index
    %19 = vector.load %arg3[%c1_12, %c0_13, %c0_14] : memref<8x1x32xf32, #tpu.memory_space<vmem>>, vector<1x1x32xf32>
    %20 = vector.shape_cast %19 : vector<1x1x32xf32> to vector<1x32xf32>
    %21 = vector.broadcast %20 : vector<1x32xf32> to vector<16x32xf32>
    %22 = arith.addf %18, %21 : vector<16x32xf32>
    %c2 = arith.constant 2 : index
    %c0_15 = arith.constant 0 : index
    %c0_16 = arith.constant 0 : index
    %23 = vector.load %arg2[%c2, %c0_15, %c0_16] : memref<8x32x32xbf16, #tpu.memory_space<vmem>>, vector<1x32x32xbf16>
    %24 = vector.shape_cast %23 : vector<1x32x32xbf16> to vector<32x32xbf16>
    %cst_17 = arith.constant dense<0.000000e+00> : vector<16x32xf32>
    %25 = tpu.matmul %7, %24, %cst_17 {dimension_numbers = #tpu.dot_dimension_numbers<[1], [0], [0], [1], [0, 0, 1, 1], [], []>} : vector<16x32xbf16>, vector<32x32xbf16>, vector<16x32xf32> -> vector<16x32xf32>
    %c2_18 = arith.constant 2 : index
    %c0_19 = arith.constant 0 : index
    %c0_20 = arith.constant 0 : index
    %26 = vector.load %arg3[%c2_18, %c0_19, %c0_20] : memref<8x1x32xf32, #tpu.memory_space<vmem>>, vector<1x1x32xf32>
    %27 = vector.shape_cast %26 : vector<1x1x32xf32> to vector<1x32xf32>
    %28 = vector.broadcast %27 : vector<1x32xf32> to vector<16x32xf32>
    %29 = arith.addf %25, %28 : vector<16x32xf32>
    %30 = vector.shape_cast %15 : vector<16x32xf32> to vector<1x16x32xf32>
    %31 = arith.truncf %30 : vector<1x16x32xf32> to vector<1x16x32xbf16>
    %32 = vector.shape_cast %22 : vector<16x32xf32> to vector<1x16x32xf32>
    %33 = arith.truncf %32 : vector<1x16x32xf32> to vector<1x16x32xbf16>
    %34 = vector.shape_cast %29 : vector<16x32xf32> to vector<1x16x32xf32>
    %35 = arith.truncf %34 : vector<1x16x32xf32> to vector<1x16x32xbf16>
    %c3 = arith.constant 3 : index
    %c0_21 = arith.constant 0 : index
    %c0_22 = arith.constant 0 : index
    %36 = vector.load %arg2[%c3, %c0_21, %c0_22] : memref<8x32x32xbf16, #tpu.memory_space<vmem>>, vector<1x32x32xbf16>
    %37 = vector.shape_cast %36 : vector<1x32x32xbf16> to vector<32x32xbf16>
    %cst_23 = arith.constant 0.000000e+00 : f32
    %38 = vector.broadcast %cst_23 : f32 to vector<16x32xf32>
    %39 = vector.extract_strided_slice %31 {offsets = [0, 0, 0], sizes = [1, 16, 8], strides = [1, 1, 1]} : vector<1x16x32xbf16> to vector<1x16x8xbf16>
    %40 = vector.extract_strided_slice %33 {offsets = [0, 0, 0], sizes = [1, 16, 8], strides = [1, 1, 1]} : vector<1x16x32xbf16> to vector<1x16x8xbf16>
    "tpu.trace_start"() <{level = 10 : i32, message = "gqd,gkd->gqk"}> : () -> ()
    %cst_24 = arith.constant dense<0.000000e+00> : vector<1x16x16xf32>
    %41 = tpu.matmul %39, %40, %cst_24 {dimension_numbers = #tpu.dot_dimension_numbers<[2], [2], [1], [1], [0, 0, 0, 1, 1, 1], [0], [0]>} : vector<1x16x8xbf16>, vector<1x16x8xbf16>, vector<1x16x16xf32> -> vector<1x16x16xf32>
    "tpu.trace_stop"() : () -> ()
    %cst_25 = arith.constant dense<0xFF800000> : vector<1x16xf32>
    %42 = vector.multi_reduction <maximumf>, %41, %cst_25 [2] : vector<1x16x16xf32> to vector<1x16xf32>
    %43 = vector.shape_cast %42 : vector<1x16xf32> to vector<1x16x1xf32>
    %44 = vector.broadcast %43 : vector<1x16x1xf32> to vector<1x16x16xf32>
    %45 = arith.subf %41, %44 : vector<1x16x16xf32>
    %46 = math.exp %45 : vector<1x16x16xf32>
    %cst_26 = arith.constant dense<0.000000e+00> : vector<1x16xf32>
    %47 = vector.multi_reduction <add>, %46, %cst_26 [2] : vector<1x16x16xf32> to vector<1x16xf32>
    %48 = vector.shape_cast %47 : vector<1x16xf32> to vector<1x16x1xf32>
    %49 = tpu.reciprocal %48 {approx = true} : vector<1x16x1xf32> -> vector<1x16x1xf32>
    %50 = vector.broadcast %49 : vector<1x16x1xf32> to vector<1x16x16xf32>
    %51 = arith.mulf %46, %50 : vector<1x16x16xf32>
    %52 = arith.truncf %51 : vector<1x16x16xf32> to vector<1x16x16xbf16>
    %53 = vector.extract_strided_slice %35 {offsets = [0, 0, 0], sizes = [1, 16, 8], strides = [1, 1, 1]} : vector<1x16x32xbf16> to vector<1x16x8xbf16>
    "tpu.trace_start"() <{level = 10 : i32, message = "gqk,gkd->gqd"}> : () -> ()
    %cst_27 = arith.constant dense<0.000000e+00> : vector<1x16x8xf32>
    %54 = tpu.matmul %52, %53, %cst_27 {dimension_numbers = #tpu.dot_dimension_numbers<[2], [1], [1], [2], [0, 0, 0, 1, 1, 2], [0], [0]>} : vector<1x16x16xbf16>, vector<1x16x8xbf16>, vector<1x16x8xf32> -> vector<1x16x8xf32>
    "tpu.trace_stop"() : () -> ()
    %55 = vector.shape_cast %54 : vector<1x16x8xf32> to vector<16x8xf32>
    %56 = arith.truncf %55 : vector<16x8xf32> to vector<16x8xbf16>
    %57 = vector.extract_strided_slice %37 {offsets = [0, 0], sizes = [8, 32], strides = [1, 1]} : vector<32x32xbf16> to vector<8x32xbf16>
    %cst_28 = arith.constant dense<0.000000e+00> : vector<16x32xf32>
    %58 = tpu.matmul %56, %57, %cst_28 {dimension_numbers = #tpu.dot_dimension_numbers<[1], [0], [0], [1], [0, 0, 1, 1], [], []>} : vector<16x8xbf16>, vector<8x32xbf16>, vector<16x32xf32> -> vector<16x32xf32>
    %59 = arith.addf %38, %58 : vector<16x32xf32>
    %60 = vector.extract_strided_slice %31 {offsets = [0, 0, 8], sizes = [1, 16, 8], strides = [1, 1, 1]} : vector<1x16x32xbf16> to vector<1x16x8xbf16>
    %61 = vector.extract_strided_slice %33 {offsets = [0, 0, 8], sizes = [1, 16, 8], strides = [1, 1, 1]} : vector<1x16x32xbf16> to vector<1x16x8xbf16>
    "tpu.trace_start"() <{level = 10 : i32, message = "gqd,gkd->gqk"}> : () -> ()
    %cst_29 = arith.constant dense<0.000000e+00> : vector<1x16x16xf32>
    %62 = tpu.matmul %60, %61, %cst_29 {dimension_numbers = #tpu.dot_dimension_numbers<[2], [2], [1], [1], [0, 0, 0, 1, 1, 1], [0], [0]>} : vector<1x16x8xbf16>, vector<1x16x8xbf16>, vector<1x16x16xf32> -> vector<1x16x16xf32>
    "tpu.trace_stop"() : () -> ()
    %cst_30 = arith.constant dense<0xFF800000> : vector<1x16xf32>
    %63 = vector.multi_reduction <maximumf>, %62, %cst_30 [2] : vector<1x16x16xf32> to vector<1x16xf32>
    %64 = vector.shape_cast %63 : vector<1x16xf32> to vector<1x16x1xf32>
    %65 = vector.broadcast %64 : vector<1x16x1xf32> to vector<1x16x16xf32>
    %66 = arith.subf %62, %65 : vector<1x16x16xf32>
    %67 = math.exp %66 : vector<1x16x16xf32>
    %cst_31 = arith.constant dense<0.000000e+00> : vector<1x16xf32>
    %68 = vector.multi_reduction <add>, %67, %cst_31 [2] : vector<1x16x16xf32> to vector<1x16xf32>
    %69 = vector.shape_cast %68 : vector<1x16xf32> to vector<1x16x1xf32>
    %70 = tpu.reciprocal %69 {approx = true} : vector<1x16x1xf32> -> vector<1x16x1xf32>
    %71 = vector.broadcast %70 : vector<1x16x1xf32> to vector<1x16x16xf32>
    %72 = arith.mulf %67, %71 : vector<1x16x16xf32>
    %73 = arith.truncf %72 : vector<1x16x16xf32> to vector<1x16x16xbf16>
    %74 = vector.extract_strided_slice %35 {offsets = [0, 0, 8], sizes = [1, 16, 8], strides = [1, 1, 1]} : vector<1x16x32xbf16> to vector<1x16x8xbf16>
    "tpu.trace_start"() <{level = 10 : i32, message = "gqk,gkd->gqd"}> : () -> ()
    %cst_32 = arith.constant dense<0.000000e+00> : vector<1x16x8xf32>
    %75 = tpu.matmul %73, %74, %cst_32 {dimension_numbers = #tpu.dot_dimension_numbers<[2], [1], [1], [2], [0, 0, 0, 1, 1, 2], [0], [0]>} : vector<1x16x16xbf16>, vector<1x16x8xbf16>, vector<1x16x8xf32> -> vector<1x16x8xf32>
    "tpu.trace_stop"() : () -> ()
    %76 = vector.shape_cast %75 : vector<1x16x8xf32> to vector<16x8xf32>
    %77 = arith.truncf %76 : vector<16x8xf32> to vector<16x8xbf16>
    %78 = vector.extract_strided_slice %37 {offsets = [8, 0], sizes = [8, 32], strides = [1, 1]} : vector<32x32xbf16> to vector<8x32xbf16>
    %cst_33 = arith.constant dense<0.000000e+00> : vector<16x32xf32>
    %79 = tpu.matmul %77, %78, %cst_33 {dimension_numbers = #tpu.dot_dimension_numbers<[1], [0], [0], [1], [0, 0, 1, 1], [], []>} : vector<16x8xbf16>, vector<8x32xbf16>, vector<16x32xf32> -> vector<16x32xf32>
    %80 = arith.addf %59, %79 : vector<16x32xf32>
    %81 = vector.extract_strided_slice %31 {offsets = [0, 0, 16], sizes = [1, 16, 8], strides = [1, 1, 1]} : vector<1x16x32xbf16> to vector<1x16x8xbf16>
    %82 = vector.extract_strided_slice %33 {offsets = [0, 0, 16], sizes = [1, 16, 8], strides = [1, 1, 1]} : vector<1x16x32xbf16> to vector<1x16x8xbf16>
    "tpu.trace_start"() <{level = 10 : i32, message = "gqd,gkd->gqk"}> : () -> ()
    %cst_34 = arith.constant dense<0.000000e+00> : vector<1x16x16xf32>
    %83 = tpu.matmul %81, %82, %cst_34 {dimension_numbers = #tpu.dot_dimension_numbers<[2], [2], [1], [1], [0, 0, 0, 1, 1, 1], [0], [0]>} : vector<1x16x8xbf16>, vector<1x16x8xbf16>, vector<1x16x16xf32> -> vector<1x16x16xf32>
    "tpu.trace_stop"() : () -> ()
    %cst_35 = arith.constant dense<0xFF800000> : vector<1x16xf32>
    %84 = vector.multi_reduction <maximumf>, %83, %cst_35 [2] : vector<1x16x16xf32> to vector<1x16xf32>
    %85 = vector.shape_cast %84 : vector<1x16xf32> to vector<1x16x1xf32>
    %86 = vector.broadcast %85 : vector<1x16x1xf32> to vector<1x16x16xf32>
    %87 = arith.subf %83, %86 : vector<1x16x16xf32>
    %88 = math.exp %87 : vector<1x16x16xf32>
    %cst_36 = arith.constant dense<0.000000e+00> : vector<1x16xf32>
    %89 = vector.multi_reduction <add>, %88, %cst_36 [2] : vector<1x16x16xf32> to vector<1x16xf32>
    %90 = vector.shape_cast %89 : vector<1x16xf32> to vector<1x16x1xf32>
    %91 = tpu.reciprocal %90 {approx = true} : vector<1x16x1xf32> -> vector<1x16x1xf32>
    %92 = vector.broadcast %91 : vector<1x16x1xf32> to vector<1x16x16xf32>
    %93 = arith.mulf %88, %92 : vector<1x16x16xf32>
    %94 = arith.truncf %93 : vector<1x16x16xf32> to vector<1x16x16xbf16>
    %95 = vector.extract_strided_slice %35 {offsets = [0, 0, 16], sizes = [1, 16, 8], strides = [1, 1, 1]} : vector<1x16x32xbf16> to vector<1x16x8xbf16>
    "tpu.trace_start"() <{level = 10 : i32, message = "gqk,gkd->gqd"}> : () -> ()
    %cst_37 = arith.constant dense<0.000000e+00> : vector<1x16x8xf32>
    %96 = tpu.matmul %94, %95, %cst_37 {dimension_numbers = #tpu.dot_dimension_numbers<[2], [1], [1], [2], [0, 0, 0, 1, 1, 2], [0], [0]>} : vector<1x16x16xbf16>, vector<1x16x8xbf16>, vector<1x16x8xf32> -> vector<1x16x8xf32>
    "tpu.trace_stop"() : () -> ()
    %97 = vector.shape_cast %96 : vector<1x16x8xf32> to vector<16x8xf32>
    %98 = arith.truncf %97 : vector<16x8xf32> to vector<16x8xbf16>
    %99 = vector.extract_strided_slice %37 {offsets = [16, 0], sizes = [8, 32], strides = [1, 1]} : vector<32x32xbf16> to vector<8x32xbf16>
    %cst_38 = arith.constant dense<0.000000e+00> : vector<16x32xf32>
    %100 = tpu.matmul %98, %99, %cst_38 {dimension_numbers = #tpu.dot_dimension_numbers<[1], [0], [0], [1], [0, 0, 1, 1], [], []>} : vector<16x8xbf16>, vector<8x32xbf16>, vector<16x32xf32> -> vector<16x32xf32>
    %101 = arith.addf %80, %100 : vector<16x32xf32>
    %102 = vector.extract_strided_slice %31 {offsets = [0, 0, 24], sizes = [1, 16, 8], strides = [1, 1, 1]} : vector<1x16x32xbf16> to vector<1x16x8xbf16>
    %103 = vector.extract_strided_slice %33 {offsets = [0, 0, 24], sizes = [1, 16, 8], strides = [1, 1, 1]} : vector<1x16x32xbf16> to vector<1x16x8xbf16>
    "tpu.trace_start"() <{level = 10 : i32, message = "gqd,gkd->gqk"}> : () -> ()
    %cst_39 = arith.constant dense<0.000000e+00> : vector<1x16x16xf32>
    %104 = tpu.matmul %102, %103, %cst_39 {dimension_numbers = #tpu.dot_dimension_numbers<[2], [2], [1], [1], [0, 0, 0, 1, 1, 1], [0], [0]>} : vector<1x16x8xbf16>, vector<1x16x8xbf16>, vector<1x16x16xf32> -> vector<1x16x16xf32>
    "tpu.trace_stop"() : () -> ()
    %cst_40 = arith.constant dense<0xFF800000> : vector<1x16xf32>
    %105 = vector.multi_reduction <maximumf>, %104, %cst_40 [2] : vector<1x16x16xf32> to vector<1x16xf32>
    %106 = vector.shape_cast %105 : vector<1x16xf32> to vector<1x16x1xf32>
    %107 = vector.broadcast %106 : vector<1x16x1xf32> to vector<1x16x16xf32>
    %108 = arith.subf %104, %107 : vector<1x16x16xf32>
    %109 = math.exp %108 : vector<1x16x16xf32>
    %cst_41 = arith.constant dense<0.000000e+00> : vector<1x16xf32>
    %110 = vector.multi_reduction <add>, %109, %cst_41 [2] : vector<1x16x16xf32> to vector<1x16xf32>
    %111 = vector.shape_cast %110 : vector<1x16xf32> to vector<1x16x1xf32>
    %112 = tpu.reciprocal %111 {approx = true} : vector<1x16x1xf32> -> vector<1x16x1xf32>
    %113 = vector.broadcast %112 : vector<1x16x1xf32> to vector<1x16x16xf32>
    %114 = arith.mulf %109, %113 : vector<1x16x16xf32>
    %115 = arith.truncf %114 : vector<1x16x16xf32> to vector<1x16x16xbf16>
    %116 = vector.extract_strided_slice %35 {offsets = [0, 0, 24], sizes = [1, 16, 8], strides = [1, 1, 1]} : vector<1x16x32xbf16> to vector<1x16x8xbf16>
    "tpu.trace_start"() <{level = 10 : i32, message = "gqk,gkd->gqd"}> : () -> ()
    %cst_42 = arith.constant dense<0.000000e+00> : vector<1x16x8xf32>
    %117 = tpu.matmul %115, %116, %cst_42 {dimension_numbers = #tpu.dot_dimension_numbers<[2], [1], [1], [2], [0, 0, 0, 1, 1, 2], [0], [0]>} : vector<1x16x16xbf16>, vector<1x16x8xbf16>, vector<1x16x8xf32> -> vector<1x16x8xf32>
    "tpu.trace_stop"() : () -> ()
    %118 = vector.shape_cast %117 : vector<1x16x8xf32> to vector<16x8xf32>
    %119 = arith.truncf %118 : vector<16x8xf32> to vector<16x8xbf16>
    %120 = vector.extract_strided_slice %37 {offsets = [24, 0], sizes = [8, 32], strides = [1, 1]} : vector<32x32xbf16> to vector<8x32xbf16>
    %cst_43 = arith.constant dense<0.000000e+00> : vector<16x32xf32>
    %121 = tpu.matmul %119, %120, %cst_43 {dimension_numbers = #tpu.dot_dimension_numbers<[1], [0], [0], [1], [0, 0, 1, 1], [], []>} : vector<16x8xbf16>, vector<8x32xbf16>, vector<16x32xf32> -> vector<16x32xf32>
    %122 = arith.addf %101, %121 : vector<16x32xf32>
    %c3_44 = arith.constant 3 : index
    %c0_45 = arith.constant 0 : index
    %c0_46 = arith.constant 0 : index
    %123 = vector.load %arg3[%c3_44, %c0_45, %c0_46] : memref<8x1x32xf32, #tpu.memory_space<vmem>>, vector<1x1x32xf32>
    %124 = vector.shape_cast %123 : vector<1x1x32xf32> to vector<1x32xf32>
    %125 = vector.broadcast %124 : vector<1x32xf32> to vector<16x32xf32>
    %126 = arith.addf %122, %125 : vector<16x32xf32>
    %cst_47 = arith.constant 5.000000e-01 : f32
    %127 = vector.broadcast %cst_47 : f32 to vector<16x32xf32>
    %128 = arith.mulf %127, %126 : vector<16x32xf32>
    %cst_48 = arith.constant 0.707106769 : f32
    %129 = vector.broadcast %cst_48 : f32 to vector<16x32xf32>
    %130 = arith.mulf %126, %129 : vector<16x32xf32>
    %cst_49 = arith.constant 0.000000e+00 : f32
    %131 = vector.broadcast %cst_49 : f32 to vector<16x32xf32>
    %132 = arith.cmpf oge, %130, %131 : vector<16x32xf32>
    %cst_50 = arith.constant 1.000000e+00 : f32
    %cst_51 = arith.constant -1.000000e+00 : f32
    %133 = vector.broadcast %cst_50 : f32 to vector<16x32xf32>
    %134 = vector.broadcast %cst_51 : f32 to vector<16x32xf32>
    %135 = arith.select %132, %133, %134 : vector<16x32xi1>, vector<16x32xf32>
    %136 = math.absf %130 : vector<16x32xf32>
    %cst_52 = arith.constant 0.327591091 : f32
    %137 = vector.broadcast %cst_52 : f32 to vector<16x32xf32>
    %138 = arith.mulf %137, %136 : vector<16x32xf32>
    %cst_53 = arith.constant 1.000000e+00 : f32
    %139 = vector.broadcast %cst_53 : f32 to vector<16x32xf32>
    %140 = arith.addf %139, %138 : vector<16x32xf32>
    %141 = tpu.reciprocal %140 {approx = true} : vector<16x32xf32> -> vector<16x32xf32>
    %cst_54 = arith.constant 1.06140542 : f32
    %142 = vector.broadcast %cst_54 : f32 to vector<16x32xf32>
    %143 = arith.mulf %142, %141 : vector<16x32xf32>
    %cst_55 = arith.constant -1.45315206 : f32
    %144 = vector.broadcast %cst_55 : f32 to vector<16x32xf32>
    %145 = arith.addf %143, %144 : vector<16x32xf32>
    %146 = arith.mulf %145, %141 : vector<16x32xf32>
    %cst_56 = arith.constant 1.42141378 : f32
    %147 = vector.broadcast %cst_56 : f32 to vector<16x32xf32>
    %148 = arith.addf %146, %147 : vector<16x32xf32>
    %149 = arith.mulf %148, %141 : vector<16x32xf32>
    %cst_57 = arith.constant -0.284496725 : f32
    %150 = vector.broadcast %cst_57 : f32 to vector<16x32xf32>
    %151 = arith.addf %149, %150 : vector<16x32xf32>
    %152 = arith.mulf %151, %141 : vector<16x32xf32>
    %cst_58 = arith.constant 0.254829586 : f32
    %153 = vector.broadcast %cst_58 : f32 to vector<16x32xf32>
    %154 = arith.addf %152, %153 : vector<16x32xf32>
    %155 = arith.mulf %154, %141 : vector<16x32xf32>
    %cst_59 = arith.constant 0.000000e+00 : f32
    %156 = vector.broadcast %cst_59 : f32 to vector<16x32xf32>
    %157 = arith.subf %156, %136 : vector<16x32xf32>
    %158 = arith.mulf %157, %136 : vector<16x32xf32>
    %159 = math.exp %158 : vector<16x32xf32>
    %160 = arith.mulf %155, %159 : vector<16x32xf32>
    %cst_60 = arith.constant 1.000000e+00 : f32
    %161 = vector.broadcast %cst_60 : f32 to vector<16x32xf32>
    %162 = arith.subf %161, %160 : vector<16x32xf32>
    %163 = arith.mulf %135, %162 : vector<16x32xf32>
    %cst_61 = arith.constant 1.000000e+00 : f32
    %164 = vector.broadcast %cst_61 : f32 to vector<16x32xf32>
    %165 = arith.addf %164, %163 : vector<16x32xf32>
    %166 = arith.mulf %128, %165 : vector<16x32xf32>
    %167 = arith.subf %6, %166 : vector<16x32xf32>
    %168 = arith.truncf %167 : vector<16x32xf32> to vector<16x32xbf16>
    %c4 = arith.constant 4 : index
    %c0_62 = arith.constant 0 : index
    %c0_63 = arith.constant 0 : index
    %169 = vector.load %arg2[%c4, %c0_62, %c0_63] : memref<8x32x32xbf16, #tpu.memory_space<vmem>>, vector<1x32x32xbf16>
    %170 = vector.shape_cast %169 : vector<1x32x32xbf16> to vector<32x32xbf16>
    %cst_64 = arith.constant dense<0.000000e+00> : vector<16x32xf32>
    %171 = tpu.matmul %7, %170, %cst_64 {dimension_numbers = #tpu.dot_dimension_numbers<[1], [0], [0], [1], [0, 0, 1, 1], [], []>} : vector<16x32xbf16>, vector<32x32xbf16>, vector<16x32xf32> -> vector<16x32xf32>
    %c4_65 = arith.constant 4 : index
    %c0_66 = arith.constant 0 : index
    %c0_67 = arith.constant 0 : index
    %172 = vector.load %arg3[%c4_65, %c0_66, %c0_67] : memref<8x1x32xf32, #tpu.memory_space<vmem>>, vector<1x1x32xf32>
    %173 = vector.shape_cast %172 : vector<1x1x32xf32> to vector<1x32xf32>
    %174 = vector.broadcast %173 : vector<1x32xf32> to vector<16x32xf32>
    %175 = arith.addf %171, %174 : vector<16x32xf32>
    %c5 = arith.constant 5 : index
    %c0_68 = arith.constant 0 : index
    %c0_69 = arith.constant 0 : index
    %176 = vector.load %arg2[%c5, %c0_68, %c0_69] : memref<8x32x32xbf16, #tpu.memory_space<vmem>>, vector<1x32x32xbf16>
    %177 = vector.shape_cast %176 : vector<1x32x32xbf16> to vector<32x32xbf16>
    %cst_70 = arith.constant dense<0.000000e+00> : vector<16x32xf32>
    %178 = tpu.matmul %168, %177, %cst_70 {dimension_numbers = #tpu.dot_dimension_numbers<[1], [0], [0], [1], [0, 0, 1, 1], [], []>} : vector<16x32xbf16>, vector<32x32xbf16>, vector<16x32xf32> -> vector<16x32xf32>
    %c5_71 = arith.constant 5 : index
    %c0_72 = arith.constant 0 : index
    %c0_73 = arith.constant 0 : index
    %179 = vector.load %arg3[%c5_71, %c0_72, %c0_73] : memref<8x1x32xf32, #tpu.memory_space<vmem>>, vector<1x1x32xf32>
    %180 = vector.shape_cast %179 : vector<1x1x32xf32> to vector<1x32xf32>
    %181 = vector.broadcast %180 : vector<1x32xf32> to vector<16x32xf32>
    %182 = arith.addf %178, %181 : vector<16x32xf32>
    %c6 = arith.constant 6 : index
    %c0_74 = arith.constant 0 : index
    %c0_75 = arith.constant 0 : index
    %183 = vector.load %arg2[%c6, %c0_74, %c0_75] : memref<8x32x32xbf16, #tpu.memory_space<vmem>>, vector<1x32x32xbf16>
    %184 = vector.shape_cast %183 : vector<1x32x32xbf16> to vector<32x32xbf16>
    %cst_76 = arith.constant dense<0.000000e+00> : vector<16x32xf32>
    %185 = tpu.matmul %168, %184, %cst_76 {dimension_numbers = #tpu.dot_dimension_numbers<[1], [0], [0], [1], [0, 0, 1, 1], [], []>} : vector<16x32xbf16>, vector<32x32xbf16>, vector<16x32xf32> -> vector<16x32xf32>
    %c6_77 = arith.constant 6 : index
    %c0_78 = arith.constant 0 : index
    %c0_79 = arith.constant 0 : index
    %186 = vector.load %arg3[%c6_77, %c0_78, %c0_79] : memref<8x1x32xf32, #tpu.memory_space<vmem>>, vector<1x1x32xf32>
    %187 = vector.shape_cast %186 : vector<1x1x32xf32> to vector<1x32xf32>
    %188 = vector.broadcast %187 : vector<1x32xf32> to vector<16x32xf32>
    %189 = arith.addf %185, %188 : vector<16x32xf32>
    %190 = vector.shape_cast %175 : vector<16x32xf32> to vector<1x16x32xf32>
    %191 = arith.truncf %190 : vector<1x16x32xf32> to vector<1x16x32xbf16>
    %192 = vector.shape_cast %182 : vector<16x32xf32> to vector<1x16x32xf32>
    %193 = arith.truncf %192 : vector<1x16x32xf32> to vector<1x16x32xbf16>
    %194 = vector.shape_cast %189 : vector<16x32xf32> to vector<1x16x32xf32>
    %195 = arith.truncf %194 : vector<1x16x32xf32> to vector<1x16x32xbf16>
    %c7 = arith.constant 7 : index
    %c0_80 = arith.constant 0 : index
    %c0_81 = arith.constant 0 : index
    %196 = vector.load %arg2[%c7, %c0_80, %c0_81] : memref<8x32x32xbf16, #tpu.memory_space<vmem>>, vector<1x32x32xbf16>
    %197 = vector.shape_cast %196 : vector<1x32x32xbf16> to vector<32x32xbf16>
    %cst_82 = arith.constant 0.000000e+00 : f32
    %198 = vector.broadcast %cst_82 : f32 to vector<16x32xf32>
    %199 = vector.extract_strided_slice %191 {offsets = [0, 0, 0], sizes = [1, 16, 8], strides = [1, 1, 1]} : vector<1x16x32xbf16> to vector<1x16x8xbf16>
    %200 = vector.extract_strided_slice %193 {offsets = [0, 0, 0], sizes = [1, 16, 8], strides = [1, 1, 1]} : vector<1x16x32xbf16> to vector<1x16x8xbf16>
    "tpu.trace_start"() <{level = 10 : i32, message = "gqd,gkd->gqk"}> : () -> ()
    %cst_83 = arith.constant dense<0.000000e+00> : vector<1x16x16xf32>
    %201 = tpu.matmul %199, %200, %cst_83 {dimension_numbers = #tpu.dot_dimension_numbers<[2], [2], [1], [1], [0, 0, 0, 1, 1, 1], [0], [0]>} : vector<1x16x8xbf16>, vector<1x16x8xbf16>, vector<1x16x16xf32> -> vector<1x16x16xf32>
    "tpu.trace_stop"() : () -> ()
    %cst_84 = arith.constant dense<0xFF800000> : vector<1x16xf32>
    %202 = vector.multi_reduction <maximumf>, %201, %cst_84 [2] : vector<1x16x16xf32> to vector<1x16xf32>
    %203 = vector.shape_cast %202 : vector<1x16xf32> to vector<1x16x1xf32>
    %204 = vector.broadcast %203 : vector<1x16x1xf32> to vector<1x16x16xf32>
    %205 = arith.subf %201, %204 : vector<1x16x16xf32>
    %206 = math.exp %205 : vector<1x16x16xf32>
    %cst_85 = arith.constant dense<0.000000e+00> : vector<1x16xf32>
    %207 = vector.multi_reduction <add>, %206, %cst_85 [2] : vector<1x16x16xf32> to vector<1x16xf32>
    %208 = vector.shape_cast %207 : vector<1x16xf32> to vector<1x16x1xf32>
    %209 = tpu.reciprocal %208 {approx = true} : vector<1x16x1xf32> -> vector<1x16x1xf32>
    %210 = vector.broadcast %209 : vector<1x16x1xf32> to vector<1x16x16xf32>
    %211 = arith.mulf %206, %210 : vector<1x16x16xf32>
    %212 = arith.truncf %211 : vector<1x16x16xf32> to vector<1x16x16xbf16>
    %213 = vector.extract_strided_slice %195 {offsets = [0, 0, 0], sizes = [1, 16, 8], strides = [1, 1, 1]} : vector<1x16x32xbf16> to vector<1x16x8xbf16>
    "tpu.trace_start"() <{level = 10 : i32, message = "gqk,gkd->gqd"}> : () -> ()
    %cst_86 = arith.constant dense<0.000000e+00> : vector<1x16x8xf32>
    %214 = tpu.matmul %212, %213, %cst_86 {dimension_numbers = #tpu.dot_dimension_numbers<[2], [1], [1], [2], [0, 0, 0, 1, 1, 2], [0], [0]>} : vector<1x16x16xbf16>, vector<1x16x8xbf16>, vector<1x16x8xf32> -> vector<1x16x8xf32>
    "tpu.trace_stop"() : () -> ()
    %215 = vector.shape_cast %214 : vector<1x16x8xf32> to vector<16x8xf32>
    %216 = arith.truncf %215 : vector<16x8xf32> to vector<16x8xbf16>
    %217 = vector.extract_strided_slice %197 {offsets = [0, 0], sizes = [8, 32], strides = [1, 1]} : vector<32x32xbf16> to vector<8x32xbf16>
    %cst_87 = arith.constant dense<0.000000e+00> : vector<16x32xf32>
    %218 = tpu.matmul %216, %217, %cst_87 {dimension_numbers = #tpu.dot_dimension_numbers<[1], [0], [0], [1], [0, 0, 1, 1], [], []>} : vector<16x8xbf16>, vector<8x32xbf16>, vector<16x32xf32> -> vector<16x32xf32>
    %219 = arith.addf %198, %218 : vector<16x32xf32>
    %220 = vector.extract_strided_slice %191 {offsets = [0, 0, 8], sizes = [1, 16, 8], strides = [1, 1, 1]} : vector<1x16x32xbf16> to vector<1x16x8xbf16>
    %221 = vector.extract_strided_slice %193 {offsets = [0, 0, 8], sizes = [1, 16, 8], strides = [1, 1, 1]} : vector<1x16x32xbf16> to vector<1x16x8xbf16>
    "tpu.trace_start"() <{level = 10 : i32, message = "gqd,gkd->gqk"}> : () -> ()
    %cst_88 = arith.constant dense<0.000000e+00> : vector<1x16x16xf32>
    %222 = tpu.matmul %220, %221, %cst_88 {dimension_numbers = #tpu.dot_dimension_numbers<[2], [2], [1], [1], [0, 0, 0, 1, 1, 1], [0], [0]>} : vector<1x16x8xbf16>, vector<1x16x8xbf16>, vector<1x16x16xf32> -> vector<1x16x16xf32>
    "tpu.trace_stop"() : () -> ()
    %cst_89 = arith.constant dense<0xFF800000> : vector<1x16xf32>
    %223 = vector.multi_reduction <maximumf>, %222, %cst_89 [2] : vector<1x16x16xf32> to vector<1x16xf32>
    %224 = vector.shape_cast %223 : vector<1x16xf32> to vector<1x16x1xf32>
    %225 = vector.broadcast %224 : vector<1x16x1xf32> to vector<1x16x16xf32>
    %226 = arith.subf %222, %225 : vector<1x16x16xf32>
    %227 = math.exp %226 : vector<1x16x16xf32>
    %cst_90 = arith.constant dense<0.000000e+00> : vector<1x16xf32>
    %228 = vector.multi_reduction <add>, %227, %cst_90 [2] : vector<1x16x16xf32> to vector<1x16xf32>
    %229 = vector.shape_cast %228 : vector<1x16xf32> to vector<1x16x1xf32>
    %230 = tpu.reciprocal %229 {approx = true} : vector<1x16x1xf32> -> vector<1x16x1xf32>
    %231 = vector.broadcast %230 : vector<1x16x1xf32> to vector<1x16x16xf32>
    %232 = arith.mulf %227, %231 : vector<1x16x16xf32>
    %233 = arith.truncf %232 : vector<1x16x16xf32> to vector<1x16x16xbf16>
    %234 = vector.extract_strided_slice %195 {offsets = [0, 0, 8], sizes = [1, 16, 8], strides = [1, 1, 1]} : vector<1x16x32xbf16> to vector<1x16x8xbf16>
    "tpu.trace_start"() <{level = 10 : i32, message = "gqk,gkd->gqd"}> : () -> ()
    %cst_91 = arith.constant dense<0.000000e+00> : vector<1x16x8xf32>
    %235 = tpu.matmul %233, %234, %cst_91 {dimension_numbers = #tpu.dot_dimension_numbers<[2], [1], [1], [2], [0, 0, 0, 1, 1, 2], [0], [0]>} : vector<1x16x16xbf16>, vector<1x16x8xbf16>, vector<1x16x8xf32> -> vector<1x16x8xf32>
    "tpu.trace_stop"() : () -> ()
    %236 = vector.shape_cast %235 : vector<1x16x8xf32> to vector<16x8xf32>
    %237 = arith.truncf %236 : vector<16x8xf32> to vector<16x8xbf16>
    %238 = vector.extract_strided_slice %197 {offsets = [8, 0], sizes = [8, 32], strides = [1, 1]} : vector<32x32xbf16> to vector<8x32xbf16>
    %cst_92 = arith.constant dense<0.000000e+00> : vector<16x32xf32>
    %239 = tpu.matmul %237, %238, %cst_92 {dimension_numbers = #tpu.dot_dimension_numbers<[1], [0], [0], [1], [0, 0, 1, 1], [], []>} : vector<16x8xbf16>, vector<8x32xbf16>, vector<16x32xf32> -> vector<16x32xf32>
    %240 = arith.addf %219, %239 : vector<16x32xf32>
    %241 = vector.extract_strided_slice %191 {offsets = [0, 0, 16], sizes = [1, 16, 8], strides = [1, 1, 1]} : vector<1x16x32xbf16> to vector<1x16x8xbf16>
    %242 = vector.extract_strided_slice %193 {offsets = [0, 0, 16], sizes = [1, 16, 8], strides = [1, 1, 1]} : vector<1x16x32xbf16> to vector<1x16x8xbf16>
    "tpu.trace_start"() <{level = 10 : i32, message = "gqd,gkd->gqk"}> : () -> ()
    %cst_93 = arith.constant dense<0.000000e+00> : vector<1x16x16xf32>
    %243 = tpu.matmul %241, %242, %cst_93 {dimension_numbers = #tpu.dot_dimension_numbers<[2], [2], [1], [1], [0, 0, 0, 1, 1, 1], [0], [0]>} : vector<1x16x8xbf16>, vector<1x16x8xbf16>, vector<1x16x16xf32> -> vector<1x16x16xf32>
    "tpu.trace_stop"() : () -> ()
    %cst_94 = arith.constant dense<0xFF800000> : vector<1x16xf32>
    %244 = vector.multi_reduction <maximumf>, %243, %cst_94 [2] : vector<1x16x16xf32> to vector<1x16xf32>
    %245 = vector.shape_cast %244 : vector<1x16xf32> to vector<1x16x1xf32>
    %246 = vector.broadcast %245 : vector<1x16x1xf32> to vector<1x16x16xf32>
    %247 = arith.subf %243, %246 : vector<1x16x16xf32>
    %248 = math.exp %247 : vector<1x16x16xf32>
    %cst_95 = arith.constant dense<0.000000e+00> : vector<1x16xf32>
    %249 = vector.multi_reduction <add>, %248, %cst_95 [2] : vector<1x16x16xf32> to vector<1x16xf32>
    %250 = vector.shape_cast %249 : vector<1x16xf32> to vector<1x16x1xf32>
    %251 = tpu.reciprocal %250 {approx = true} : vector<1x16x1xf32> -> vector<1x16x1xf32>
    %252 = vector.broadcast %251 : vector<1x16x1xf32> to vector<1x16x16xf32>
    %253 = arith.mulf %248, %252 : vector<1x16x16xf32>
    %254 = arith.truncf %253 : vector<1x16x16xf32> to vector<1x16x16xbf16>
    %255 = vector.extract_strided_slice %195 {offsets = [0, 0, 16], sizes = [1, 16, 8], strides = [1, 1, 1]} : vector<1x16x32xbf16> to vector<1x16x8xbf16>
    "tpu.trace_start"() <{level = 10 : i32, message = "gqk,gkd->gqd"}> : () -> ()
    %cst_96 = arith.constant dense<0.000000e+00> : vector<1x16x8xf32>
    %256 = tpu.matmul %254, %255, %cst_96 {dimension_numbers = #tpu.dot_dimension_numbers<[2], [1], [1], [2], [0, 0, 0, 1, 1, 2], [0], [0]>} : vector<1x16x16xbf16>, vector<1x16x8xbf16>, vector<1x16x8xf32> -> vector<1x16x8xf32>
    "tpu.trace_stop"() : () -> ()
    %257 = vector.shape_cast %256 : vector<1x16x8xf32> to vector<16x8xf32>
    %258 = arith.truncf %257 : vector<16x8xf32> to vector<16x8xbf16>
    %259 = vector.extract_strided_slice %197 {offsets = [16, 0], sizes = [8, 32], strides = [1, 1]} : vector<32x32xbf16> to vector<8x32xbf16>
    %cst_97 = arith.constant dense<0.000000e+00> : vector<16x32xf32>
    %260 = tpu.matmul %258, %259, %cst_97 {dimension_numbers = #tpu.dot_dimension_numbers<[1], [0], [0], [1], [0, 0, 1, 1], [], []>} : vector<16x8xbf16>, vector<8x32xbf16>, vector<16x32xf32> -> vector<16x32xf32>
    %261 = arith.addf %240, %260 : vector<16x32xf32>
    %262 = vector.extract_strided_slice %191 {offsets = [0, 0, 24], sizes = [1, 16, 8], strides = [1, 1, 1]} : vector<1x16x32xbf16> to vector<1x16x8xbf16>
    %263 = vector.extract_strided_slice %193 {offsets = [0, 0, 24], sizes = [1, 16, 8], strides = [1, 1, 1]} : vector<1x16x32xbf16> to vector<1x16x8xbf16>
    "tpu.trace_start"() <{level = 10 : i32, message = "gqd,gkd->gqk"}> : () -> ()
    %cst_98 = arith.constant dense<0.000000e+00> : vector<1x16x16xf32>
    %264 = tpu.matmul %262, %263, %cst_98 {dimension_numbers = #tpu.dot_dimension_numbers<[2], [2], [1], [1], [0, 0, 0, 1, 1, 1], [0], [0]>} : vector<1x16x8xbf16>, vector<1x16x8xbf16>, vector<1x16x16xf32> -> vector<1x16x16xf32>
    "tpu.trace_stop"() : () -> ()
    %cst_99 = arith.constant dense<0xFF800000> : vector<1x16xf32>
    %265 = vector.multi_reduction <maximumf>, %264, %cst_99 [2] : vector<1x16x16xf32> to vector<1x16xf32>
    %266 = vector.shape_cast %265 : vector<1x16xf32> to vector<1x16x1xf32>
    %267 = vector.broadcast %266 : vector<1x16x1xf32> to vector<1x16x16xf32>
    %268 = arith.subf %264, %267 : vector<1x16x16xf32>
    %269 = math.exp %268 : vector<1x16x16xf32>
    %cst_100 = arith.constant dense<0.000000e+00> : vector<1x16xf32>
    %270 = vector.multi_reduction <add>, %269, %cst_100 [2] : vector<1x16x16xf32> to vector<1x16xf32>
    %271 = vector.shape_cast %270 : vector<1x16xf32> to vector<1x16x1xf32>
    %272 = tpu.reciprocal %271 {approx = true} : vector<1x16x1xf32> -> vector<1x16x1xf32>
    %273 = vector.broadcast %272 : vector<1x16x1xf32> to vector<1x16x16xf32>
    %274 = arith.mulf %269, %273 : vector<1x16x16xf32>
    %275 = arith.truncf %274 : vector<1x16x16xf32> to vector<1x16x16xbf16>
    %276 = vector.extract_strided_slice %195 {offsets = [0, 0, 24], sizes = [1, 16, 8], strides = [1, 1, 1]} : vector<1x16x32xbf16> to vector<1x16x8xbf16>
    "tpu.trace_start"() <{level = 10 : i32, message = "gqk,gkd->gqd"}> : () -> ()
    %cst_101 = arith.constant dense<0.000000e+00> : vector<1x16x8xf32>
    %277 = tpu.matmul %275, %276, %cst_101 {dimension_numbers = #tpu.dot_dimension_numbers<[2], [1], [1], [2], [0, 0, 0, 1, 1, 2], [0], [0]>} : vector<1x16x16xbf16>, vector<1x16x8xbf16>, vector<1x16x8xf32> -> vector<1x16x8xf32>
    "tpu.trace_stop"() : () -> ()
    %278 = vector.shape_cast %277 : vector<1x16x8xf32> to vector<16x8xf32>
    %279 = arith.truncf %278 : vector<16x8xf32> to vector<16x8xbf16>
    %280 = vector.extract_strided_slice %197 {offsets = [24, 0], sizes = [8, 32], strides = [1, 1]} : vector<32x32xbf16> to vector<8x32xbf16>
    %cst_102 = arith.constant dense<0.000000e+00> : vector<16x32xf32>
    %281 = tpu.matmul %279, %280, %cst_102 {dimension_numbers = #tpu.dot_dimension_numbers<[1], [0], [0], [1], [0, 0, 1, 1], [], []>} : vector<16x8xbf16>, vector<8x32xbf16>, vector<16x32xf32> -> vector<16x32xf32>
    %282 = arith.addf %261, %281 : vector<16x32xf32>
    %c7_103 = arith.constant 7 : index
    %c0_104 = arith.constant 0 : index
    %c0_105 = arith.constant 0 : index
    %283 = vector.load %arg3[%c7_103, %c0_104, %c0_105] : memref<8x1x32xf32, #tpu.memory_space<vmem>>, vector<1x1x32xf32>
    %284 = vector.shape_cast %283 : vector<1x1x32xf32> to vector<1x32xf32>
    %285 = vector.broadcast %284 : vector<1x32xf32> to vector<16x32xf32>
    %286 = arith.addf %282, %285 : vector<16x32xf32>
    %cst_106 = arith.constant 5.000000e-01 : f32
    %287 = vector.broadcast %cst_106 : f32 to vector<16x32xf32>
    %288 = arith.mulf %287, %286 : vector<16x32xf32>
    %cst_107 = arith.constant 0.707106769 : f32
    %289 = vector.broadcast %cst_107 : f32 to vector<16x32xf32>
    %290 = arith.mulf %286, %289 : vector<16x32xf32>
    %cst_108 = arith.constant 0.000000e+00 : f32
    %291 = vector.broadcast %cst_108 : f32 to vector<16x32xf32>
    %292 = arith.cmpf oge, %290, %291 : vector<16x32xf32>
    %cst_109 = arith.constant 1.000000e+00 : f32
    %cst_110 = arith.constant -1.000000e+00 : f32
    %293 = vector.broadcast %cst_109 : f32 to vector<16x32xf32>
    %294 = vector.broadcast %cst_110 : f32 to vector<16x32xf32>
    %295 = arith.select %292, %293, %294 : vector<16x32xi1>, vector<16x32xf32>
    %296 = math.absf %290 : vector<16x32xf32>
    %cst_111 = arith.constant 0.327591091 : f32
    %297 = vector.broadcast %cst_111 : f32 to vector<16x32xf32>
    %298 = arith.mulf %297, %296 : vector<16x32xf32>
    %cst_112 = arith.constant 1.000000e+00 : f32
    %299 = vector.broadcast %cst_112 : f32 to vector<16x32xf32>
    %300 = arith.addf %299, %298 : vector<16x32xf32>
    %301 = tpu.reciprocal %300 {approx = true} : vector<16x32xf32> -> vector<16x32xf32>
    %cst_113 = arith.constant 1.06140542 : f32
    %302 = vector.broadcast %cst_113 : f32 to vector<16x32xf32>
    %303 = arith.mulf %302, %301 : vector<16x32xf32>
    %cst_114 = arith.constant -1.45315206 : f32
    %304 = vector.broadcast %cst_114 : f32 to vector<16x32xf32>
    %305 = arith.addf %303, %304 : vector<16x32xf32>
    %306 = arith.mulf %305, %301 : vector<16x32xf32>
    %cst_115 = arith.constant 1.42141378 : f32
    %307 = vector.broadcast %cst_115 : f32 to vector<16x32xf32>
    %308 = arith.addf %306, %307 : vector<16x32xf32>
    %309 = arith.mulf %308, %301 : vector<16x32xf32>
    %cst_116 = arith.constant -0.284496725 : f32
    %310 = vector.broadcast %cst_116 : f32 to vector<16x32xf32>
    %311 = arith.addf %309, %310 : vector<16x32xf32>
    %312 = arith.mulf %311, %301 : vector<16x32xf32>
    %cst_117 = arith.constant 0.254829586 : f32
    %313 = vector.broadcast %cst_117 : f32 to vector<16x32xf32>
    %314 = arith.addf %312, %313 : vector<16x32xf32>
    %315 = arith.mulf %314, %301 : vector<16x32xf32>
    %cst_118 = arith.constant 0.000000e+00 : f32
    %316 = vector.broadcast %cst_118 : f32 to vector<16x32xf32>
    %317 = arith.subf %316, %296 : vector<16x32xf32>
    %318 = arith.mulf %317, %296 : vector<16x32xf32>
    %319 = math.exp %318 : vector<16x32xf32>
    %320 = arith.mulf %315, %319 : vector<16x32xf32>
    %cst_119 = arith.constant 1.000000e+00 : f32
    %321 = vector.broadcast %cst_119 : f32 to vector<16x32xf32>
    %322 = arith.subf %321, %320 : vector<16x32xf32>
    %323 = arith.mulf %295, %322 : vector<16x32xf32>
    %cst_120 = arith.constant 1.000000e+00 : f32
    %324 = vector.broadcast %cst_120 : f32 to vector<16x32xf32>
    %325 = arith.addf %324, %323 : vector<16x32xf32>
    %326 = arith.mulf %288, %325 : vector<16x32xf32>
    %327 = arith.addf %3, %326 : vector<16x32xf32>
    %cst_121 = arith.constant 3.125000e-02 : f32
    %328 = vector.broadcast %cst_121 : f32 to vector<1x32xf32>
    %329 = arith.addf %3, %6 : vector<16x32xf32>
    %cst_122 = arith.constant 5.000000e-01 : f32
    %330 = vector.broadcast %cst_122 : f32 to vector<16x32xf32>
    %331 = arith.mulf %330, %329 : vector<16x32xf32>
    %332 = arith.subf %331, %327 : vector<16x32xf32>
    %333 = tpu.concatenate %332, %167 in 0 : vector<16x32xf32>, vector<16x32xf32> -> vector<32x32xf32>
    "tpu.trace_start"() <{level = 10 : i32, message = "xc,nc->xn"}> : () -> ()
    %cst_123 = arith.constant dense<0.000000e+00> : vector<1x32xf32>
    %334 = tpu.matmul %328, %333, %cst_123 {dimension_numbers = #tpu.dot_dimension_numbers<[1], [1], [0], [0], [0, 0, 1, 0], [], []>} : vector<1x32xf32>, vector<32x32xf32>, vector<1x32xf32> -> vector<1x32xf32>
    "tpu.trace_stop"() : () -> ()
    %335 = vector.shape_cast %334 : vector<1x32xf32> to vector<1x1x32xf32>
    %c0_124 = arith.constant 0 : index
    %c0_125 = arith.constant 0 : index
    %c0_126 = arith.constant 0 : index
    %336 = vector.load %arg4[%c0_124, %c0_125, %c0_126] : memref<1x1x32xf32, #tpu.memory_space<vmem>>, vector<1x1x32xf32>
    tpu.vector_store %arg4[%c0_124, %c0_125, %c0_126], %335 {strides = array<i32>} : memref<1x1x32xf32, #tpu.memory_space<vmem>>, vector<1x1x32xf32>,
    return
  }
  func.func @transform_0(%arg0: i32) -> (i32, i32, i32, i32) {
    %c0_i32 = arith.constant 0 : i32
    %c0_i32_0 = arith.constant 0 : i32
    %c0_i32_1 = arith.constant 0 : i32
    %c0_i32_2 = arith.constant 0 : i32
    return %arg0, %c0_i32, %c0_i32_0, %c0_i32_1 : i32, i32, i32, i32
  }
  func.func @transform_1(%arg0: i32) -> (i32, i32, i32) {
    %c0_i32 = arith.constant 0 : i32
    %c0_i32_0 = arith.constant 0 : i32
    %c0_i32_1 = arith.constant 0 : i32
    %c0_i32_2 = arith.constant 0 : i32
    return %c0_i32, %c0_i32_0, %c0_i32_1 : i32, i32, i32
  }
  func.func @transform_2(%arg0: i32) -> (i32, i32, i32) {
    %c0_i32 = arith.constant 0 : i32
    %c0_i32_0 = arith.constant 0 : i32
    %c0_i32_1 = arith.constant 0 : i32
    %c0_i32_2 = arith.constant 0 : i32
    return %c0_i32, %c0_i32_0, %c0_i32_1 : i32, i32, i32
  }
  func.func @transform_3(%arg0: i32) -> (i32, i32, i32) {
    %c0_i32 = arith.constant 0 : i32
    %c0_i32_0 = arith.constant 0 : i32
    %c0_i32_1 = arith.constant 0 : i32
    return %arg0, %c0_i32, %c0_i32_0 : i32, i32, i32
  }
}

module attributes {stable_mosaic.version = 11 : i64} {
  func.func @_wave_kernel(%arg0: i32, %arg1: memref<1x2x16x32xf32, #tpu.memory_space<vmem>>, %arg2: memref<8x32x32xbf16, #tpu.memory_space<vmem>>, %arg3: memref<8x1x32xf32, #tpu.memory_space<vmem>>, %arg4: memref<1x1x32xf32, #tpu.memory_space<vmem>>) attributes {dimension_semantics = [#tpu.dimension_semantics<parallel>], iteration_bounds = array<i64: 4>, scalar_prefetch = 0 : i64, scratch_operands = 0 : i64, tpu.core_type = #tpu.core_type<tc>, window_params = [{transform_indices = @transform_0, window_bounds = array<i64: 1, 2, 16, 32>}, {pipeline_mode = #tpu.pipeline_mode<synchronous>, transform_indices = @transform_1, window_bounds = array<i64: 8, 32, 32>}, {pipeline_mode = #tpu.pipeline_mode<synchronous>, transform_indices = @transform_2, window_bounds = array<i64: 8, 1, 32>}, {transform_indices = @transform_3, window_bounds = array<i64: 1, 1, 32>}]} {
    %c0 = arith.constant 0 : index
    %c0_0 = arith.constant 0 : index
    %c0_1 = arith.constant 0 : index
    %c0_2 = arith.constant 0 : index
    %0 = vector.load %arg1[%c0, %c0_0, %c0_1, %c0_2] : memref<1x2x16x32xf32, #tpu.memory_space<vmem>>, vector<1x2x16x32xf32>
    %1 = vector.extract_strided_slice %0 {offsets = [0, 0, 0, 0], sizes = [1, 1, 16, 32], strides = [1, 1, 1, 1]} : vector<1x2x16x32xf32> to vector<1x1x16x32xf32>
    %2 = vector.shape_cast %1 : vector<1x1x16x32xf32> to vector<1x16x32xf32>
    %3 = vector.shape_cast %2 : vector<1x16x32xf32> to vector<16x32xf32>
    %4 = vector.extract_strided_slice %0 {offsets = [0, 1, 0, 0], sizes = [1, 1, 16, 32], strides = [1, 1, 1, 1]} : vector<1x2x16x32xf32> to vector<1x1x16x32xf32>
    %5 = vector.shape_cast %4 : vector<1x1x16x32xf32> to vector<1x16x32xf32>
    %6 = vector.shape_cast %5 : vector<1x16x32xf32> to vector<16x32xf32>
    %7 = arith.truncf %3 : vector<16x32xf32> to vector<16x32xbf16>
    %8 = arith.truncf %6 : vector<16x32xf32> to vector<16x32xbf16>
    %c0_3 = arith.constant 0 : index
    %c0_4 = arith.constant 0 : index
    %c0_5 = arith.constant 0 : index
    %9 = vector.load %arg2[%c0_3, %c0_4, %c0_5] : memref<8x32x32xbf16, #tpu.memory_space<vmem>>, vector<1x32x32xbf16>
    %10 = vector.shape_cast %9 : vector<1x32x32xbf16> to vector<32x32xbf16>
    %cst = arith.constant dense<0.000000e+00> : vector<16x32xf32>
    %11 = tpu.matmul %8, %10, %cst {dimension_numbers = #tpu.dot_dimension_numbers<[1], [0], [0], [1], [0, 0, 1, 1], [], []>} : vector<16x32xbf16>, vector<32x32xbf16>, vector<16x32xf32> -> vector<16x32xf32>
    %c0_6 = arith.constant 0 : index
    %c0_7 = arith.constant 0 : index
    %c0_8 = arith.constant 0 : index
    %12 = vector.load %arg3[%c0_6, %c0_7, %c0_8] : memref<8x1x32xf32, #tpu.memory_space<vmem>>, vector<1x1x32xf32>
    %13 = vector.shape_cast %12 : vector<1x1x32xf32> to vector<1x32xf32>
    %14 = vector.broadcast %13 : vector<1x32xf32> to vector<16x32xf32>
    %15 = arith.addf %11, %14 : vector<16x32xf32>
    %c1 = arith.constant 1 : index
    %c0_9 = arith.constant 0 : index
    %c0_10 = arith.constant 0 : index
    %16 = vector.load %arg2[%c1, %c0_9, %c0_10] : memref<8x32x32xbf16, #tpu.memory_space<vmem>>, vector<1x32x32xbf16>
    %17 = vector.shape_cast %16 : vector<1x32x32xbf16> to vector<32x32xbf16>
    %cst_11 = arith.constant dense<0.000000e+00> : vector<16x32xf32>
    %18 = tpu.matmul %7, %17, %cst_11 {dimension_numbers = #tpu.dot_dimension_numbers<[1], [0], [0], [1], [0, 0, 1, 1], [], []>} : vector<16x32xbf16>, vector<32x32xbf16>, vector<16x32xf32> -> vector<16x32xf32>
    %c1_12 = arith.constant 1 : index
    %c0_13 = arith.constant 0 : index
    %c0_14 = arith.constant 0 : index
    %19 = vector.load %arg3[%c1_12, %c0_13, %c0_14] : memref<8x1x32xf32, #tpu.memory_space<vmem>>, vector<1x1x32xf32>
    %20 = vector.shape_cast %19 : vector<1x1x32xf32> to vector<1x32xf32>
    %21 = vector.broadcast %20 : vector<1x32xf32> to vector<16x32xf32>
    %22 = arith.addf %18, %21 : vector<16x32xf32>
    %c2 = arith.constant 2 : index
    %c0_15 = arith.constant 0 : index
    %c0_16 = arith.constant 0 : index
    %23 = vector.load %arg2[%c2, %c0_15, %c0_16] : memref<8x32x32xbf16, #tpu.memory_space<vmem>>, vector<1x32x32xbf16>
    %24 = vector.shape_cast %23 : vector<1x32x32xbf16> to vector<32x32xbf16>
    %cst_17 = arith.constant dense<0.000000e+00> : vector<16x32xf32>
    %25 = tpu.matmul %7, %24, %cst_17 {dimension_numbers = #tpu.dot_dimension_numbers<[1], [0], [0], [1], [0, 0, 1, 1], [], []>} : vector<16x32xbf16>, vector<32x32xbf16>, vector<16x32xf32> -> vector<16x32xf32>
    %c2_18 = arith.constant 2 : index
    %c0_19 = arith.constant 0 : index
    %c0_20 = arith.constant 0 : index
    %26 = vector.load %arg3[%c2_18, %c0_19, %c0_20] : memref<8x1x32xf32, #tpu.memory_space<vmem>>, vector<1x1x32xf32>
    %27 = vector.shape_cast %26 : vector<1x1x32xf32> to vector<1x32xf32>
    %28 = vector.broadcast %27 : vector<1x32xf32> to vector<16x32xf32>
    %29 = arith.addf %25, %28 : vector<16x32xf32>
    %30 = vector.shape_cast %15 : vector<16x32xf32> to vector<1x16x32xf32>
    %31 = arith.truncf %30 : vector<1x16x32xf32> to vector<1x16x32xbf16>
    %32 = vector.shape_cast %22 : vector<16x32xf32> to vector<1x16x32xf32>
    %33 = arith.truncf %32 : vector<1x16x32xf32> to vector<1x16x32xbf16>
    %34 = vector.shape_cast %29 : vector<16x32xf32> to vector<1x16x32xf32>
    %35 = arith.truncf %34 : vector<1x16x32xf32> to vector<1x16x32xbf16>
    %c3 = arith.constant 3 : index
    %c0_21 = arith.constant 0 : index
    %c0_22 = arith.constant 0 : index
    %36 = vector.load %arg2[%c3, %c0_21, %c0_22] : memref<8x32x32xbf16, #tpu.memory_space<vmem>>, vector<1x32x32xbf16>
    %37 = vector.shape_cast %36 : vector<1x32x32xbf16> to vector<32x32xbf16>
    %cst_23 = arith.constant 0.000000e+00 : f32
    %38 = vector.broadcast %cst_23 : f32 to vector<16x32xf32>
    %39 = vector.extract_strided_slice %31 {offsets = [0, 0, 0], sizes = [1, 16, 8], strides = [1, 1, 1]} : vector<1x16x32xbf16> to vector<1x16x8xbf16>
    %40 = vector.extract_strided_slice %33 {offsets = [0, 0, 0], sizes = [1, 16, 8], strides = [1, 1, 1]} : vector<1x16x32xbf16> to vector<1x16x8xbf16>
    "tpu.trace_start"() <{level = 10 : i32, message = "gqd,gkd->gqk"}> : () -> ()
    %cst_24 = arith.constant dense<0.000000e+00> : vector<1x16x16xf32>
    %41 = tpu.matmul %39, %40, %cst_24 {dimension_numbers = #tpu.dot_dimension_numbers<[2], [2], [1], [1], [0, 0, 0, 1, 1, 1], [0], [0]>} : vector<1x16x8xbf16>, vector<1x16x8xbf16>, vector<1x16x16xf32> -> vector<1x16x16xf32>
    "tpu.trace_stop"() : () -> ()
    %cst_25 = arith.constant dense<0xFF800000> : vector<1x16xf32>
    %42 = vector.multi_reduction <maximumf>, %41, %cst_25 [2] : vector<1x16x16xf32> to vector<1x16xf32>
    %43 = vector.shape_cast %42 : vector<1x16xf32> to vector<1x16x1xf32>
    %44 = vector.broadcast %43 : vector<1x16x1xf32> to vector<1x16x16xf32>
    %45 = arith.subf %41, %44 : vector<1x16x16xf32>
    %46 = math.exp %45 : vector<1x16x16xf32>
    %cst_26 = arith.constant dense<0.000000e+00> : vector<1x16xf32>
    %47 = vector.multi_reduction <add>, %46, %cst_26 [2] : vector<1x16x16xf32> to vector<1x16xf32>
    %48 = vector.shape_cast %47 : vector<1x16xf32> to vector<1x16x1xf32>
    %49 = tpu.reciprocal %48 {approx = true} : vector<1x16x1xf32> -> vector<1x16x1xf32>
    %50 = vector.broadcast %49 : vector<1x16x1xf32> to vector<1x16x16xf32>
    %51 = arith.mulf %46, %50 : vector<1x16x16xf32>
    %52 = arith.truncf %51 : vector<1x16x16xf32> to vector<1x16x16xbf16>
    %53 = vector.extract_strided_slice %35 {offsets = [0, 0, 0], sizes = [1, 16, 8], strides = [1, 1, 1]} : vector<1x16x32xbf16> to vector<1x16x8xbf16>
    "tpu.trace_start"() <{level = 10 : i32, message = "gqk,gkd->gqd"}> : () -> ()
    %cst_27 = arith.constant dense<0.000000e+00> : vector<1x16x8xf32>
    %54 = tpu.matmul %52, %53, %cst_27 {dimension_numbers = #tpu.dot_dimension_numbers<[2], [1], [1], [2], [0, 0, 0, 1, 1, 2], [0], [0]>} : vector<1x16x16xbf16>, vector<1x16x8xbf16>, vector<1x16x8xf32> -> vector<1x16x8xf32>
    "tpu.trace_stop"() : () -> ()
    %55 = vector.shape_cast %54 : vector<1x16x8xf32> to vector<16x8xf32>
    %56 = arith.truncf %55 : vector<16x8xf32> to vector<16x8xbf16>
    %57 = vector.extract_strided_slice %37 {offsets = [0, 0], sizes = [8, 32], strides = [1, 1]} : vector<32x32xbf16> to vector<8x32xbf16>
    %cst_28 = arith.constant dense<0.000000e+00> : vector<16x32xf32>
    %58 = tpu.matmul %56, %57, %cst_28 {dimension_numbers = #tpu.dot_dimension_numbers<[1], [0], [0], [1], [0, 0, 1, 1], [], []>} : vector<16x8xbf16>, vector<8x32xbf16>, vector<16x32xf32> -> vector<16x32xf32>
    %59 = arith.addf %38, %58 : vector<16x32xf32>
    %60 = vector.extract_strided_slice %31 {offsets = [0, 0, 8], sizes = [1, 16, 8], strides = [1, 1, 1]} : vector<1x16x32xbf16> to vector<1x16x8xbf16>
    %61 = vector.extract_strided_slice %33 {offsets = [0, 0, 8], sizes = [1, 16, 8], strides = [1, 1, 1]} : vector<1x16x32xbf16> to vector<1x16x8xbf16>
    "tpu.trace_start"() <{level = 10 : i32, message = "gqd,gkd->gqk"}> : () -> ()
    %cst_29 = arith.constant dense<0.000000e+00> : vector<1x16x16xf32>
    %62 = tpu.matmul %60, %61, %cst_29 {dimension_numbers = #tpu.dot_dimension_numbers<[2], [2], [1], [1], [0, 0, 0, 1, 1, 1], [0], [0]>} : vector<1x16x8xbf16>, vector<1x16x8xbf16>, vector<1x16x16xf32> -> vector<1x16x16xf32>
    "tpu.trace_stop"() : () -> ()
    %cst_30 = arith.constant dense<0xFF800000> : vector<1x16xf32>
    %63 = vector.multi_reduction <maximumf>, %62, %cst_30 [2] : vector<1x16x16xf32> to vector<1x16xf32>
    %64 = vector.shape_cast %63 : vector<1x16xf32> to vector<1x16x1xf32>
    %65 = vector.broadcast %64 : vector<1x16x1xf32> to vector<1x16x16xf32>
    %66 = arith.subf %62, %65 : vector<1x16x16xf32>
    %67 = math.exp %66 : vector<1x16x16xf32>
    %cst_31 = arith.constant dense<0.000000e+00> : vector<1x16xf32>
    %68 = vector.multi_reduction <add>, %67, %cst_31 [2] : vector<1x16x16xf32> to vector<1x16xf32>
    %69 = vector.shape_cast %68 : vector<1x16xf32> to vector<1x16x1xf32>
    %70 = tpu.reciprocal %69 {approx = true} : vector<1x16x1xf32> -> vector<1x16x1xf32>
    %71 = vector.broadcast %70 : vector<1x16x1xf32> to vector<1x16x16xf32>
    %72 = arith.mulf %67, %71 : vector<1x16x16xf32>
    %73 = arith.truncf %72 : vector<1x16x16xf32> to vector<1x16x16xbf16>
    %74 = vector.extract_strided_slice %35 {offsets = [0, 0, 8], sizes = [1, 16, 8], strides = [1, 1, 1]} : vector<1x16x32xbf16> to vector<1x16x8xbf16>
    "tpu.trace_start"() <{level = 10 : i32, message = "gqk,gkd->gqd"}> : () -> ()
    %cst_32 = arith.constant dense<0.000000e+00> : vector<1x16x8xf32>
    %75 = tpu.matmul %73, %74, %cst_32 {dimension_numbers = #tpu.dot_dimension_numbers<[2], [1], [1], [2], [0, 0, 0, 1, 1, 2], [0], [0]>} : vector<1x16x16xbf16>, vector<1x16x8xbf16>, vector<1x16x8xf32> -> vector<1x16x8xf32>
    "tpu.trace_stop"() : () -> ()
    %76 = vector.shape_cast %75 : vector<1x16x8xf32> to vector<16x8xf32>
    %77 = arith.truncf %76 : vector<16x8xf32> to vector<16x8xbf16>
    %78 = vector.extract_strided_slice %37 {offsets = [8, 0], sizes = [8, 32], strides = [1, 1]} : vector<32x32xbf16> to vector<8x32xbf16>
    %cst_33 = arith.constant dense<0.000000e+00> : vector<16x32xf32>
    %79 = tpu.matmul %77, %78, %cst_33 {dimension_numbers = #tpu.dot_dimension_numbers<[1], [0], [0], [1], [0, 0, 1, 1], [], []>} : vector<16x8xbf16>, vector<8x32xbf16>, vector<16x32xf32> -> vector<16x32xf32>
    %80 = arith.addf %59, %79 : vector<16x32xf32>
    %81 = vector.extract_strided_slice %31 {offsets = [0, 0, 16], sizes = [1, 16, 8], strides = [1, 1, 1]} : vector<1x16x32xbf16> to vector<1x16x8xbf16>
    %82 = vector.extract_strided_slice %33 {offsets = [0, 0, 16], sizes = [1, 16, 8], strides = [1, 1, 1]} : vector<1x16x32xbf16> to vector<1x16x8xbf16>
    "tpu.trace_start"() <{level = 10 : i32, message = "gqd,gkd->gqk"}> : () -> ()
    %cst_34 = arith.constant dense<0.000000e+00> : vector<1x16x16xf32>
    %83 = tpu.matmul %81, %82, %cst_34 {dimension_numbers = #tpu.dot_dimension_numbers<[2], [2], [1], [1], [0, 0, 0, 1, 1, 1], [0], [0]>} : vector<1x16x8xbf16>, vector<1x16x8xbf16>, vector<1x16x16xf32> -> vector<1x16x16xf32>
    "tpu.trace_stop"() : () -> ()
    %cst_35 = arith.constant dense<0xFF800000> : vector<1x16xf32>
    %84 = vector.multi_reduction <maximumf>, %83, %cst_35 [2] : vector<1x16x16xf32> to vector<1x16xf32>
    %85 = vector.shape_cast %84 : vector<1x16xf32> to vector<1x16x1xf32>
    %86 = vector.broadcast %85 : vector<1x16x1xf32> to vector<1x16x16xf32>
    %87 = arith.subf %83, %86 : vector<1x16x16xf32>
    %88 = math.exp %87 : vector<1x16x16xf32>
    %cst_36 = arith.constant dense<0.000000e+00> : vector<1x16xf32>
    %89 = vector.multi_reduction <add>, %88, %cst_36 [2] : vector<1x16x16xf32> to vector<1x16xf32>
    %90 = vector.shape_cast %89 : vector<1x16xf32> to vector<1x16x1xf32>
    %91 = tpu.reciprocal %90 {approx = true} : vector<1x16x1xf32> -> vector<1x16x1xf32>
    %92 = vector.broadcast %91 : vector<1x16x1xf32> to vector<1x16x16xf32>
    %93 = arith.mulf %88, %92 : vector<1x16x16xf32>
    %94 = arith.truncf %93 : vector<1x16x16xf32> to vector<1x16x16xbf16>
    %95 = vector.extract_strided_slice %35 {offsets = [0, 0, 16], sizes = [1, 16, 8], strides = [1, 1, 1]} : vector<1x16x32xbf16> to vector<1x16x8xbf16>
    "tpu.trace_start"() <{level = 10 : i32, message = "gqk,gkd->gqd"}> : () -> ()
    %cst_37 = arith.constant dense<0.000000e+00> : vector<1x16x8xf32>
    %96 = tpu.matmul %94, %95, %cst_37 {dimension_numbers = #tpu.dot_dimension_numbers<[2], [1], [1], [2], [0, 0, 0, 1, 1, 2], [0], [0]>} : vector<1x16x16xbf16>, vector<1x16x8xbf16>, vector<1x16x8xf32> -> vector<1x16x8xf32>
    "tpu.trace_stop"() : () -> ()
    %97 = vector.shape_cast %96 : vector<1x16x8xf32> to vector<16x8xf32>
    %98 = arith.truncf %97 : vector<16x8xf32> to vector<16x8xbf16>
    %99 = vector.extract_strided_slice %37 {offsets = [16, 0], sizes = [8, 32], strides = [1, 1]} : vector<32x32xbf16> to vector<8x32xbf16>
    %cst_38 = arith.constant dense<0.000000e+00> : vector<16x32xf32>
    %100 = tpu.matmul %98, %99, %cst_38 {dimension_numbers = #tpu.dot_dimension_numbers<[1], [0], [0], [1], [0, 0, 1, 1], [], []>} : vector<16x8xbf16>, vector<8x32xbf16>, vector<16x32xf32> -> vector<16x32xf32>
    %101 = arith.addf %80, %100 : vector<16x32xf32>
    %102 = vector.extract_strided_slice %31 {offsets = [0, 0, 24], sizes = [1, 16, 8], strides = [1, 1, 1]} : vector<1x16x32xbf16> to vector<1x16x8xbf16>
    %103 = vector.extract_strided_slice %33 {offsets = [0, 0, 24], sizes = [1, 16, 8], strides = [1, 1, 1]} : vector<1x16x32xbf16> to vector<1x16x8xbf16>
    "tpu.trace_start"() <{level = 10 : i32, message = "gqd,gkd->gqk"}> : () -> ()
    %cst_39 = arith.constant dense<0.000000e+00> : vector<1x16x16xf32>
    %104 = tpu.matmul %102, %103, %cst_39 {dimension_numbers = #tpu.dot_dimension_numbers<[2], [2], [1], [1], [0, 0, 0, 1, 1, 1], [0], [0]>} : vector<1x16x8xbf16>, vector<1x16x8xbf16>, vector<1x16x16xf32> -> vector<1x16x16xf32>
    "tpu.trace_stop"() : () -> ()
    %cst_40 = arith.constant dense<0xFF800000> : vector<1x16xf32>
    %105 = vector.multi_reduction <maximumf>, %104, %cst_40 [2] : vector<1x16x16xf32> to vector<1x16xf32>
    %106 = vector.shape_cast %105 : vector<1x16xf32> to vector<1x16x1xf32>
    %107 = vector.broadcast %106 : vector<1x16x1xf32> to vector<1x16x16xf32>
    %108 = arith.subf %104, %107 : vector<1x16x16xf32>
    %109 = math.exp %108 : vector<1x16x16xf32>
    %cst_41 = arith.constant dense<0.000000e+00> : vector<1x16xf32>
    %110 = vector.multi_reduction <add>, %109, %cst_41 [2] : vector<1x16x16xf32> to vector<1x16xf32>
    %111 = vector.shape_cast %110 : vector<1x16xf32> to vector<1x16x1xf32>
    %112 = tpu.reciprocal %111 {approx = true} : vector<1x16x1xf32> -> vector<1x16x1xf32>
    %113 = vector.broadcast %112 : vector<1x16x1xf32> to vector<1x16x16xf32>
    %114 = arith.mulf %109, %113 : vector<1x16x16xf32>
    %115 = arith.truncf %114 : vector<1x16x16xf32> to vector<1x16x16xbf16>
    %116 = vector.extract_strided_slice %35 {offsets = [0, 0, 24], sizes = [1, 16, 8], strides = [1, 1, 1]} : vector<1x16x32xbf16> to vector<1x16x8xbf16>
    "tpu.trace_start"() <{level = 10 : i32, message = "gqk,gkd->gqd"}> : () -> ()
    %cst_42 = arith.constant dense<0.000000e+00> : vector<1x16x8xf32>
    %117 = tpu.matmul %115, %116, %cst_42 {dimension_numbers = #tpu.dot_dimension_numbers<[2], [1], [1], [2], [0, 0, 0, 1, 1, 2], [0], [0]>} : vector<1x16x16xbf16>, vector<1x16x8xbf16>, vector<1x16x8xf32> -> vector<1x16x8xf32>
    "tpu.trace_stop"() : () -> ()
    %118 = vector.shape_cast %117 : vector<1x16x8xf32> to vector<16x8xf32>
    %119 = arith.truncf %118 : vector<16x8xf32> to vector<16x8xbf16>
    %120 = vector.extract_strided_slice %37 {offsets = [24, 0], sizes = [8, 32], strides = [1, 1]} : vector<32x32xbf16> to vector<8x32xbf16>
    %cst_43 = arith.constant dense<0.000000e+00> : vector<16x32xf32>
    %121 = tpu.matmul %119, %120, %cst_43 {dimension_numbers = #tpu.dot_dimension_numbers<[1], [0], [0], [1], [0, 0, 1, 1], [], []>} : vector<16x8xbf16>, vector<8x32xbf16>, vector<16x32xf32> -> vector<16x32xf32>
    %122 = arith.addf %101, %121 : vector<16x32xf32>
    %c3_44 = arith.constant 3 : index
    %c0_45 = arith.constant 0 : index
    %c0_46 = arith.constant 0 : index
    %123 = vector.load %arg3[%c3_44, %c0_45, %c0_46] : memref<8x1x32xf32, #tpu.memory_space<vmem>>, vector<1x1x32xf32>
    %124 = vector.shape_cast %123 : vector<1x1x32xf32> to vector<1x32xf32>
    %125 = vector.broadcast %124 : vector<1x32xf32> to vector<16x32xf32>
    %126 = arith.addf %122, %125 : vector<16x32xf32>
    %cst_47 = arith.constant 5.000000e-01 : f32
    %127 = vector.broadcast %cst_47 : f32 to vector<16x32xf32>
    %128 = arith.mulf %127, %126 : vector<16x32xf32>
    %cst_48 = arith.constant 0.707106769 : f32
    %129 = vector.broadcast %cst_48 : f32 to vector<16x32xf32>
    %130 = arith.mulf %126, %129 : vector<16x32xf32>
    %cst_49 = arith.constant 0.000000e+00 : f32
    %131 = vector.broadcast %cst_49 : f32 to vector<16x32xf32>
    %132 = arith.cmpf oge, %130, %131 : vector<16x32xf32>
    %cst_50 = arith.constant 1.000000e+00 : f32
    %cst_51 = arith.constant -1.000000e+00 : f32
    %133 = vector.broadcast %cst_50 : f32 to vector<16x32xf32>
    %134 = vector.broadcast %cst_51 : f32 to vector<16x32xf32>
    %135 = arith.select %132, %133, %134 : vector<16x32xi1>, vector<16x32xf32>
    %136 = math.absf %130 : vector<16x32xf32>
    %cst_52 = arith.constant 0.327591091 : f32
    %137 = vector.broadcast %cst_52 : f32 to vector<16x32xf32>
    %138 = arith.mulf %137, %136 : vector<16x32xf32>
    %cst_53 = arith.constant 1.000000e+00 : f32
    %139 = vector.broadcast %cst_53 : f32 to vector<16x32xf32>
    %140 = arith.addf %139, %138 : vector<16x32xf32>
    %141 = tpu.reciprocal %140 {approx = true} : vector<16x32xf32> -> vector<16x32xf32>
    %cst_54 = arith.constant 1.06140542 : f32
    %142 = vector.broadcast %cst_54 : f32 to vector<16x32xf32>
    %143 = arith.mulf %142, %141 : vector<16x32xf32>
    %cst_55 = arith.constant -1.45315206 : f32
    %144 = vector.broadcast %cst_55 : f32 to vector<16x32xf32>
    %145 = arith.addf %143, %144 : vector<16x32xf32>
    %146 = arith.mulf %145, %141 : vector<16x32xf32>
    %cst_56 = arith.constant 1.42141378 : f32
    %147 = vector.broadcast %cst_56 : f32 to vector<16x32xf32>
    %148 = arith.addf %146, %147 : vector<16x32xf32>
    %149 = arith.mulf %148, %141 : vector<16x32xf32>
    %cst_57 = arith.constant -0.284496725 : f32
    %150 = vector.broadcast %cst_57 : f32 to vector<16x32xf32>
    %151 = arith.addf %149, %150 : vector<16x32xf32>
    %152 = arith.mulf %151, %141 : vector<16x32xf32>
    %cst_58 = arith.constant 0.254829586 : f32
    %153 = vector.broadcast %cst_58 : f32 to vector<16x32xf32>
    %154 = arith.addf %152, %153 : vector<16x32xf32>
    %155 = arith.mulf %154, %141 : vector<16x32xf32>
    %cst_59 = arith.constant 0.000000e+00 : f32
    %156 = vector.broadcast %cst_59 : f32 to vector<16x32xf32>
    %157 = arith.subf %156, %136 : vector<16x32xf32>
    %158 = arith.mulf %157, %136 : vector<16x32xf32>
    %159 = math.exp %158 : vector<16x32xf32>
    %160 = arith.mulf %155, %159 : vector<16x32xf32>
    %cst_60 = arith.constant 1.000000e+00 : f32
    %161 = vector.broadcast %cst_60 : f32 to vector<16x32xf32>
    %162 = arith.subf %161, %160 : vector<16x32xf32>
    %163 = arith.mulf %135, %162 : vector<16x32xf32>
    %cst_61 = arith.constant 1.000000e+00 : f32
    %164 = vector.broadcast %cst_61 : f32 to vector<16x32xf32>
    %165 = arith.addf %164, %163 : vector<16x32xf32>
    %166 = arith.mulf %128, %165 : vector<16x32xf32>
    %167 = arith.subf %6, %166 : vector<16x32xf32>
    %168 = arith.truncf %167 : vector<16x32xf32> to vector<16x32xbf16>
    %c4 = arith.constant 4 : index
    %c0_62 = arith.constant 0 : index
    %c0_63 = arith.constant 0 : index
    %169 = vector.load %arg2[%c4, %c0_62, %c0_63] : memref<8x32x32xbf16, #tpu.memory_space<vmem>>, vector<1x32x32xbf16>
    %170 = vector.shape_cast %169 : vector<1x32x32xbf16> to vector<32x32xbf16>
    %cst_64 = arith.constant dense<0.000000e+00> : vector<16x32xf32>
    %171 = tpu.matmul %7, %170, %cst_64 {dimension_numbers = #tpu.dot_dimension_numbers<[1], [0], [0], [1], [0, 0, 1, 1], [], []>} : vector<16x32xbf16>, vector<32x32xbf16>, vector<16x32xf32> -> vector<16x32xf32>
    %c4_65 = arith.constant 4 : index
    %c0_66 = arith.constant 0 : index
    %c0_67 = arith.constant 0 : index
    %172 = vector.load %arg3[%c4_65, %c0_66, %c0_67] : memref<8x1x32xf32, #tpu.memory_space<vmem>>, vector<1x1x32xf32>
    %173 = vector.shape_cast %172 : vector<1x1x32xf32> to vector<1x32xf32>
    %174 = vector.broadcast %173 : vector<1x32xf32> to vector<16x32xf32>
    %175 = arith.addf %171, %174 : vector<16x32xf32>
    %c5 = arith.constant 5 : index
    %c0_68 = arith.constant 0 : index
    %c0_69 = arith.constant 0 : index
    %176 = vector.load %arg2[%c5, %c0_68, %c0_69] : memref<8x32x32xbf16, #tpu.memory_space<vmem>>, vector<1x32x32xbf16>
    %177 = vector.shape_cast %176 : vector<1x32x32xbf16> to vector<32x32xbf16>
    %cst_70 = arith.constant dense<0.000000e+00> : vector<16x32xf32>
    %178 = tpu.matmul %168, %177, %cst_70 {dimension_numbers = #tpu.dot_dimension_numbers<[1], [0], [0], [1], [0, 0, 1, 1], [], []>} : vector<16x32xbf16>, vector<32x32xbf16>, vector<16x32xf32> -> vector<16x32xf32>
    %c5_71 = arith.constant 5 : index
    %c0_72 = arith.constant 0 : index
    %c0_73 = arith.constant 0 : index
    %179 = vector.load %arg3[%c5_71, %c0_72, %c0_73] : memref<8x1x32xf32, #tpu.memory_space<vmem>>, vector<1x1x32xf32>
    %180 = vector.shape_cast %179 : vector<1x1x32xf32> to vector<1x32xf32>
    %181 = vector.broadcast %180 : vector<1x32xf32> to vector<16x32xf32>
    %182 = arith.addf %178, %181 : vector<16x32xf32>
    %c6 = arith.constant 6 : index
    %c0_74 = arith.constant 0 : index
    %c0_75 = arith.constant 0 : index
    %183 = vector.load %arg2[%c6, %c0_74, %c0_75] : memref<8x32x32xbf16, #tpu.memory_space<vmem>>, vector<1x32x32xbf16>
    %184 = vector.shape_cast %183 : vector<1x32x32xbf16> to vector<32x32xbf16>
    %cst_76 = arith.constant dense<0.000000e+00> : vector<16x32xf32>
    %185 = tpu.matmul %168, %184, %cst_76 {dimension_numbers = #tpu.dot_dimension_numbers<[1], [0], [0], [1], [0, 0, 1, 1], [], []>} : vector<16x32xbf16>, vector<32x32xbf16>, vector<16x32xf32> -> vector<16x32xf32>
    %c6_77 = arith.constant 6 : index
    %c0_78 = arith.constant 0 : index
    %c0_79 = arith.constant 0 : index
    %186 = vector.load %arg3[%c6_77, %c0_78, %c0_79] : memref<8x1x32xf32, #tpu.memory_space<vmem>>, vector<1x1x32xf32>
    %187 = vector.shape_cast %186 : vector<1x1x32xf32> to vector<1x32xf32>
    %188 = vector.broadcast %187 : vector<1x32xf32> to vector<16x32xf32>
    %189 = arith.addf %185, %188 : vector<16x32xf32>
    %190 = vector.shape_cast %175 : vector<16x32xf32> to vector<1x16x32xf32>
    %191 = arith.truncf %190 : vector<1x16x32xf32> to vector<1x16x32xbf16>
    %192 = vector.shape_cast %182 : vector<16x32xf32> to vector<1x16x32xf32>
    %193 = arith.truncf %192 : vector<1x16x32xf32> to vector<1x16x32xbf16>
    %194 = vector.shape_cast %189 : vector<16x32xf32> to vector<1x16x32xf32>
    %195 = arith.truncf %194 : vector<1x16x32xf32> to vector<1x16x32xbf16>
    %c7 = arith.constant 7 : index
    %c0_80 = arith.constant 0 : index
    %c0_81 = arith.constant 0 : index
    %196 = vector.load %arg2[%c7, %c0_80, %c0_81] : memref<8x32x32xbf16, #tpu.memory_space<vmem>>, vector<1x32x32xbf16>
    %197 = vector.shape_cast %196 : vector<1x32x32xbf16> to vector<32x32xbf16>
    %cst_82 = arith.constant 0.000000e+00 : f32
    %198 = vector.broadcast %cst_82 : f32 to vector<16x32xf32>
    %199 = vector.extract_strided_slice %191 {offsets = [0, 0, 0], sizes = [1, 16, 8], strides = [1, 1, 1]} : vector<1x16x32xbf16> to vector<1x16x8xbf16>
    %200 = vector.extract_strided_slice %193 {offsets = [0, 0, 0], sizes = [1, 16, 8], strides = [1, 1, 1]} : vector<1x16x32xbf16> to vector<1x16x8xbf16>
    "tpu.trace_start"() <{level = 10 : i32, message = "gqd,gkd->gqk"}> : () -> ()
    %cst_83 = arith.constant dense<0.000000e+00> : vector<1x16x16xf32>
    %201 = tpu.matmul %199, %200, %cst_83 {dimension_numbers = #tpu.dot_dimension_numbers<[2], [2], [1], [1], [0, 0, 0, 1, 1, 1], [0], [0]>} : vector<1x16x8xbf16>, vector<1x16x8xbf16>, vector<1x16x16xf32> -> vector<1x16x16xf32>
    "tpu.trace_stop"() : () -> ()
    %cst_84 = arith.constant dense<0xFF800000> : vector<1x16xf32>
    %202 = vector.multi_reduction <maximumf>, %201, %cst_84 [2] : vector<1x16x16xf32> to vector<1x16xf32>
    %203 = vector.shape_cast %202 : vector<1x16xf32> to vector<1x16x1xf32>
    %204 = vector.broadcast %203 : vector<1x16x1xf32> to vector<1x16x16xf32>
    %205 = arith.subf %201, %204 : vector<1x16x16xf32>
    %206 = math.exp %205 : vector<1x16x16xf32>
    %cst_85 = arith.constant dense<0.000000e+00> : vector<1x16xf32>
    %207 = vector.multi_reduction <add>, %206, %cst_85 [2] : vector<1x16x16xf32> to vector<1x16xf32>
    %208 = vector.shape_cast %207 : vector<1x16xf32> to vector<1x16x1xf32>
    %209 = tpu.reciprocal %208 {approx = true} : vector<1x16x1xf32> -> vector<1x16x1xf32>
    %210 = vector.broadcast %209 : vector<1x16x1xf32> to vector<1x16x16xf32>
    %211 = arith.mulf %206, %210 : vector<1x16x16xf32>
    %212 = arith.truncf %211 : vector<1x16x16xf32> to vector<1x16x16xbf16>
    %213 = vector.extract_strided_slice %195 {offsets = [0, 0, 0], sizes = [1, 16, 8], strides = [1, 1, 1]} : vector<1x16x32xbf16> to vector<1x16x8xbf16>
    "tpu.trace_start"() <{level = 10 : i32, message = "gqk,gkd->gqd"}> : () -> ()
    %cst_86 = arith.constant dense<0.000000e+00> : vector<1x16x8xf32>
    %214 = tpu.matmul %212, %213, %cst_86 {dimension_numbers = #tpu.dot_dimension_numbers<[2], [1], [1], [2], [0, 0, 0, 1, 1, 2], [0], [0]>} : vector<1x16x16xbf16>, vector<1x16x8xbf16>, vector<1x16x8xf32> -> vector<1x16x8xf32>
    "tpu.trace_stop"() : () -> ()
    %215 = vector.shape_cast %214 : vector<1x16x8xf32> to vector<16x8xf32>
    %216 = arith.truncf %215 : vector<16x8xf32> to vector<16x8xbf16>
    %217 = vector.extract_strided_slice %197 {offsets = [0, 0], sizes = [8, 32], strides = [1, 1]} : vector<32x32xbf16> to vector<8x32xbf16>
    %cst_87 = arith.constant dense<0.000000e+00> : vector<16x32xf32>
    %218 = tpu.matmul %216, %217, %cst_87 {dimension_numbers = #tpu.dot_dimension_numbers<[1], [0], [0], [1], [0, 0, 1, 1], [], []>} : vector<16x8xbf16>, vector<8x32xbf16>, vector<16x32xf32> -> vector<16x32xf32>
    %219 = arith.addf %198, %218 : vector<16x32xf32>
    %220 = vector.extract_strided_slice %191 {offsets = [0, 0, 8], sizes = [1, 16, 8], strides = [1, 1, 1]} : vector<1x16x32xbf16> to vector<1x16x8xbf16>
    %221 = vector.extract_strided_slice %193 {offsets = [0, 0, 8], sizes = [1, 16, 8], strides = [1, 1, 1]} : vector<1x16x32xbf16> to vector<1x16x8xbf16>
    "tpu.trace_start"() <{level = 10 : i32, message = "gqd,gkd->gqk"}> : () -> ()
    %cst_88 = arith.constant dense<0.000000e+00> : vector<1x16x16xf32>
    %222 = tpu.matmul %220, %221, %cst_88 {dimension_numbers = #tpu.dot_dimension_numbers<[2], [2], [1], [1], [0, 0, 0, 1, 1, 1], [0], [0]>} : vector<1x16x8xbf16>, vector<1x16x8xbf16>, vector<1x16x16xf32> -> vector<1x16x16xf32>
    "tpu.trace_stop"() : () -> ()
    %cst_89 = arith.constant dense<0xFF800000> : vector<1x16xf32>
    %223 = vector.multi_reduction <maximumf>, %222, %cst_89 [2] : vector<1x16x16xf32> to vector<1x16xf32>
    %224 = vector.shape_cast %223 : vector<1x16xf32> to vector<1x16x1xf32>
    %225 = vector.broadcast %224 : vector<1x16x1xf32> to vector<1x16x16xf32>
    %226 = arith.subf %222, %225 : vector<1x16x16xf32>
    %227 = math.exp %226 : vector<1x16x16xf32>
    %cst_90 = arith.constant dense<0.000000e+00> : vector<1x16xf32>
    %228 = vector.multi_reduction <add>, %227, %cst_90 [2] : vector<1x16x16xf32> to vector<1x16xf32>
    %229 = vector.shape_cast %228 : vector<1x16xf32> to vector<1x16x1xf32>
    %230 = tpu.reciprocal %229 {approx = true} : vector<1x16x1xf32> -> vector<1x16x1xf32>
    %231 = vector.broadcast %230 : vector<1x16x1xf32> to vector<1x16x16xf32>
    %232 = arith.mulf %227, %231 : vector<1x16x16xf32>
    %233 = arith.truncf %232 : vector<1x16x16xf32> to vector<1x16x16xbf16>
    %234 = vector.extract_strided_slice %195 {offsets = [0, 0, 8], sizes = [1, 16, 8], strides = [1, 1, 1]} : vector<1x16x32xbf16> to vector<1x16x8xbf16>
    "tpu.trace_start"() <{level = 10 : i32, message = "gqk,gkd->gqd"}> : () -> ()
    %cst_91 = arith.constant dense<0.000000e+00> : vector<1x16x8xf32>
    %235 = tpu.matmul %233, %234, %cst_91 {dimension_numbers = #tpu.dot_dimension_numbers<[2], [1], [1], [2], [0, 0, 0, 1, 1, 2], [0], [0]>} : vector<1x16x16xbf16>, vector<1x16x8xbf16>, vector<1x16x8xf32> -> vector<1x16x8xf32>
    "tpu.trace_stop"() : () -> ()
    %236 = vector.shape_cast %235 : vector<1x16x8xf32> to vector<16x8xf32>
    %237 = arith.truncf %236 : vector<16x8xf32> to vector<16x8xbf16>
    %238 = vector.extract_strided_slice %197 {offsets = [8, 0], sizes = [8, 32], strides = [1, 1]} : vector<32x32xbf16> to vector<8x32xbf16>
    %cst_92 = arith.constant dense<0.000000e+00> : vector<16x32xf32>
    %239 = tpu.matmul %237, %238, %cst_92 {dimension_numbers = #tpu.dot_dimension_numbers<[1], [0], [0], [1], [0, 0, 1, 1], [], []>} : vector<16x8xbf16>, vector<8x32xbf16>, vector<16x32xf32> -> vector<16x32xf32>
    %240 = arith.addf %219, %239 : vector<16x32xf32>
    %241 = vector.extract_strided_slice %191 {offsets = [0, 0, 16], sizes = [1, 16, 8], strides = [1, 1, 1]} : vector<1x16x32xbf16> to vector<1x16x8xbf16>
    %242 = vector.extract_strided_slice %193 {offsets = [0, 0, 16], sizes = [1, 16, 8], strides = [1, 1, 1]} : vector<1x16x32xbf16> to vector<1x16x8xbf16>
    "tpu.trace_start"() <{level = 10 : i32, message = "gqd,gkd->gqk"}> : () -> ()
    %cst_93 = arith.constant dense<0.000000e+00> : vector<1x16x16xf32>
    %243 = tpu.matmul %241, %242, %cst_93 {dimension_numbers = #tpu.dot_dimension_numbers<[2], [2], [1], [1], [0, 0, 0, 1, 1, 1], [0], [0]>} : vector<1x16x8xbf16>, vector<1x16x8xbf16>, vector<1x16x16xf32> -> vector<1x16x16xf32>
    "tpu.trace_stop"() : () -> ()
    %cst_94 = arith.constant dense<0xFF800000> : vector<1x16xf32>
    %244 = vector.multi_reduction <maximumf>, %243, %cst_94 [2] : vector<1x16x16xf32> to vector<1x16xf32>
    %245 = vector.shape_cast %244 : vector<1x16xf32> to vector<1x16x1xf32>
    %246 = vector.broadcast %245 : vector<1x16x1xf32> to vector<1x16x16xf32>
    %247 = arith.subf %243, %246 : vector<1x16x16xf32>
    %248 = math.exp %247 : vector<1x16x16xf32>
    %cst_95 = arith.constant dense<0.000000e+00> : vector<1x16xf32>
    %249 = vector.multi_reduction <add>, %248, %cst_95 [2] : vector<1x16x16xf32> to vector<1x16xf32>
    %250 = vector.shape_cast %249 : vector<1x16xf32> to vector<1x16x1xf32>
    %251 = tpu.reciprocal %250 {approx = true} : vector<1x16x1xf32> -> vector<1x16x1xf32>
    %252 = vector.broadcast %251 : vector<1x16x1xf32> to vector<1x16x16xf32>
    %253 = arith.mulf %248, %252 : vector<1x16x16xf32>
    %254 = arith.truncf %253 : vector<1x16x16xf32> to vector<1x16x16xbf16>
    %255 = vector.extract_strided_slice %195 {offsets = [0, 0, 16], sizes = [1, 16, 8], strides = [1, 1, 1]} : vector<1x16x32xbf16> to vector<1x16x8xbf16>
    "tpu.trace_start"() <{level = 10 : i32, message = "gqk,gkd->gqd"}> : () -> ()
    %cst_96 = arith.constant dense<0.000000e+00> : vector<1x16x8xf32>
    %256 = tpu.matmul %254, %255, %cst_96 {dimension_numbers = #tpu.dot_dimension_numbers<[2], [1], [1], [2], [0, 0, 0, 1, 1, 2], [0], [0]>} : vector<1x16x16xbf16>, vector<1x16x8xbf16>, vector<1x16x8xf32> -> vector<1x16x8xf32>
    "tpu.trace_stop"() : () -> ()
    %257 = vector.shape_cast %256 : vector<1x16x8xf32> to vector<16x8xf32>
    %258 = arith.truncf %257 : vector<16x8xf32> to vector<16x8xbf16>
    %259 = vector.extract_strided_slice %197 {offsets = [16, 0], sizes = [8, 32], strides = [1, 1]} : vector<32x32xbf16> to vector<8x32xbf16>
    %cst_97 = arith.constant dense<0.000000e+00> : vector<16x32xf32>
    %260 = tpu.matmul %258, %259, %cst_97 {dimension_numbers = #tpu.dot_dimension_numbers<[1], [0], [0], [1], [0, 0, 1, 1], [], []>} : vector<16x8xbf16>, vector<8x32xbf16>, vector<16x32xf32> -> vector<16x32xf32>
    %261 = arith.addf %240, %260 : vector<16x32xf32>
    %262 = vector.extract_strided_slice %191 {offsets = [0, 0, 24], sizes = [1, 16, 8], strides = [1, 1, 1]} : vector<1x16x32xbf16> to vector<1x16x8xbf16>
    %263 = vector.extract_strided_slice %193 {offsets = [0, 0, 24], sizes = [1, 16, 8], strides = [1, 1, 1]} : vector<1x16x32xbf16> to vector<1x16x8xbf16>
    "tpu.trace_start"() <{level = 10 : i32, message = "gqd,gkd->gqk"}> : () -> ()
    %cst_98 = arith.constant dense<0.000000e+00> : vector<1x16x16xf32>
    %264 = tpu.matmul %262, %263, %cst_98 {dimension_numbers = #tpu.dot_dimension_numbers<[2], [2], [1], [1], [0, 0, 0, 1, 1, 1], [0], [0]>} : vector<1x16x8xbf16>, vector<1x16x8xbf16>, vector<1x16x16xf32> -> vector<1x16x16xf32>
    "tpu.trace_stop"() : () -> ()
    %cst_99 = arith.constant dense<0xFF800000> : vector<1x16xf32>
    %265 = vector.multi_reduction <maximumf>, %264, %cst_99 [2] : vector<1x16x16xf32> to vector<1x16xf32>
    %266 = vector.shape_cast %265 : vector<1x16xf32> to vector<1x16x1xf32>
    %267 = vector.broadcast %266 : vector<1x16x1xf32> to vector<1x16x16xf32>
    %268 = arith.subf %264, %267 : vector<1x16x16xf32>
    %269 = math.exp %268 : vector<1x16x16xf32>
    %cst_100 = arith.constant dense<0.000000e+00> : vector<1x16xf32>
    %270 = vector.multi_reduction <add>, %269, %cst_100 [2] : vector<1x16x16xf32> to vector<1x16xf32>
    %271 = vector.shape_cast %270 : vector<1x16xf32> to vector<1x16x1xf32>
    %272 = tpu.reciprocal %271 {approx = true} : vector<1x16x1xf32> -> vector<1x16x1xf32>
    %273 = vector.broadcast %272 : vector<1x16x1xf32> to vector<1x16x16xf32>
    %274 = arith.mulf %269, %273 : vector<1x16x16xf32>
    %275 = arith.truncf %274 : vector<1x16x16xf32> to vector<1x16x16xbf16>
    %276 = vector.extract_strided_slice %195 {offsets = [0, 0, 24], sizes = [1, 16, 8], strides = [1, 1, 1]} : vector<1x16x32xbf16> to vector<1x16x8xbf16>
    "tpu.trace_start"() <{level = 10 : i32, message = "gqk,gkd->gqd"}> : () -> ()
    %cst_101 = arith.constant dense<0.000000e+00> : vector<1x16x8xf32>
    %277 = tpu.matmul %275, %276, %cst_101 {dimension_numbers = #tpu.dot_dimension_numbers<[2], [1], [1], [2], [0, 0, 0, 1, 1, 2], [0], [0]>} : vector<1x16x16xbf16>, vector<1x16x8xbf16>, vector<1x16x8xf32> -> vector<1x16x8xf32>
    "tpu.trace_stop"() : () -> ()
    %278 = vector.shape_cast %277 : vector<1x16x8xf32> to vector<16x8xf32>
    %279 = arith.truncf %278 : vector<16x8xf32> to vector<16x8xbf16>
    %280 = vector.extract_strided_slice %197 {offsets = [24, 0], sizes = [8, 32], strides = [1, 1]} : vector<32x32xbf16> to vector<8x32xbf16>
    %cst_102 = arith.constant dense<0.000000e+00> : vector<16x32xf32>
    %281 = tpu.matmul %279, %280, %cst_102 {dimension_numbers = #tpu.dot_dimension_numbers<[1], [0], [0], [1], [0, 0, 1, 1], [], []>} : vector<16x8xbf16>, vector<8x32xbf16>, vector<16x32xf32> -> vector<16x32xf32>
    %282 = arith.addf %261, %281 : vector<16x32xf32>
    %c7_103 = arith.constant 7 : index
    %c0_104 = arith.constant 0 : index
    %c0_105 = arith.constant 0 : index
    %283 = vector.load %arg3[%c7_103, %c0_104, %c0_105] : memref<8x1x32xf32, #tpu.memory_space<vmem>>, vector<1x1x32xf32>
    %284 = vector.shape_cast %283 : vector<1x1x32xf32> to vector<1x32xf32>
    %285 = vector.broadcast %284 : vector<1x32xf32> to vector<16x32xf32>
    %286 = arith.addf %282, %285 : vector<16x32xf32>
    %cst_106 = arith.constant 5.000000e-01 : f32
    %287 = vector.broadcast %cst_106 : f32 to vector<16x32xf32>
    %288 = arith.mulf %287, %286 : vector<16x32xf32>
    %cst_107 = arith.constant 0.707106769 : f32
    %289 = vector.broadcast %cst_107 : f32 to vector<16x32xf32>
    %290 = arith.mulf %286, %289 : vector<16x32xf32>
    %cst_108 = arith.constant 0.000000e+00 : f32
    %291 = vector.broadcast %cst_108 : f32 to vector<16x32xf32>
    %292 = arith.cmpf oge, %290, %291 : vector<16x32xf32>
    %cst_109 = arith.constant 1.000000e+00 : f32
    %cst_110 = arith.constant -1.000000e+00 : f32
    %293 = vector.broadcast %cst_109 : f32 to vector<16x32xf32>
    %294 = vector.broadcast %cst_110 : f32 to vector<16x32xf32>
    %295 = arith.select %292, %293, %294 : vector<16x32xi1>, vector<16x32xf32>
    %296 = math.absf %290 : vector<16x32xf32>
    %cst_111 = arith.constant 0.327591091 : f32
    %297 = vector.broadcast %cst_111 : f32 to vector<16x32xf32>
    %298 = arith.mulf %297, %296 : vector<16x32xf32>
    %cst_112 = arith.constant 1.000000e+00 : f32
    %299 = vector.broadcast %cst_112 : f32 to vector<16x32xf32>
    %300 = arith.addf %299, %298 : vector<16x32xf32>
    %301 = tpu.reciprocal %300 {approx = true} : vector<16x32xf32> -> vector<16x32xf32>
    %cst_113 = arith.constant 1.06140542 : f32
    %302 = vector.broadcast %cst_113 : f32 to vector<16x32xf32>
    %303 = arith.mulf %302, %301 : vector<16x32xf32>
    %cst_114 = arith.constant -1.45315206 : f32
    %304 = vector.broadcast %cst_114 : f32 to vector<16x32xf32>
    %305 = arith.addf %303, %304 : vector<16x32xf32>
    %306 = arith.mulf %305, %301 : vector<16x32xf32>
    %cst_115 = arith.constant 1.42141378 : f32
    %307 = vector.broadcast %cst_115 : f32 to vector<16x32xf32>
    %308 = arith.addf %306, %307 : vector<16x32xf32>
    %309 = arith.mulf %308, %301 : vector<16x32xf32>
    %cst_116 = arith.constant -0.284496725 : f32
    %310 = vector.broadcast %cst_116 : f32 to vector<16x32xf32>
    %311 = arith.addf %309, %310 : vector<16x32xf32>
    %312 = arith.mulf %311, %301 : vector<16x32xf32>
    %cst_117 = arith.constant 0.254829586 : f32
    %313 = vector.broadcast %cst_117 : f32 to vector<16x32xf32>
    %314 = arith.addf %312, %313 : vector<16x32xf32>
    %315 = arith.mulf %314, %301 : vector<16x32xf32>
    %cst_118 = arith.constant 0.000000e+00 : f32
    %316 = vector.broadcast %cst_118 : f32 to vector<16x32xf32>
    %317 = arith.subf %316, %296 : vector<16x32xf32>
    %318 = arith.mulf %317, %296 : vector<16x32xf32>
    %319 = math.exp %318 : vector<16x32xf32>
    %320 = arith.mulf %315, %319 : vector<16x32xf32>
    %cst_119 = arith.constant 1.000000e+00 : f32
    %321 = vector.broadcast %cst_119 : f32 to vector<16x32xf32>
    %322 = arith.subf %321, %320 : vector<16x32xf32>
    %323 = arith.mulf %295, %322 : vector<16x32xf32>
    %cst_120 = arith.constant 1.000000e+00 : f32
    %324 = vector.broadcast %cst_120 : f32 to vector<16x32xf32>
    %325 = arith.addf %324, %323 : vector<16x32xf32>
    %326 = arith.mulf %288, %325 : vector<16x32xf32>
    %327 = arith.addf %3, %326 : vector<16x32xf32>
    %cst_121 = arith.constant 3.125000e-02 : f32
    %328 = vector.broadcast %cst_121 : f32 to vector<1x32xf32>
    %329 = arith.addf %3, %6 : vector<16x32xf32>
    %cst_122 = arith.constant 5.000000e-01 : f32
    %330 = vector.broadcast %cst_122 : f32 to vector<16x32xf32>
    %331 = arith.mulf %330, %329 : vector<16x32xf32>
    %332 = arith.subf %331, %327 : vector<16x32xf32>
    %333 = tpu.concatenate %332, %167 in 0 : vector<16x32xf32>, vector<16x32xf32> -> vector<32x32xf32>
    "tpu.trace_start"() <{level = 10 : i32, message = "xc,nc->xn"}> : () -> ()
    %cst_123 = arith.constant dense<0.000000e+00> : vector<1x32xf32>
    %334 = tpu.matmul %328, %333, %cst_123 {dimension_numbers = #tpu.dot_dimension_numbers<[1], [1], [0], [0], [0, 0, 1, 0], [], []>} : vector<1x32xf32>, vector<32x32xf32>, vector<1x32xf32> -> vector<1x32xf32>
    "tpu.trace_stop"() : () -> ()
    %335 = vector.shape_cast %334 : vector<1x32xf32> to vector<1x1x32xf32>
    %c0_124 = arith.constant 0 : index
    %c0_125 = arith.constant 0 : index
    %c0_126 = arith.constant 0 : index
    %336 = vector.load %arg4[%c0_124, %c0_125, %c0_126] : memref<1x1x32xf32, #tpu.memory_space<vmem>>, vector<1x1x32xf32>
    tpu.vector_store %arg4[%c0_124, %c0_125, %c0_126], %335 {strides = array<i32>} : memref<1x1x32xf32, #tpu.memory_space<vmem>>, vector<1x1x32xf32>,
    return
  }
  func.func @transform_0(%arg0: i32) -> (i32, i32, i32, i32) {
    %c0_i32 = arith.constant 0 : i32
    %c0_i32_0 = arith.constant 0 : i32
    %c0_i32_1 = arith.constant 0 : i32
    %c0_i32_2 = arith.constant 0 : i32
    return %arg0, %c0_i32, %c0_i32_0, %c0_i32_1 : i32, i32, i32, i32
  }
  func.func @transform_1(%arg0: i32) -> (i32, i32, i32) {
    %c0_i32 = arith.constant 0 : i32
    %c0_i32_0 = arith.constant 0 : i32
    %c0_i32_1 = arith.constant 0 : i32
    %c0_i32_2 = arith.constant 0 : i32
    return %c0_i32, %c0_i32_0, %c0_i32_1 : i32, i32, i32
  }
  func.func @transform_2(%arg0: i32) -> (i32, i32, i32) {
    %c0_i32 = arith.constant 0 : i32
    %c0_i32_0 = arith.constant 0 : i32
    %c0_i32_1 = arith.constant 0 : i32
    %c0_i32_2 = arith.constant 0 : i32
    return %c0_i32, %c0_i32_0, %c0_i32_1 : i32, i32, i32
  }
  func.func @transform_3(%arg0: i32) -> (i32, i32, i32) {
    %c0_i32 = arith.constant 0 : i32
    %c0_i32_0 = arith.constant 0 : i32
    %c0_i32_1 = arith.constant 0 : i32
    return %arg0, %c0_i32, %c0_i32_0 : i32, i32, i32
  }
}

</mosaic_0001>

<llo_original>
// kernel: tpu_custom_call.1
$region0: #{tpu_custom_call.1}
  #allocation0 [shape = 'u32[]', space=smem, size = 0x4, offset = 0x4, fixed_abs, tag = 'smem constant byte address 0x4 - core index']
  #allocation1 [shape = 'u32[144,128]{1,0:T(1,128)}', space=vmem, size = 0x12000, scoped, tag = 'internal scratch']
  %s0 = inlined_call_operand.hbm [shape: f32[4,2,16,32], index: 0, kind: input, shape index: {}]
  %s1 = inlined_call_operand.hbm [shape: bf16[8,32,32], index: 1, kind: input, shape index: {}]
  %s2 = inlined_call_operand.hbm [shape: f32[8,1,32], index: 2, kind: input, shape index: {}]
  %s3 = inlined_call_operand.hbm [shape: f32[4,1,32], index: 3, kind: output, shape index: {}]
  %s4 = sld [smem:[#allocation0]]
  $region57: #{tpu_custom_call.1} parent=0
    _
  %s6 = ssub.s32 1, %s4
  %s7 = scalar_select 0, %s6, %s4
  $region1: #{tpu_custom_call.1} parent=0
    #allocation2 [shape = 'u8[32768]{0}', space=vmem, size = 0x8000, scoped, tag = 'input window, operand 0']
    #allocation3 [shape = 's32[2]{0}', space=sflag, size = 0x8, scoped, tag = 'scoped memory for tpu_custom_call.1']
    #allocation4 [shape = 's32[2]{0}', space=sflag, size = 0x8, scoped, tag = 'scoped memory for tpu_custom_call.1']
    #allocation5 [shape = 'u8[65536]{0}', space=vmem, size = 0x10000, scoped, tag = 'input window, operand 1, single buffered']
    #allocation6 [shape = 's32[1]{0}', space=sflag, size = 0x4, scoped, tag = 'scoped memory for tpu_custom_call.1']
    #allocation7 [shape = 'u8[4096]{0}', space=vmem, size = 0x1000, scoped, tag = 'input window, operand 2, single buffered']
    #allocation8 [shape = 'u8[1024]{0}', space=vmem, size = 0x400, scoped, tag = 'output window, operand 0']
    %8 = vsyncpa [#allocation3], 0
    %s9 = scalar_lea.sflag [#allocation3], 1
    %10 = vsyncpa %s9, 0
    %11 = vsyncpa [#allocation6], 0
    %12 = vsyncpa [#allocation4], 0
    %s13 = scalar_lea.sflag [#allocation4], 1
    %14 = vsyncpa %s13, 0
    loop: start=0, step=1, limit=6
    $region2: #{tpu_custom_call.1} parent=1 // loop_pre_header
      _
    $region3: #{tpu_custom_call.1} parent=1 // loop_header
      %s16 = sphi 0, %s20
      %p17 = scmp.ge.s32.totalorder %s16, 6
      %s26 = sphi 0, %s28
      %s29 = sphi 0, %s26
      %s30 = sphi 0, %s29
      %s46 = sphi 0, %s30
      %s50 = sphi 0, %s50
      %s52 = sphi 0, %s50
      %s53 = sphi 0, %s52
      %s67 = sphi 0, %s53
      %s71 = sphi 0, %s71
      %s73 = sphi 0, %s71
      %s74 = sphi 0, %s73
      %s88 = sphi 0, %s74
      %s94 = sphi 0, %s96
      %s97 = sphi 0, %s94
      %s98 = sphi 0, %s97
      %s114 = sphi 0, %s98
    $region4: #{tpu_custom_call.1} parent=1 // loop_header_branch
      %19 = sbr.rel (%p17) target = $region8
    $region5: #{tpu_custom_call.1} parent=1 // loop_body
      %s21 = ssub.s32 %s16, 1
      %s22 = ssub.s32 %s16, 2
      %s23 = sadd.s32 %s16, 1
      %s24 = ssub.s32 %s16, %s23
      %p25 = scmp.eq.s32.totalorder %s24, 0
      %s27 = sadd.s32 %s26, 1
      %s28 = scalar_select %p25, %s26, %s27
      %p31 = pneg %p25
      %p32 = scmp.eq.s32.totalorder %s16, 3
      %p33 = por %p31, %p32
      %p34 = scmp.ne.s32.totalorder %s26, %s29
      %p35 = scmp.eq.s32.totalorder %s16, 0
      %p36 = por %p34, %p35
      %p37 = scmp.ne.s32.totalorder %s26, %s29
      %p38 = scmp.eq.s32.totalorder %s21, 3
      %p39 = por %p37, %p38
      %p40 = scmp.ne.s32.totalorder %s29, %s30
      %p41 = scmp.eq.s32.totalorder %s21, 0
      %p42 = por %p40, %p41
      %p43 = scmp.ne.s32.totalorder %s29, %s30
      %p44 = scmp.eq.s32.totalorder %s22, 3
      %p45 = por %p43, %p44
      %p47 = scmp.ne.s32.totalorder %s30, %s46
      %p48 = scmp.eq.s32.totalorder %s22, 0
      %p49 = por %p47, %p48
      %s51 = sadd.s32 %s50, 1
      %p54 = scmp.eq.s32.totalorder %s16, 3
      %p55 = scmp.ne.s32.totalorder %s50, %s52
      %p56 = scmp.eq.s32.totalorder %s16, 0
      %p57 = por %p55, %p56
      %p58 = scmp.ne.s32.totalorder %s50, %s52
      %p59 = scmp.eq.s32.totalorder %s21, 3
      %p60 = por %p58, %p59
      %p61 = scmp.ne.s32.totalorder %s52, %s53
      %p62 = scmp.eq.s32.totalorder %s21, 0
      %p63 = por %p61, %p62
      %p64 = scmp.ne.s32.totalorder %s52, %s53
      %p65 = scmp.eq.s32.totalorder %s22, 3
      %p66 = por %p64, %p65
      %p68 = scmp.ne.s32.totalorder %s53, %s67
      %p69 = scmp.eq.s32.totalorder %s22, 0
      %p70 = por %p68, %p69
      %s72 = sadd.s32 %s71, 1
      %p75 = scmp.eq.s32.totalorder %s16, 3
      %p76 = scmp.ne.s32.totalorder %s71, %s73
      %p77 = scmp.eq.s32.totalorder %s16, 0
      %p78 = por %p76, %p77
      %p79 = scmp.ne.s32.totalorder %s71, %s73
      %p80 = scmp.eq.s32.totalorder %s21, 3
      %p81 = por %p79, %p80
      %p82 = scmp.ne.s32.totalorder %s73, %s74
      %p83 = scmp.eq.s32.totalorder %s21, 0
      %p84 = por %p82, %p83
      %p85 = scmp.ne.s32.totalorder %s73, %s74
      %p86 = scmp.eq.s32.totalorder %s22, 3
      %p87 = por %p85, %p86
      %p89 = scmp.ne.s32.totalorder %s74, %s88
      %p90 = scmp.eq.s32.totalorder %s22, 0
      %p91 = por %p89, %p90
      %s92 = ssub.s32 %s16, %s23
      %p93 = scmp.eq.s32.totalorder %s92, 0
      %s95 = sadd.s32 %s94, 1
      %s96 = scalar_select %p93, %s94, %s95
      %p99 = pneg %p93
      %p100 = scmp.eq.s32.totalorder %s16, 3
      %p101 = por %p99, %p100
      %p102 = scmp.ne.s32.totalorder %s94, %s97
      %p103 = scmp.eq.s32.totalorder %s16, 0
      %p104 = por %p102, %p103
      %p105 = scmp.ne.s32.totalorder %s94, %s97
      %p106 = scmp.eq.s32.totalorder %s21, 3
      %p107 = por %p105, %p106
      %p108 = scmp.ne.s32.totalorder %s97, %s98
      %p109 = scmp.eq.s32.totalorder %s21, 0
      %p110 = por %p108, %p109
      %p111 = scmp.ne.s32.totalorder %s97, %s98
      %p112 = scmp.eq.s32.totalorder %s22, 3
      %p113 = por %p111, %p112
      %p115 = scmp.ne.s32.totalorder %s98, %s114
      %p116 = scmp.eq.s32.totalorder %s22, 0
      %p117 = por %p115, %p116
      %p118 = scmp.le.s32.totalorder 1, %s16
      %p119 = scmp.lt.s32.totalorder %s16, 5
      %p120 = pnand %p118, %p119
      %p121 = pneg %p120
      // Predicated region
      $region9: #{tpu_custom_call.1} parent=5 // pred_check
        _
      $region10: #{tpu_custom_call.1} parent=5 // pred_check_branch
        %123 = sbr.rel (%p120) target = $region12
      $region11: #{tpu_custom_call.1} parent=5 // pred_region
        %s124 = ssub.s32 %s16, 1
        // Predicated region
        $region13: #{tpu_custom_call.1} parent=11 // pred_check
          %p125 = pneg %p63
        $region14: #{tpu_custom_call.1} parent=11 // pred_check_branch
          %127 = sbr.rel (%p125) target = $region16
        $region15: #{tpu_custom_call.1} parent=11 // pred_region
          %s129 = ssub.s32 2048, 2048
          %130 = vsyncadd [#allocation6], %s129
          %s131 = sshll.u32 [#allocation5], 4
          %s132 = int_to_ptr.vmem [resolvable:$true] %s131
          %137 = dma.hbm_to_vmem [thread:$0]  %s1, 2048, %s132, [#allocation6], 64, 64, 4
        $region16: #{tpu_custom_call.1} parent=11 // pred_fallthru
          _
        // Predicated region
        $region17: #{tpu_custom_call.1} parent=11 // pred_check
          %p138 = pneg %p84
        $region18: #{tpu_custom_call.1} parent=11 // pred_check_branch
          %140 = sbr.rel (%p138) target = $region20
        $region19: #{tpu_custom_call.1} parent=11 // pred_region
          %s142 = ssub.s32 128, 128
          %143 = vsyncadd [#allocation6], %s142
          %s144 = sshll.u32 [#allocation7], 4
          %s145 = int_to_ptr.vmem [resolvable:$true] %s144
          %150 = dma.hbm_to_vmem [thread:$0]  %s2, 128, %s145, [#allocation6], 16, 16, 1
        $region20: #{tpu_custom_call.1} parent=11 // pred_fallthru
          _
      $region12: #{tpu_custom_call.1} parent=5 // pred_fallthru
        _
      %p151 = scmp.lt.s32.totalorder %s16, 4
      // Predicated region
      $region21: #{tpu_custom_call.1} parent=5 // pred_check
        %p152 = pneg %p151
      $region22: #{tpu_custom_call.1} parent=5 // pred_check_branch
        %154 = sbr.rel (%p152) target = $region24
      $region23: #{tpu_custom_call.1} parent=5 // pred_region
        // Predicated region
        $region25: #{tpu_custom_call.1} parent=23 // pred_check
          %p155 = pneg %p36
        $region26: #{tpu_custom_call.1} parent=23 // pred_check_branch
          %157 = sbr.rel (%p155) target = $region28
        $region27: #{tpu_custom_call.1} parent=23 // pred_region
          %s158 = sand.u32 %s26, 1
          %s159 = scalar_lea.sflag [#allocation3], %s158
          %s160 = sand.u32 %s26, 1
          %s161 = smul.addr %s160, 32
          %s162 = scalar_lea.vmem [#allocation2], %s161
          %s164 = ssub.s32 512, 512
          %165 = vsyncadd %s159, %s164
          %s166 = smul.addr %s16, 4
          %s167 = smul.addr %s166, 128
          %s168 = scalar_lea.hbm %s0, %s167
          %s169 = sshll.u32 %s162, 4
          %s170 = int_to_ptr.vmem [resolvable:$true] %s169
          %175 = dma.hbm_to_vmem [thread:$0]  %s168, 512, %s170, %s159, 128, 128, 8
        $region28: #{tpu_custom_call.1} parent=23 // pred_fallthru
          _
      $region24: #{tpu_custom_call.1} parent=5 // pred_fallthru
        _
      %p176 = scmp.le.s32.totalorder 1, %s16
      %p177 = scmp.lt.s32.totalorder %s16, 5
      %p178 = pnand %p176, %p177
      %p179 = pneg %p178
      // Predicated region
      $region29: #{tpu_custom_call.1} parent=5 // pred_check
        _
      $region30: #{tpu_custom_call.1} parent=5 // pred_check_branch
        %181 = sbr.rel (%p178) target = $region32
      $region31: #{tpu_custom_call.1} parent=5 // pred_region
        %s182 = ssub.s32 %s16, 1
        %s183 = sand.u32 %s29, 1
        %s184 = scalar_lea.sflag [#allocation3], %s183
        %s185 = sand.u32 %s29, 1
        %s186 = smul.addr %s185, 32
        %s187 = scalar_lea.vmem [#allocation2], %s186
        // Predicated region
        $region33: #{tpu_custom_call.1} parent=31 // pred_check
          %p188 = pneg %p42
        $region34: #{tpu_custom_call.1} parent=31 // pred_check_branch
          %190 = sbr.rel (%p188) target = $region36
        $region35: #{tpu_custom_call.1} parent=31 // pred_region
          %191 = dma.done %s184, 512
        $region36: #{tpu_custom_call.1} parent=31 // pred_fallthru
          _
        // Predicated region
        $region37: #{tpu_custom_call.1} parent=31 // pred_check
          %p192 = pneg %p63
        $region38: #{tpu_custom_call.1} parent=31 // pred_check_branch
          %194 = sbr.rel (%p192) target = $region40
        $region39: #{tpu_custom_call.1} parent=31 // pred_region
          %195 = dma.done [#allocation6], 2048
        $region40: #{tpu_custom_call.1} parent=31 // pred_fallthru
          _
        // Predicated region
        $region41: #{tpu_custom_call.1} parent=31 // pred_check
          %p196 = pneg %p84
        $region42: #{tpu_custom_call.1} parent=31 // pred_check_branch
          %198 = sbr.rel (%p196) target = $region44
        $region43: #{tpu_custom_call.1} parent=31 // pred_region
          %199 = dma.done [#allocation6], 128
        $region44: #{tpu_custom_call.1} parent=31 // pred_fallthru
          _
        %s200 = sand.u32 %s29, 1
        %s201 = scalar_lea.sflag [#allocation3], %s200
        %s202 = sand.u32 %s29, 1
        %s203 = smul.addr %s202, 32
        %s204 = scalar_lea.vmem [#allocation2], %s203
        %p205 = pneg %p42
        %p206 = pneg %p39
        %p207 = pneg %p63
        %p208 = pneg %p60
        %p209 = pneg %p84
        %p210 = pneg %p81
        %p211 = pneg %p110
        %p212 = pneg %p107
        %s213 = sand.u32 %s97, 1
        %s214 = scalar_lea.sflag [#allocation4], %s213
        %s215 = sand.u32 %s97, 1
        %s216 = scalar_lea.vmem [#allocation8], %s215
        %v218 = vld [vmem:[%s187] sm:$0xff]
        %v219 = vld [vmem:[%s187 + $0x8] sm:$0xff]
        %v220 = vld [vmem:[%s187 + $0x10] sm:$0xff]
        %v221 = vld [vmem:[%s187 + $0x18] sm:$0xff]
        %v222 = vpack.c.bf16 %v219, %v218
        %v223 = vpack.c.bf16 %v221, %v220
        %v224 = vld [vmem:[#allocation5] sm:$0xf]
        %v225 = vld [vmem:[#allocation5 + $0x4] sm:$0xf]
        %v226 = vld [vmem:[#allocation5 + $0x8] sm:$0xf]
        %v227 = vld [vmem:[#allocation5 + $0xc] sm:$0xf]
        %v228 = vld [vmem:[#allocation7] sm:$0x1]
        %v230 = vlaneseq
        %v231 = vshrl.u32 %v230, 7
        %v232 = vsub.s32 0, %v231
        %v233 = vrot.slane %v228, %v232
        %v239 = vunpack.c.l.b16 %v224
        %v240 = vunpack.c.l.b16 %v225
        %v241 = vunpack.c.l.b16 %v226
        %v242 = vunpack.c.l.b16 %v227
        %v243 = vpack.c.b16 %v240, %v239
        %v244 = vpack.c.b16 %v242, %v241
        %vm247 = vcmask 261120
        %v249 = vsel %vm247, %v223, 0
        %251 = vmatprep.subr.bf16.mxu0 0
        %252 = vmatpush1.bf16.msra.mxu0 %v243
        %253 = vmatprep.subr.bf16.mxu0 0
        %254 = vmatpush1.bf16.msra.mxu0 %v244
        %255 = vmatprep.subr.bf16.mxu0 0
        %256 = vmatpush1.bf16.msra.mxu0 0
        %257 = vmatprep.subr.bf16.mxu0 0
        %258 = vmatpush1.bf16.msra.mxu0 0
        %259 = vmatprep.subr.bf16.mxu0 0
        %260 = vmatpush1.bf16.msra.mxu0 0
        %261 = vmatprep.subr.bf16.mxu0 0
        %262 = vmatpush1.bf16.msra.mxu0 0
        %263 = vmatprep.subr.bf16.mxu0 0
        %264 = vmatpush1.bf16.msra.mxu0 0
        %265 = vmatprep.subr.bf16.mxu0 0
        %266 = vmatpush1.bf16.msra.mxu0 0
        %267 = vmatprep.subr.bf16.mxu0 0
        %268 = vmatpush1.bf16.msra.mxu0 0
        %269 = vmatprep.subr.bf16.mxu0 0
        %270 = vmatpush1.bf16.msra.mxu0 0
        %271 = vmatprep.subr.bf16.mxu0 0
        %272 = vmatpush1.bf16.msra.mxu0 0
        %273 = vmatprep.subr.bf16.mxu0 0
        %274 = vmatpush1.bf16.msra.mxu0 0
        %275 = vmatprep.subr.bf16.mxu0 0
        %276 = vmatpush1.bf16.msra.mxu0 0
        %277 = vmatprep.subr.bf16.mxu0 0
        %278 = vmatpush1.bf16.msra.mxu0 0
        %279 = vmatprep.subr.bf16.mxu0 0
        %280 = vmatpush1.bf16.msra.mxu0 0
        %281 = vmatprep.subr.bf16.mxu0 0
        %282 = vmatpush1.bf16.msra.mxu0 0
        %283 = vmatprep.mubr.bf16.mxu0 0
        %284 = vmatmul.mubr.bf16.gmra.mrb[0].mxu0 %v249
        %v285 = vpop.f32.mrb[0].mxu0
        %v286 = vadd.f32 %v233, %v285
        %v287 = vpop.f32.mrb[0].mxu0
        %v288 = vpop.f32.mrb[0].mxu0
        %v289 = vadd.f32 %v233, %v288
        %v290 = vpop.f32.mrb[0].mxu0
        %291 = vdwg.mxu0
        %s292 = scalar_lea.vmem [#allocation5], 16
        %v293 = vld [vmem:[%s292] sm:$0xf]
        %v294 = vld [vmem:[%s292 + $0x4] sm:$0xf]
        %v295 = vld [vmem:[%s292 + $0x8] sm:$0xf]
        %v296 = vld [vmem:[%s292 + $0xc] sm:$0xf]
        %s297 = scalar_lea.vmem [#allocation7], 1
        %v298 = vld [vmem:[%s297] sm:$0x1]
        %v300 = vlaneseq
        %v301 = vshrl.u32 %v300, 7
        %v302 = vsub.s32 0, %v301
        %v303 = vrot.slane %v298, %v302
        %v309 = vunpack.c.l.b16 %v293
        %v310 = vunpack.c.l.b16 %v294
        %v311 = vunpack.c.l.b16 %v295
        %v312 = vunpack.c.l.b16 %v296
        %v313 = vpack.c.b16 %v310, %v309
        %v314 = vpack.c.b16 %v312, %v311
        %v318 = vsel %vm247, %v222, 0
        %320 = vmatprep.subr.bf16.mxu0 0
        %321 = vmatpush1.bf16.msra.mxu0 %v313
        %322 = vmatprep.subr.bf16.mxu0 0
        %323 = vmatpush1.bf16.msra.mxu0 %v314
        %324 = vmatprep.subr.bf16.mxu0 0
        %325 = vmatpush1.bf16.msra.mxu0 0
        %326 = vmatprep.subr.bf16.mxu0 0
        %327 = vmatpush1.bf16.msra.mxu0 0
        %328 = vmatprep.subr.bf16.mxu0 0
        %329 = vmatpush1.bf16.msra.mxu0 0
        %330 = vmatprep.subr.bf16.mxu0 0
        %331 = vmatpush1.bf16.msra.mxu0 0
        %332 = vmatprep.subr.bf16.mxu0 0
        %333 = vmatpush1.bf16.msra.mxu0 0
        %334 = vmatprep.subr.bf16.mxu0 0
        %335 = vmatpush1.bf16.msra.mxu0 0
        %336 = vmatprep.subr.bf16.mxu0 0
        %337 = vmatpush1.bf16.msra.mxu0 0
        %338 = vmatprep.subr.bf16.mxu0 0
        %339 = vmatpush1.bf16.msra.mxu0 0
        %340 = vmatprep.subr.bf16.mxu0 0
        %341 = vmatpush1.bf16.msra.mxu0 0
        %342 = vmatprep.subr.bf16.mxu0 0
        %343 = vmatpush1.bf16.msra.mxu0 0
        %344 = vmatprep.subr.bf16.mxu0 0
        %345 = vmatpush1.bf16.msra.mxu0 0
        %346 = vmatprep.subr.bf16.mxu0 0
        %347 = vmatpush1.bf16.msra.mxu0 0
        %348 = vmatprep.subr.bf16.mxu0 0
        %349 = vmatpush1.bf16.msra.mxu0 0
        %350 = vmatprep.subr.bf16.mxu0 0
        %351 = vmatpush1.bf16.msra.mxu0 0
        %352 = vmatprep.mubr.bf16.mxu0 0
        %353 = vmatmul.mubr.bf16.gmra.mrb[0].mxu0 %v318
        %v354 = vpop.f32.mrb[0].mxu0
        %v355 = vadd.f32 %v303, %v354
        %v356 = vpop.f32.mrb[0].mxu0
        %v357 = vpop.f32.mrb[0].mxu0
        %v358 = vadd.f32 %v303, %v357
        %v359 = vpop.f32.mrb[0].mxu0
        %360 = vdwg.mxu0
        %s361 = scalar_lea.vmem [#allocation5], 32
        %v362 = vld [vmem:[%s361] sm:$0xf]
        %v363 = vld [vmem:[%s361 + $0x4] sm:$0xf]
        %v364 = vld [vmem:[%s361 + $0x8] sm:$0xf]
        %v365 = vld [vmem:[%s361 + $0xc] sm:$0xf]
        %s366 = scalar_lea.vmem [#allocation7], 2
        %v367 = vld [vmem:[%s366] sm:$0x1]
        %v369 = vlaneseq
        %v370 = vshrl.u32 %v369, 7
        %v371 = vsub.s32 0, %v370
        %v372 = vrot.slane %v367, %v371
        %v378 = vunpack.c.l.b16 %v362
        %v379 = vunpack.c.l.b16 %v363
        %v380 = vunpack.c.l.b16 %v364
        %v381 = vunpack.c.l.b16 %v365
        %v382 = vpack.c.b16 %v379, %v378
        %v383 = vpack.c.b16 %v381, %v380
        %386 = vmatprep.subr.bf16.mxu0 0
        %387 = vmatpush1.bf16.msra.mxu0 %v382
        %388 = vmatprep.subr.bf16.mxu0 0
        %389 = vmatpush1.bf16.msra.mxu0 %v383
        %390 = vmatprep.subr.bf16.mxu0 0
        %391 = vmatpush1.bf16.msra.mxu0 0
        %392 = vmatprep.subr.bf16.mxu0 0
        %393 = vmatpush1.bf16.msra.mxu0 0
        %394 = vmatprep.subr.bf16.mxu0 0
        %395 = vmatpush1.bf16.msra.mxu0 0
        %396 = vmatprep.subr.bf16.mxu0 0
        %397 = vmatpush1.bf16.msra.mxu0 0
        %398 = vmatprep.subr.bf16.mxu0 0
        %399 = vmatpush1.bf16.msra.mxu0 0
        %400 = vmatprep.subr.bf16.mxu0 0
        %401 = vmatpush1.bf16.msra.mxu0 0
        %402 = vmatprep.subr.bf16.mxu0 0
        %403 = vmatpush1.bf16.msra.mxu0 0
        %404 = vmatprep.subr.bf16.mxu0 0
        %405 = vmatpush1.bf16.msra.mxu0 0
        %406 = vmatprep.subr.bf16.mxu0 0
        %407 = vmatpush1.bf16.msra.mxu0 0
        %408 = vmatprep.subr.bf16.mxu0 0
        %409 = vmatpush1.bf16.msra.mxu0 0
        %410 = vmatprep.subr.bf16.mxu0 0
        %411 = vmatpush1.bf16.msra.mxu0 0
        %412 = vmatprep.subr.bf16.mxu0 0
        %413 = vmatpush1.bf16.msra.mxu0 0
        %414 = vmatprep.subr.bf16.mxu0 0
        %415 = vmatpush1.bf16.msra.mxu0 0
        %416 = vmatprep.subr.bf16.mxu0 0
        %417 = vmatpush1.bf16.msra.mxu0 0
        %418 = vmatprep.mubr.bf16.mxu0 0
        %419 = vmatmul.mubr.bf16.gmra.mrb[0].mxu0 %v318
        %v420 = vpop.f32.mrb[0].mxu0
        %v421 = vadd.f32 %v372, %v420
        %v422 = vpop.f32.mrb[0].mxu0
        %v423 = vpop.f32.mrb[0].mxu0
        %v424 = vadd.f32 %v372, %v423
        %v425 = vpop.f32.mrb[0].mxu0
        %426 = vdwg.mxu0
        %v427 = vpack.c.bf16 %v289, %v286
        %v428 = vpack.c.bf16 %v358, %v355
        %v429 = vpack.c.bf16 %v424, %v421
        %s430 = scalar_lea.vmem [#allocation5], 48
        %v431 = vld [vmem:[%s430] sm:$0xf]
        %v432 = vld [vmem:[%s430 + $0x4] sm:$0xf]
        %v433 = vld [vmem:[%s430 + $0x8] sm:$0xf]
        %v434 = vld [vmem:[%s430 + $0xc] sm:$0xf]
        %vm435 = vcmask 64512
        %v437 = vsel %vm435, %v427, 0
        %v440 = vsel %vm435, %v428, 0
        %442 = vmatprep.subr.bf16.mxu0 0
        %443 = vmatpush1.bf16.xpose.msra.mxu0 %v440
        %444 = vmatprep.subr.bf16.mxu0 0
        %445 = vmatpush1.bf16.xpose.msra.mxu0 0
        %446 = vmatprep.subr.bf16.mxu0 0
        %447 = vmatpush1.bf16.xpose.msra.mxu0 0
        %448 = vmatprep.subr.bf16.mxu0 0
        %449 = vmatpush1.bf16.xpose.msra.mxu0 0
        %450 = vmatprep.subr.bf16.mxu0 0
        %451 = vmatpush1.bf16.xpose.msra.mxu0 0
        %452 = vmatprep.subr.bf16.mxu0 0
        %453 = vmatpush1.bf16.xpose.msra.mxu0 0
        %454 = vmatprep.subr.bf16.mxu0 0
        %455 = vmatpush1.bf16.xpose.msra.mxu0 0
        %456 = vmatprep.subr.bf16.mxu0 0
        %457 = vmatpush1.bf16.xpose.msra.mxu0 0
        %458 = vmatprep.subr.bf16.mxu0 0
        %459 = vmatpush1.bf16.xpose.msra.mxu0 0
        %460 = vmatprep.subr.bf16.mxu0 0
        %461 = vmatpush1.bf16.xpose.msra.mxu0 0
        %462 = vmatprep.subr.bf16.mxu0 0
        %463 = vmatpush1.bf16.xpose.msra.mxu0 0
        %464 = vmatprep.subr.bf16.mxu0 0
        %465 = vmatpush1.bf16.xpose.msra.mxu0 0
        %466 = vmatprep.subr.bf16.mxu0 0
        %467 = vmatpush1.bf16.xpose.msra.mxu0 0
        %468 = vmatprep.subr.bf16.mxu0 0
        %469 = vmatpush1.bf16.xpose.msra.mxu0 0
        %470 = vmatprep.subr.bf16.mxu0 0
        %471 = vmatpush1.bf16.xpose.msra.mxu0 0
        %472 = vmatprep.subr.bf16.mxu0 0
        %473 = vmatpush1.bf16.xpose.msra.mxu0 0
        %474 = vmatprep.mubr.bf16.mxu0 0
        %475 = vmatmul.mubr.bf16.gmra.mrb[0].mxu0 %v437
        %v476 = vpop.f32.mrb[0].mxu0
        %v477 = vadd.f32 0.0, %v476
        %v478 = vpop.f32.mrb[0].mxu0
        %v479 = vpop.f32.mrb[0].mxu0
        %v480 = vadd.f32 0.0, %v479
        %v481 = vpop.f32.mrb[0].mxu0
        %482 = vdwg.mxu0
        %vm483 = vcmask 130048
        %v484 = vsel %vm483, %v477, -inf
        %485 = vmax.xlane.f32.xlu0 %v484
        %v486 = vpop.xlane.xlu0 %485
        %v487 = vsel %vm483, %v480, -inf
        %488 = vmax.xlane.f32.xlu0 %v487
        %v489 = vpop.xlane.xlu0 %488
        %v490 = vsub.f32 %v477, %v486
        %v491 = vsub.f32 %v480, %v489
        %v492 = vmul.f32 %v490, 1.442695
        %v493 = vpow.pop %v492
        %v494 = vmul.f32 %v491, 1.442695
        %v495 = vpow.pop %v494
        %v496 = vsel %vm483, %v493, 0.0
        %497 = vadd.xlane.f32.xlu0 %v496
        %v498 = vpop.xlane.xlu0 %497
        %v499 = vsel %vm483, %v495, 0.0
        %500 = vadd.xlane.f32.xlu0 %v499
        %v501 = vpop.xlane.xlu0 %500
        %v502 = vrcp.pop %v498
        %v503 = vrcp.pop %v501
        %v504 = vmul.f32 %v493, %v502
        %v505 = vmul.f32 %v495, %v503
        %v506 = vpack.c.bf16 %v505, %v504
        %v508 = vsel %vm483, %v506, 0
        %510 = vmatprep.subr.bf16.mxu0 0
        %511 = vmatpush1.bf16.msra.mxu0 %v429
        %512 = vmatprep.subr.bf16.mxu0 0
        %513 = vmatpush1.bf16.msra.mxu0 0
        %514 = vmatprep.subr.bf16.mxu0 0
        %515 = vmatpush1.bf16.msra.mxu0 0
        %516 = vmatprep.subr.bf16.mxu0 0
        %517 = vmatpush1.bf16.msra.mxu0 0
        %518 = vmatprep.subr.bf16.mxu0 0
        %519 = vmatpush1.bf16.msra.mxu0 0
        %520 = vmatprep.subr.bf16.mxu0 0
        %521 = vmatpush1.bf16.msra.mxu0 0
        %522 = vmatprep.subr.bf16.mxu0 0
        %523 = vmatpush1.bf16.msra.mxu0 0
        %524 = vmatprep.subr.bf16.mxu0 0
        %525 = vmatpush1.bf16.msra.mxu0 0
        %526 = vmatprep.subr.bf16.mxu0 0
        %527 = vmatpush1.bf16.msra.mxu0 0
        %528 = vmatprep.subr.bf16.mxu0 0
        %529 = vmatpush1.bf16.msra.mxu0 0
        %530 = vmatprep.subr.bf16.mxu0 0
        %531 = vmatpush1.bf16.msra.mxu0 0
        %532 = vmatprep.subr.bf16.mxu0 0
        %533 = vmatpush1.bf16.msra.mxu0 0
        %534 = vmatprep.subr.bf16.mxu0 0
        %535 = vmatpush1.bf16.msra.mxu0 0
        %536 = vmatprep.subr.bf16.mxu0 0
        %537 = vmatpush1.bf16.msra.mxu0 0
        %538 = vmatprep.subr.bf16.mxu0 0
        %539 = vmatpush1.bf16.msra.mxu0 0
        %540 = vmatprep.subr.bf16.mxu0 0
        %541 = vmatpush1.bf16.msra.mxu0 0
        %542 = vmatprep.mubr.bf16.mxu0 0
        %543 = vmatmul.mubr.bf16.gmra.mrb[0].mxu0 %v508
        %v544 = vpop.f32.mrb[0].mxu0
        %v545 = vadd.f32 0.0, %v544
        %v546 = vpop.f32.mrb[0].mxu0
        %v547 = vpop.f32.mrb[0].mxu0
        %v548 = vadd.f32 0.0, %v547
        %v549 = vpop.f32.mrb[0].mxu0
        %550 = vdwg.mxu0
        %v551 = vpack.c.bf16 %v548, %v545
        %553 = vrot.lane.b32.xlu0 %v427, 120
        %v554 = vpop.permute.xlu0 %553
        %556 = vrot.lane.b32.xlu0 %v428, 120
        %v557 = vpop.permute.xlu0 %556
        %v559 = vsel %vm435, %v554, 0
        %v562 = vsel %vm435, %v557, 0
        %564 = vmatprep.subr.bf16.mxu0 0
        %565 = vmatpush1.bf16.xpose.msra.mxu0 %v562
        %566 = vmatprep.subr.bf16.mxu0 0
        %567 = vmatpush1.bf16.xpose.msra.mxu0 0
        %568 = vmatprep.subr.bf16.mxu0 0
        %569 = vmatpush1.bf16.xpose.msra.mxu0 0
        %570 = vmatprep.subr.bf16.mxu0 0
        %571 = vmatpush1.bf16.xpose.msra.mxu0 0
        %572 = vmatprep.subr.bf16.mxu0 0
        %573 = vmatpush1.bf16.xpose.msra.mxu0 0
        %574 = vmatprep.subr.bf16.mxu0 0
        %575 = vmatpush1.bf16.xpose.msra.mxu0 0
        %576 = vmatprep.subr.bf16.mxu0 0
        %577 = vmatpush1.bf16.xpose.msra.mxu0 0
        %578 = vmatprep.subr.bf16.mxu0 0
        %579 = vmatpush1.bf16.xpose.msra.mxu0 0
        %580 = vmatprep.subr.bf16.mxu0 0
        %581 = vmatpush1.bf16.xpose.msra.mxu0 0
        %582 = vmatprep.subr.bf16.mxu0 0
        %583 = vmatpush1.bf16.xpose.msra.mxu0 0
        %584 = vmatprep.subr.bf16.mxu0 0
        %585 = vmatpush1.bf16.xpose.msra.mxu0 0
        %586 = vmatprep.subr.bf16.mxu0 0
        %587 = vmatpush1.bf16.xpose.msra.mxu0 0
        %588 = vmatprep.subr.bf16.mxu0 0
        %589 = vmatpush1.bf16.xpose.msra.mxu0 0
        %590 = vmatprep.subr.bf16.mxu0 0
        %591 = vmatpush1.bf16.xpose.msra.mxu0 0
        %592 = vmatprep.subr.bf16.mxu0 0
        %593 = vmatpush1.bf16.xpose.msra.mxu0 0
        %594 = vmatprep.subr.bf16.mxu0 0
        %595 = vmatpush1.bf16.xpose.msra.mxu0 0
        %596 = vmatprep.mubr.bf16.mxu0 0
        %597 = vmatmul.mubr.bf16.gmra.mrb[0].mxu0 %v559
        %v598 = vpop.f32.mrb[0].mxu0
        %v599 = vadd.f32 0.0, %v598
        %v600 = vpop.f32.mrb[0].mxu0
        %v601 = vpop.f32.mrb[0].mxu0
        %v602 = vadd.f32 0.0, %v601
        %v603 = vpop.f32.mrb[0].mxu0
        %604 = vdwg.mxu0
        %v605 = vsel %vm483, %v599, -inf
        %606 = vmax.xlane.f32.xlu0 %v605
        %v607 = vpop.xlane.xlu0 %606
        %v608 = vsel %vm483, %v602, -inf
        %609 = vmax.xlane.f32.xlu0 %v608
        %v610 = vpop.xlane.xlu0 %609
        %v611 = vsub.f32 %v599, %v607
        %v612 = vsub.f32 %v602, %v610
        %v613 = vmul.f32 %v611, 1.442695
        %v614 = vpow.pop %v613
        %v615 = vmul.f32 %v612, 1.442695
        %v616 = vpow.pop %v615
        %v617 = vsel %vm483, %v614, 0.0
        %618 = vadd.xlane.f32.xlu0 %v617
        %v619 = vpop.xlane.xlu0 %618
        %v620 = vsel %vm483, %v616, 0.0
        %621 = vadd.xlane.f32.xlu0 %v620
        %v622 = vpop.xlane.xlu0 %621
        %v623 = vrcp.pop %v619
        %v624 = vrcp.pop %v622
        %v625 = vmul.f32 %v614, %v623
        %v626 = vmul.f32 %v616, %v624
        %v627 = vpack.c.bf16 %v626, %v625
        %629 = vrot.lane.b32.xlu0 %v429, 120
        %v630 = vpop.permute.xlu0 %629
        %v633 = vsel %vm483, %v627, 0
        %635 = vmatprep.subr.bf16.mxu0 0
        %636 = vmatpush1.bf16.msra.mxu0 %v630
        %637 = vmatprep.subr.bf16.mxu0 0
        %638 = vmatpush1.bf16.msra.mxu0 0
        %639 = vmatprep.subr.bf16.mxu0 0
        %640 = vmatpush1.bf16.msra.mxu0 0
        %641 = vmatprep.subr.bf16.mxu0 0
        %642 = vmatpush1.bf16.msra.mxu0 0
        %643 = vmatprep.subr.bf16.mxu0 0
        %644 = vmatpush1.bf16.msra.mxu0 0
        %645 = vmatprep.subr.bf16.mxu0 0
        %646 = vmatpush1.bf16.msra.mxu0 0
        %647 = vmatprep.subr.bf16.mxu0 0
        %648 = vmatpush1.bf16.msra.mxu0 0
        %649 = vmatprep.subr.bf16.mxu0 0
        %650 = vmatpush1.bf16.msra.mxu0 0
        %651 = vmatprep.subr.bf16.mxu0 0
        %652 = vmatpush1.bf16.msra.mxu0 0
        %653 = vmatprep.subr.bf16.mxu0 0
        %654 = vmatpush1.bf16.msra.mxu0 0
        %655 = vmatprep.subr.bf16.mxu0 0
        %656 = vmatpush1.bf16.msra.mxu0 0
        %657 = vmatprep.subr.bf16.mxu0 0
        %658 = vmatpush1.bf16.msra.mxu0 0
        %659 = vmatprep.subr.bf16.mxu0 0
        %660 = vmatpush1.bf16.msra.mxu0 0
        %661 = vmatprep.subr.bf16.mxu0 0
        %662 = vmatpush1.bf16.msra.mxu0 0
        %663 = vmatprep.subr.bf16.mxu0 0
        %664 = vmatpush1.bf16.msra.mxu0 0
        %665 = vmatprep.subr.bf16.mxu0 0
        %666 = vmatpush1.bf16.msra.mxu0 0
        %667 = vmatprep.mubr.bf16.mxu0 0
        %668 = vmatmul.mubr.bf16.gmra.mrb[0].mxu0 %v633
        %v669 = vpop.f32.mrb[0].mxu0
        %v670 = vadd.f32 0.0, %v669
        %v671 = vpop.f32.mrb[0].mxu0
        %v672 = vpop.f32.mrb[0].mxu0
        %v673 = vadd.f32 0.0, %v672
        %v674 = vpop.f32.mrb[0].mxu0
        %675 = vdwg.mxu0
        %v676 = vpack.c.bf16 %v673, %v670
        %v678 = vsel %vm435, %v676, 0
        %vm680 = vcmask 1043456
        %v682 = vsel %vm680, %v432, 0
        %684 = vmatprep.subr.bf16.mxu0 0
        %685 = vmatpush1.bf16.msra.mxu0 %v682
        %686 = vmatprep.subr.bf16.mxu0 0
        %687 = vmatpush1.bf16.msra.mxu0 0
        %688 = vmatprep.subr.bf16.mxu0 0
        %689 = vmatpush1.bf16.msra.mxu0 0
        %690 = vmatprep.subr.bf16.mxu0 0
        %691 = vmatpush1.bf16.msra.mxu0 0
        %692 = vmatprep.subr.bf16.mxu0 0
        %693 = vmatpush1.bf16.msra.mxu0 0
        %694 = vmatprep.subr.bf16.mxu0 0
        %695 = vmatpush1.bf16.msra.mxu0 0
        %696 = vmatprep.subr.bf16.mxu0 0
        %697 = vmatpush1.bf16.msra.mxu0 0
        %698 = vmatprep.subr.bf16.mxu0 0
        %699 = vmatpush1.bf16.msra.mxu0 0
        %700 = vmatprep.subr.bf16.mxu0 0
        %701 = vmatpush1.bf16.msra.mxu0 0
        %702 = vmatprep.subr.bf16.mxu0 0
        %703 = vmatpush1.bf16.msra.mxu0 0
        %704 = vmatprep.subr.bf16.mxu0 0
        %705 = vmatpush1.bf16.msra.mxu0 0
        %706 = vmatprep.subr.bf16.mxu0 0
        %707 = vmatpush1.bf16.msra.mxu0 0
        %708 = vmatprep.subr.bf16.mxu0 0
        %709 = vmatpush1.bf16.msra.mxu0 0
        %710 = vmatprep.subr.bf16.mxu0 0
        %711 = vmatpush1.bf16.msra.mxu0 0
        %712 = vmatprep.subr.bf16.mxu0 0
        %713 = vmatpush1.bf16.msra.mxu0 0
        %714 = vmatprep.subr.bf16.mxu0 0
        %715 = vmatpush1.bf16.msra.mxu0 0
        %716 = vmatprep.mubr.bf16.mxu0 0
        %717 = vmatmul.mubr.bf16.gmra.mrb[0].mxu0 %v678
        %v718 = vpop.f32.mrb[0].mxu0
        %v719 = vadd.f32 0.0, %v718
        %v720 = vpop.f32.mrb[0].mxu0
        %v721 = vpop.f32.mrb[0].mxu0
        %v722 = vadd.f32 0.0, %v721
        %v723 = vpop.f32.mrb[0].mxu0
        %724 = vdwg.mxu0
        %v726 = vsel %vm435, %v551, 0
        %v729 = vsel %vm680, %v431, 0
        %731 = vmatprep.subr.bf16.mxu0 0
        %732 = vmatpush1.bf16.msra.mxu0 %v729
        %733 = vmatprep.subr.bf16.mxu0 0
        %734 = vmatpush1.bf16.msra.mxu0 0
        %735 = vmatprep.subr.bf16.mxu0 0
        %736 = vmatpush1.bf16.msra.mxu0 0
        %737 = vmatprep.subr.bf16.mxu0 0
        %738 = vmatpush1.bf16.msra.mxu0 0
        %739 = vmatprep.subr.bf16.mxu0 0
        %740 = vmatpush1.bf16.msra.mxu0 0
        %741 = vmatprep.subr.bf16.mxu0 0
        %742 = vmatpush1.bf16.msra.mxu0 0
        %743 = vmatprep.subr.bf16.mxu0 0
        %744 = vmatpush1.bf16.msra.mxu0 0
        %745 = vmatprep.subr.bf16.mxu0 0
        %746 = vmatpush1.bf16.msra.mxu0 0
        %747 = vmatprep.subr.bf16.mxu0 0
        %748 = vmatpush1.bf16.msra.mxu0 0
        %749 = vmatprep.subr.bf16.mxu0 0
        %750 = vmatpush1.bf16.msra.mxu0 0
        %751 = vmatprep.subr.bf16.mxu0 0
        %752 = vmatpush1.bf16.msra.mxu0 0
        %753 = vmatprep.subr.bf16.mxu0 0
        %754 = vmatpush1.bf16.msra.mxu0 0
        %755 = vmatprep.subr.bf16.mxu0 0
        %756 = vmatpush1.bf16.msra.mxu0 0
        %757 = vmatprep.subr.bf16.mxu0 0
        %758 = vmatpush1.bf16.msra.mxu0 0
        %759 = vmatprep.subr.bf16.mxu0 0
        %760 = vmatpush1.bf16.msra.mxu0 0
        %761 = vmatprep.subr.bf16.mxu0 0
        %762 = vmatpush1.bf16.msra.mxu0 0
        %763 = vmatprep.mubr.bf16.mxu0 0
        %764 = vmatmul.mubr.bf16.gmra.mrb[0].mxu0 %v726
        %v765 = vpop.f32.mrb[0].mxu0
        %v766 = vadd.f32 %v719, %v765
        %v767 = vpop.f32.mrb[0].mxu0
        %v768 = vpop.f32.mrb[0].mxu0
        %v769 = vadd.f32 %v722, %v768
        %v770 = vpop.f32.mrb[0].mxu0
        %771 = vdwg.mxu0
        %772 = vrot.lane.b32.xlu0 %v427, 112
        %v773 = vpop.permute.xlu0 %772
        %774 = vrot.lane.b32.xlu0 %v428, 112
        %v775 = vpop.permute.xlu0 %774
        %v777 = vsel %vm435, %v773, 0
        %v780 = vsel %vm435, %v775, 0
        %782 = vmatprep.subr.bf16.mxu0 0
        %783 = vmatpush1.bf16.xpose.msra.mxu0 %v780
        %784 = vmatprep.subr.bf16.mxu0 0
        %785 = vmatpush1.bf16.xpose.msra.mxu0 0
        %786 = vmatprep.subr.bf16.mxu0 0
        %787 = vmatpush1.bf16.xpose.msra.mxu0 0
        %788 = vmatprep.subr.bf16.mxu0 0
        %789 = vmatpush1.bf16.xpose.msra.mxu0 0
        %790 = vmatprep.subr.bf16.mxu0 0
        %791 = vmatpush1.bf16.xpose.msra.mxu0 0
        %792 = vmatprep.subr.bf16.mxu0 0
        %793 = vmatpush1.bf16.xpose.msra.mxu0 0
        %794 = vmatprep.subr.bf16.mxu0 0
        %795 = vmatpush1.bf16.xpose.msra.mxu0 0
        %796 = vmatprep.subr.bf16.mxu0 0
        %797 = vmatpush1.bf16.xpose.msra.mxu0 0
        %798 = vmatprep.subr.bf16.mxu0 0
        %799 = vmatpush1.bf16.xpose.msra.mxu0 0
        %800 = vmatprep.subr.bf16.mxu0 0
        %801 = vmatpush1.bf16.xpose.msra.mxu0 0
        %802 = vmatprep.subr.bf16.mxu0 0
        %803 = vmatpush1.bf16.xpose.msra.mxu0 0
        %804 = vmatprep.subr.bf16.mxu0 0
        %805 = vmatpush1.bf16.xpose.msra.mxu0 0
        %806 = vmatprep.subr.bf16.mxu0 0
        %807 = vmatpush1.bf16.xpose.msra.mxu0 0
        %808 = vmatprep.subr.bf16.mxu0 0
        %809 = vmatpush1.bf16.xpose.msra.mxu0 0
        %810 = vmatprep.subr.bf16.mxu0 0
        %811 = vmatpush1.bf16.xpose.msra.mxu0 0
        %812 = vmatprep.subr.bf16.mxu0 0
        %813 = vmatpush1.bf16.xpose.msra.mxu0 0
        %814 = vmatprep.mubr.bf16.mxu0 0
        %815 = vmatmul.mubr.bf16.gmra.mrb[0].mxu0 %v777
        %v816 = vpop.f32.mrb[0].mxu0
        %v817 = vadd.f32 0.0, %v816
        %v818 = vpop.f32.mrb[0].mxu0
        %v819 = vpop.f32.mrb[0].mxu0
        %v820 = vadd.f32 0.0, %v819
        %v821 = vpop.f32.mrb[0].mxu0
        %822 = vdwg.mxu0
        %v823 = vsel %vm483, %v817, -inf
        %824 = vmax.xlane.f32.xlu0 %v823
        %v825 = vpop.xlane.xlu0 %824
        %v826 = vsel %vm483, %v820, -inf
        %827 = vmax.xlane.f32.xlu0 %v826
        %v828 = vpop.xlane.xlu0 %827
        %v829 = vsub.f32 %v817, %v825
        %v830 = vsub.f32 %v820, %v828
        %v831 = vmul.f32 %v829, 1.442695
        %v832 = vpow.pop %v831
        %v833 = vmul.f32 %v830, 1.442695
        %v834 = vpow.pop %v833
        %v835 = vsel %vm483, %v832, 0.0
        %836 = vadd.xlane.f32.xlu0 %v835
        %v837 = vpop.xlane.xlu0 %836
        %v838 = vsel %vm483, %v834, 0.0
        %839 = vadd.xlane.f32.xlu0 %v838
        %v840 = vpop.xlane.xlu0 %839
        %v841 = vrcp.pop %v837
        %v842 = vrcp.pop %v840
        %v843 = vmul.f32 %v832, %v841
        %v844 = vmul.f32 %v834, %v842
        %v845 = vpack.c.bf16 %v844, %v843
        %846 = vrot.lane.b32.xlu0 %v429, 112
        %v847 = vpop.permute.xlu0 %846
        %v850 = vsel %vm483, %v845, 0
        %852 = vmatprep.subr.bf16.mxu0 0
        %853 = vmatpush1.bf16.msra.mxu0 %v847
        %854 = vmatprep.subr.bf16.mxu0 0
        %855 = vmatpush1.bf16.msra.mxu0 0
        %856 = vmatprep.subr.bf16.mxu0 0
        %857 = vmatpush1.bf16.msra.mxu0 0
        %858 = vmatprep.subr.bf16.mxu0 0
        %859 = vmatpush1.bf16.msra.mxu0 0
        %860 = vmatprep.subr.bf16.mxu0 0
        %861 = vmatpush1.bf16.msra.mxu0 0
        %862 = vmatprep.subr.bf16.mxu0 0
        %863 = vmatpush1.bf16.msra.mxu0 0
        %864 = vmatprep.subr.bf16.mxu0 0
        %865 = vmatpush1.bf16.msra.mxu0 0
        %866 = vmatprep.subr.bf16.mxu0 0
        %867 = vmatpush1.bf16.msra.mxu0 0
        %868 = vmatprep.subr.bf16.mxu0 0
        %869 = vmatpush1.bf16.msra.mxu0 0
        %870 = vmatprep.subr.bf16.mxu0 0
        %871 = vmatpush1.bf16.msra.mxu0 0
        %872 = vmatprep.subr.bf16.mxu0 0
        %873 = vmatpush1.bf16.msra.mxu0 0
        %874 = vmatprep.subr.bf16.mxu0 0
        %875 = vmatpush1.bf16.msra.mxu0 0
        %876 = vmatprep.subr.bf16.mxu0 0
        %877 = vmatpush1.bf16.msra.mxu0 0
        %878 = vmatprep.subr.bf16.mxu0 0
        %879 = vmatpush1.bf16.msra.mxu0 0
        %880 = vmatprep.subr.bf16.mxu0 0
        %881 = vmatpush1.bf16.msra.mxu0 0
        %882 = vmatprep.subr.bf16.mxu0 0
        %883 = vmatpush1.bf16.msra.mxu0 0
        %884 = vmatprep.mubr.bf16.mxu0 0
        %885 = vmatmul.mubr.bf16.gmra.mrb[0].mxu0 %v850
        %v886 = vpop.f32.mrb[0].mxu0
        %v887 = vadd.f32 0.0, %v886
        %v888 = vpop.f32.mrb[0].mxu0
        %v889 = vpop.f32.mrb[0].mxu0
        %v890 = vadd.f32 0.0, %v889
        %v891 = vpop.f32.mrb[0].mxu0
        %892 = vdwg.mxu0
        %v893 = vpack.c.bf16 %v890, %v887
        %v895 = vsel %vm435, %v893, 0
        %v898 = vsel %vm680, %v433, 0
        %900 = vmatprep.subr.bf16.mxu0 0
        %901 = vmatpush1.bf16.msra.mxu0 %v898
        %902 = vmatprep.subr.bf16.mxu0 0
        %903 = vmatpush1.bf16.msra.mxu0 0
        %904 = vmatprep.subr.bf16.mxu0 0
        %905 = vmatpush1.bf16.msra.mxu0 0
        %906 = vmatprep.subr.bf16.mxu0 0
        %907 = vmatpush1.bf16.msra.mxu0 0
        %908 = vmatprep.subr.bf16.mxu0 0
        %909 = vmatpush1.bf16.msra.mxu0 0
        %910 = vmatprep.subr.bf16.mxu0 0
        %911 = vmatpush1.bf16.msra.mxu0 0
        %912 = vmatprep.subr.bf16.mxu0 0
        %913 = vmatpush1.bf16.msra.mxu0 0
        %914 = vmatprep.subr.bf16.mxu0 0
        %915 = vmatpush1.bf16.msra.mxu0 0
        %916 = vmatprep.subr.bf16.mxu0 0
        %917 = vmatpush1.bf16.msra.mxu0 0
        %918 = vmatprep.subr.bf16.mxu0 0
        %919 = vmatpush1.bf16.msra.mxu0 0
        %920 = vmatprep.subr.bf16.mxu0 0
        %921 = vmatpush1.bf16.msra.mxu0 0
        %922 = vmatprep.subr.bf16.mxu0 0
        %923 = vmatpush1.bf16.msra.mxu0 0
        %924 = vmatprep.subr.bf16.mxu0 0
        %925 = vmatpush1.bf16.msra.mxu0 0
        %926 = vmatprep.subr.bf16.mxu0 0
        %927 = vmatpush1.bf16.msra.mxu0 0
        %928 = vmatprep.subr.bf16.mxu0 0
        %929 = vmatpush1.bf16.msra.mxu0 0
        %930 = vmatprep.subr.bf16.mxu0 0
        %931 = vmatpush1.bf16.msra.mxu0 0
        %932 = vmatprep.mubr.bf16.mxu0 0
        %933 = vmatmul.mubr.bf16.gmra.mrb[0].mxu0 %v895
        %v934 = vpop.f32.mrb[0].mxu0
        %v935 = vadd.f32 0.0, %v934
        %v936 = vpop.f32.mrb[0].mxu0
        %v937 = vpop.f32.mrb[0].mxu0
        %v938 = vadd.f32 0.0, %v937
        %v939 = vpop.f32.mrb[0].mxu0
        %940 = vdwg.mxu0
        %v941 = vadd.f32 %v766, %v935
        %v942 = vadd.f32 %v769, %v938
        %943 = vrot.lane.b32.xlu0 %v427, 104
        %v944 = vpop.permute.xlu0 %943
        %945 = vrot.lane.b32.xlu0 %v428, 104
        %v946 = vpop.permute.xlu0 %945
        %v948 = vsel %vm435, %v944, 0
        %v951 = vsel %vm435, %v946, 0
        %953 = vmatprep.subr.bf16.mxu0 0
        %954 = vmatpush1.bf16.xpose.msra.mxu0 %v951
        %955 = vmatprep.subr.bf16.mxu0 0
        %956 = vmatpush1.bf16.xpose.msra.mxu0 0
        %957 = vmatprep.subr.bf16.mxu0 0
        %958 = vmatpush1.bf16.xpose.msra.mxu0 0
        %959 = vmatprep.subr.bf16.mxu0 0
        %960 = vmatpush1.bf16.xpose.msra.mxu0 0
        %961 = vmatprep.subr.bf16.mxu0 0
        %962 = vmatpush1.bf16.xpose.msra.mxu0 0
        %963 = vmatprep.subr.bf16.mxu0 0
        %964 = vmatpush1.bf16.xpose.msra.mxu0 0
        %965 = vmatprep.subr.bf16.mxu0 0
        %966 = vmatpush1.bf16.xpose.msra.mxu0 0
        %967 = vmatprep.subr.bf16.mxu0 0
        %968 = vmatpush1.bf16.xpose.msra.mxu0 0
        %969 = vmatprep.subr.bf16.mxu0 0
        %970 = vmatpush1.bf16.xpose.msra.mxu0 0
        %971 = vmatprep.subr.bf16.mxu0 0
        %972 = vmatpush1.bf16.xpose.msra.mxu0 0
        %973 = vmatprep.subr.bf16.mxu0 0
        %974 = vmatpush1.bf16.xpose.msra.mxu0 0
        %975 = vmatprep.subr.bf16.mxu0 0
        %976 = vmatpush1.bf16.xpose.msra.mxu0 0
        %977 = vmatprep.subr.bf16.mxu0 0
        %978 = vmatpush1.bf16.xpose.msra.mxu0 0
        %979 = vmatprep.subr.bf16.mxu0 0
        %980 = vmatpush1.bf16.xpose.msra.mxu0 0
        %981 = vmatprep.subr.bf16.mxu0 0
        %982 = vmatpush1.bf16.xpose.msra.mxu0 0
        %983 = vmatprep.subr.bf16.mxu0 0
        %984 = vmatpush1.bf16.xpose.msra.mxu0 0
        %985 = vmatprep.mubr.bf16.mxu0 0
        %986 = vmatmul.mubr.bf16.gmra.mrb[0].mxu0 %v948
        %v987 = vpop.f32.mrb[0].mxu0
        %v988 = vadd.f32 0.0, %v987
        %v989 = vpop.f32.mrb[0].mxu0
        %v990 = vpop.f32.mrb[0].mxu0
        %v991 = vadd.f32 0.0, %v990
        %v992 = vpop.f32.mrb[0].mxu0
        %993 = vdwg.mxu0
        %v994 = vsel %vm483, %v988, -inf
        %995 = vmax.xlane.f32.xlu0 %v994
        %v996 = vpop.xlane.xlu0 %995
        %v997 = vsel %vm483, %v991, -inf
        %998 = vmax.xlane.f32.xlu0 %v997
        %v999 = vpop.xlane.xlu0 %998
        %v1000 = vsub.f32 %v988, %v996
        %v1001 = vsub.f32 %v991, %v999
        %v1002 = vmul.f32 %v1000, 1.442695
        %v1003 = vpow.pop %v1002
        %v1004 = vmul.f32 %v1001, 1.442695
        %v1005 = vpow.pop %v1004
        %v1006 = vsel %vm483, %v1003, 0.0
        %1007 = vadd.xlane.f32.xlu0 %v1006
        %v1008 = vpop.xlane.xlu0 %1007
        %v1009 = vsel %vm483, %v1005, 0.0
        %1010 = vadd.xlane.f32.xlu0 %v1009
        %v1011 = vpop.xlane.xlu0 %1010
        %v1012 = vrcp.pop %v1008
        %v1013 = vrcp.pop %v1011
        %v1014 = vmul.f32 %v1003, %v1012
        %v1015 = vmul.f32 %v1005, %v1013
        %v1016 = vpack.c.bf16 %v1015, %v1014
        %1017 = vrot.lane.b32.xlu0 %v429, 104
        %v1018 = vpop.permute.xlu0 %1017
        %v1021 = vsel %vm483, %v1016, 0
        %1023 = vmatprep.subr.bf16.mxu0 0
        %1024 = vmatpush1.bf16.msra.mxu0 %v1018
        %1025 = vmatprep.subr.bf16.mxu0 0
        %1026 = vmatpush1.bf16.msra.mxu0 0
        %1027 = vmatprep.subr.bf16.mxu0 0
        %1028 = vmatpush1.bf16.msra.mxu0 0
        %1029 = vmatprep.subr.bf16.mxu0 0
        %1030 = vmatpush1.bf16.msra.mxu0 0
        %1031 = vmatprep.subr.bf16.mxu0 0
        %1032 = vmatpush1.bf16.msra.mxu0 0
        %1033 = vmatprep.subr.bf16.mxu0 0
        %1034 = vmatpush1.bf16.msra.mxu0 0
        %1035 = vmatprep.subr.bf16.mxu0 0
        %1036 = vmatpush1.bf16.msra.mxu0 0
        %1037 = vmatprep.subr.bf16.mxu0 0
        %1038 = vmatpush1.bf16.msra.mxu0 0
        %1039 = vmatprep.subr.bf16.mxu0 0
        %1040 = vmatpush1.bf16.msra.mxu0 0
        %1041 = vmatprep.subr.bf16.mxu0 0
        %1042 = vmatpush1.bf16.msra.mxu0 0
        %1043 = vmatprep.subr.bf16.mxu0 0
        %1044 = vmatpush1.bf16.msra.mxu0 0
        %1045 = vmatprep.subr.bf16.mxu0 0
        %1046 = vmatpush1.bf16.msra.mxu0 0
        %1047 = vmatprep.subr.bf16.mxu0 0
        %1048 = vmatpush1.bf16.msra.mxu0 0
        %1049 = vmatprep.subr.bf16.mxu0 0
        %1050 = vmatpush1.bf16.msra.mxu0 0
        %1051 = vmatprep.subr.bf16.mxu0 0
        %1052 = vmatpush1.bf16.msra.mxu0 0
        %1053 = vmatprep.subr.bf16.mxu0 0
        %1054 = vmatpush1.bf16.msra.mxu0 0
        %1055 = vmatprep.mubr.bf16.mxu0 0
        %1056 = vmatmul.mubr.bf16.gmra.mrb[0].mxu0 %v1021
        %v1057 = vpop.f32.mrb[0].mxu0
        %v1058 = vadd.f32 0.0, %v1057
        %v1059 = vpop.f32.mrb[0].mxu0
        %v1060 = vpop.f32.mrb[0].mxu0
        %v1061 = vadd.f32 0.0, %v1060
        %v1062 = vpop.f32.mrb[0].mxu0
        %1063 = vdwg.mxu0
        %v1064 = vpack.c.bf16 %v1061, %v1058
        %v1066 = vsel %vm435, %v1064, 0
        %v1069 = vsel %vm680, %v434, 0
        %1071 = vmatprep.subr.bf16.mxu0 0
        %1072 = vmatpush1.bf16.msra.mxu0 %v1069
        %1073 = vmatprep.subr.bf16.mxu0 0
        %1074 = vmatpush1.bf16.msra.mxu0 0
        %1075 = vmatprep.subr.bf16.mxu0 0
        %1076 = vmatpush1.bf16.msra.mxu0 0
        %1077 = vmatprep.subr.bf16.mxu0 0
        %1078 = vmatpush1.bf16.msra.mxu0 0
        %1079 = vmatprep.subr.bf16.mxu0 0
        %1080 = vmatpush1.bf16.msra.mxu0 0
        %1081 = vmatprep.subr.bf16.mxu0 0
        %1082 = vmatpush1.bf16.msra.mxu0 0
        %1083 = vmatprep.subr.bf16.mxu0 0
        %1084 = vmatpush1.bf16.msra.mxu0 0
        %1085 = vmatprep.subr.bf16.mxu0 0
        %1086 = vmatpush1.bf16.msra.mxu0 0
        %1087 = vmatprep.subr.bf16.mxu0 0
        %1088 = vmatpush1.bf16.msra.mxu0 0
        %1089 = vmatprep.subr.bf16.mxu0 0
        %1090 = vmatpush1.bf16.msra.mxu0 0
        %1091 = vmatprep.subr.bf16.mxu0 0
        %1092 = vmatpush1.bf16.msra.mxu0 0
        %1093 = vmatprep.subr.bf16.mxu0 0
        %1094 = vmatpush1.bf16.msra.mxu0 0
        %1095 = vmatprep.subr.bf16.mxu0 0
        %1096 = vmatpush1.bf16.msra.mxu0 0
        %1097 = vmatprep.subr.bf16.mxu0 0
        %1098 = vmatpush1.bf16.msra.mxu0 0
        %1099 = vmatprep.subr.bf16.mxu0 0
        %1100 = vmatpush1.bf16.msra.mxu0 0
        %1101 = vmatprep.subr.bf16.mxu0 0
        %1102 = vmatpush1.bf16.msra.mxu0 0
        %1103 = vmatprep.mubr.bf16.mxu0 0
        %1104 = vmatmul.mubr.bf16.gmra.mrb[0].mxu0 %v1066
        %v1105 = vpop.f32.mrb[0].mxu0
        %v1106 = vadd.f32 0.0, %v1105
        %v1107 = vpop.f32.mrb[0].mxu0
        %v1108 = vpop.f32.mrb[0].mxu0
        %v1109 = vadd.f32 0.0, %v1108
        %v1110 = vpop.f32.mrb[0].mxu0
        %1111 = vdwg.mxu0
        %v1112 = vadd.f32 %v941, %v1106
        %v1113 = vadd.f32 %v942, %v1109
        %s1114 = scalar_lea.vmem [#allocation7], 3
        %v1115 = vld [vmem:[%s1114] sm:$0x1]
        %v1117 = vlaneseq
        %v1118 = vshrl.u32 %v1117, 7
        %v1119 = vsub.s32 0, %v1118
        %v1120 = vrot.slane %v1115, %v1119
        %v1122 = vadd.f32 %v1112, %v1120
        %v1123 = vadd.f32 %v1113, %v1120
        %v1124 = vmul.f32 %v1122, 0.5
        %v1125 = vmul.f32 %v1123, 0.5
        %v1126 = vmul.f32 %v1122, 0.70710677
        %v1127 = vmul.f32 %v1123, 0.70710677
        %vm1128 = vcmp.ge.f32.partialorder %v1126, 0.0
        %vm1129 = vcmp.ge.f32.partialorder %v1127, 0.0
        %v1130 = vsel %vm1128, 1.0, -1.0
        %v1131 = vsel %vm1129, 1.0, -1.0
        %v1132 = vand.u32 2147483647, %v1126
        %v1133 = vand.u32 2147483647, %v1127
        %v1134 = vmul.f32 %v1132, 0.3275911
        %v1135 = vmul.f32 %v1133, 0.3275911
        %v1136 = vadd.f32 %v1134, 1.0
        %v1137 = vadd.f32 %v1135, 1.0
        %v1138 = vrcp.pop %v1136
        %v1139 = vrcp.pop %v1137
        %v1140 = vmul.f32 %v1138, 1.0614054
        %v1141 = vmul.f32 %v1139, 1.0614054
        %v1142 = vadd.f32 %v1140, -1.4531521
        %v1143 = vadd.f32 %v1141, -1.4531521
        %v1144 = vmul.f32 %v1142, %v1138
        %v1145 = vmul.f32 %v1143, %v1139
        %v1146 = vadd.f32 %v1144, 1.4214138
        %v1147 = vadd.f32 %v1145, 1.4214138
        %v1148 = vmul.f32 %v1146, %v1138
        %v1149 = vmul.f32 %v1147, %v1139
        %v1150 = vadd.f32 %v1148, -0.28449672
        %v1151 = vadd.f32 %v1149, -0.28449672
        %v1152 = vmul.f32 %v1150, %v1138
        %v1153 = vmul.f32 %v1151, %v1139
        %v1154 = vadd.f32 %v1152, 0.2548296
        %v1155 = vadd.f32 %v1153, 0.2548296
        %v1156 = vmul.f32 %v1154, %v1138
        %v1157 = vmul.f32 %v1155, %v1139
        %v1158 = vsub.f32 0.0, %v1132
        %v1159 = vsub.f32 0.0, %v1133
        %v1160 = vmul.f32 %v1158, %v1132
        %v1161 = vmul.f32 %v1159, %v1133
        %v1162 = vmul.f32 %v1160, 1.442695
        %v1163 = vpow.pop %v1162
        %v1164 = vmul.f32 %v1161, 1.442695
        %v1165 = vpow.pop %v1164
        %v1166 = vmul.f32 %v1156, %v1163
        %v1167 = vmul.f32 %v1157, %v1165
        %v1168 = vsub.f32 1.0, %v1166
        %v1169 = vsub.f32 1.0, %v1167
        %v1170 = vmul.f32 %v1130, %v1168
        %v1171 = vmul.f32 %v1131, %v1169
        %v1172 = vadd.f32 %v1170, 1.0
        %v1173 = vadd.f32 %v1171, 1.0
        %v1174 = vmul.f32 %v1124, %v1172
        %v1175 = vmul.f32 %v1125, %v1173
        %v1176 = vsub.f32 %v220, %v1174
        %v1177 = vsub.f32 %v221, %v1175
        %v1178 = vpack.c.bf16 %v1177, %v1176
        %s1179 = scalar_lea.vmem [#allocation5], 64
        %v1180 = vld [vmem:[%s1179] sm:$0xf]
        %v1181 = vld [vmem:[%s1179 + $0x4] sm:$0xf]
        %v1182 = vld [vmem:[%s1179 + $0x8] sm:$0xf]
        %v1183 = vld [vmem:[%s1179 + $0xc] sm:$0xf]
        %s1184 = scalar_lea.vmem [#allocation7], 4
        %v1185 = vld [vmem:[%s1184] sm:$0x1]
        %v1187 = vlaneseq
        %v1188 = vshrl.u32 %v1187, 7
        %v1189 = vsub.s32 0, %v1188
        %v1190 = vrot.slane %v1185, %v1189
        %v1196 = vunpack.c.l.b16 %v1180
        %v1197 = vunpack.c.l.b16 %v1181
        %v1198 = vunpack.c.l.b16 %v1182
        %v1199 = vunpack.c.l.b16 %v1183
        %v1200 = vpack.c.b16 %v1197, %v1196
        %v1201 = vpack.c.b16 %v1199, %v1198
        %1204 = vmatprep.subr.bf16.mxu0 0
        %1205 = vmatpush1.bf16.msra.mxu0 %v1200
        %1206 = vmatprep.subr.bf16.mxu0 0
        %1207 = vmatpush1.bf16.msra.mxu0 %v1201
        %1208 = vmatprep.subr.bf16.mxu0 0
        %1209 = vmatpush1.bf16.msra.mxu0 0
        %1210 = vmatprep.subr.bf16.mxu0 0
        %1211 = vmatpush1.bf16.msra.mxu0 0
        %1212 = vmatprep.subr.bf16.mxu0 0
        %1213 = vmatpush1.bf16.msra.mxu0 0
        %1214 = vmatprep.subr.bf16.mxu0 0
        %1215 = vmatpush1.bf16.msra.mxu0 0
        %1216 = vmatprep.subr.bf16.mxu0 0
        %1217 = vmatpush1.bf16.msra.mxu0 0
        %1218 = vmatprep.subr.bf16.mxu0 0
        %1219 = vmatpush1.bf16.msra.mxu0 0
        %1220 = vmatprep.subr.bf16.mxu0 0
        %1221 = vmatpush1.bf16.msra.mxu0 0
        %1222 = vmatprep.subr.bf16.mxu0 0
        %1223 = vmatpush1.bf16.msra.mxu0 0
        %1224 = vmatprep.subr.bf16.mxu0 0
        %1225 = vmatpush1.bf16.msra.mxu0 0
        %1226 = vmatprep.subr.bf16.mxu0 0
        %1227 = vmatpush1.bf16.msra.mxu0 0
        %1228 = vmatprep.subr.bf16.mxu0 0
        %1229 = vmatpush1.bf16.msra.mxu0 0
        %1230 = vmatprep.subr.bf16.mxu0 0
        %1231 = vmatpush1.bf16.msra.mxu0 0
        %1232 = vmatprep.subr.bf16.mxu0 0
        %1233 = vmatpush1.bf16.msra.mxu0 0
        %1234 = vmatprep.subr.bf16.mxu0 0
        %1235 = vmatpush1.bf16.msra.mxu0 0
        %1236 = vmatprep.mubr.bf16.mxu0 0
        %1237 = vmatmul.mubr.bf16.gmra.mrb[0].mxu0 %v318
        %v1238 = vpop.f32.mrb[0].mxu0
        %v1239 = vadd.f32 %v1190, %v1238
        %v1240 = vpop.f32.mrb[0].mxu0
        %v1241 = vpop.f32.mrb[0].mxu0
        %v1242 = vadd.f32 %v1190, %v1241
        %v1243 = vpop.f32.mrb[0].mxu0
        %1244 = vdwg.mxu0
        %s1245 = scalar_lea.vmem [#allocation5], 80
        %v1246 = vld [vmem:[%s1245] sm:$0xf]
        %v1247 = vld [vmem:[%s1245 + $0x4] sm:$0xf]
        %v1248 = vld [vmem:[%s1245 + $0x8] sm:$0xf]
        %v1249 = vld [vmem:[%s1245 + $0xc] sm:$0xf]
        %s1250 = scalar_lea.vmem [#allocation7], 5
        %v1251 = vld [vmem:[%s1250] sm:$0x1]
        %v1253 = vlaneseq
        %v1254 = vshrl.u32 %v1253, 7
        %v1255 = vsub.s32 0, %v1254
        %v1256 = vrot.slane %v1251, %v1255
        %v1262 = vunpack.c.l.b16 %v1246
        %v1263 = vunpack.c.l.b16 %v1247
        %v1264 = vunpack.c.l.b16 %v1248
        %v1265 = vunpack.c.l.b16 %v1249
        %v1266 = vpack.c.b16 %v1263, %v1262
        %v1267 = vpack.c.b16 %v1265, %v1264
        %v1271 = vsel %vm247, %v1178, 0
        %1273 = vmatprep.subr.bf16.mxu0 0
        %1274 = vmatpush1.bf16.msra.mxu0 %v1266
        %1275 = vmatprep.subr.bf16.mxu0 0
        %1276 = vmatpush1.bf16.msra.mxu0 %v1267
        %1277 = vmatprep.subr.bf16.mxu0 0
        %1278 = vmatpush1.bf16.msra.mxu0 0
        %1279 = vmatprep.subr.bf16.mxu0 0
        %1280 = vmatpush1.bf16.msra.mxu0 0
        %1281 = vmatprep.subr.bf16.mxu0 0
        %1282 = vmatpush1.bf16.msra.mxu0 0
        %1283 = vmatprep.subr.bf16.mxu0 0
        %1284 = vmatpush1.bf16.msra.mxu0 0
        %1285 = vmatprep.subr.bf16.mxu0 0
        %1286 = vmatpush1.bf16.msra.mxu0 0
        %1287 = vmatprep.subr.bf16.mxu0 0
        %1288 = vmatpush1.bf16.msra.mxu0 0
        %1289 = vmatprep.subr.bf16.mxu0 0
        %1290 = vmatpush1.bf16.msra.mxu0 0
        %1291 = vmatprep.subr.bf16.mxu0 0
        %1292 = vmatpush1.bf16.msra.mxu0 0
        %1293 = vmatprep.subr.bf16.mxu0 0
        %1294 = vmatpush1.bf16.msra.mxu0 0
        %1295 = vmatprep.subr.bf16.mxu0 0
        %1296 = vmatpush1.bf16.msra.mxu0 0
        %1297 = vmatprep.subr.bf16.mxu0 0
        %1298 = vmatpush1.bf16.msra.mxu0 0
        %1299 = vmatprep.subr.bf16.mxu0 0
        %1300 = vmatpush1.bf16.msra.mxu0 0
        %1301 = vmatprep.subr.bf16.mxu0 0
        %1302 = vmatpush1.bf16.msra.mxu0 0
        %1303 = vmatprep.subr.bf16.mxu0 0
        %1304 = vmatpush1.bf16.msra.mxu0 0
        %1305 = vmatprep.mubr.bf16.mxu0 0
        %1306 = vmatmul.mubr.bf16.gmra.mrb[0].mxu0 %v1271
        %v1307 = vpop.f32.mrb[0].mxu0
        %v1308 = vadd.f32 %v1256, %v1307
        %v1309 = vpop.f32.mrb[0].mxu0
        %v1310 = vpop.f32.mrb[0].mxu0
        %v1311 = vadd.f32 %v1256, %v1310
        %v1312 = vpop.f32.mrb[0].mxu0
        %1313 = vdwg.mxu0
        %s1314 = scalar_lea.vmem [#allocation5], 96
        %v1315 = vld [vmem:[%s1314] sm:$0xf]
        %v1316 = vld [vmem:[%s1314 + $0x4] sm:$0xf]
        %v1317 = vld [vmem:[%s1314 + $0x8] sm:$0xf]
        %v1318 = vld [vmem:[%s1314 + $0xc] sm:$0xf]
        %s1319 = scalar_lea.vmem [#allocation7], 6
        %v1320 = vld [vmem:[%s1319] sm:$0x1]
        %v1322 = vlaneseq
        %v1323 = vshrl.u32 %v1322, 7
        %v1324 = vsub.s32 0, %v1323
        %v1325 = vrot.slane %v1320, %v1324
        %v1331 = vunpack.c.l.b16 %v1315
        %v1332 = vunpack.c.l.b16 %v1316
        %v1333 = vunpack.c.l.b16 %v1317
        %v1334 = vunpack.c.l.b16 %v1318
        %v1335 = vpack.c.b16 %v1332, %v1331
        %v1336 = vpack.c.b16 %v1334, %v1333
        %1339 = vmatprep.subr.bf16.mxu0 0
        %1340 = vmatpush1.bf16.msra.mxu0 %v1335
        %1341 = vmatprep.subr.bf16.mxu0 0
        %1342 = vmatpush1.bf16.msra.mxu0 %v1336
        %1343 = vmatprep.subr.bf16.mxu0 0
        %1344 = vmatpush1.bf16.msra.mxu0 0
        %1345 = vmatprep.subr.bf16.mxu0 0
        %1346 = vmatpush1.bf16.msra.mxu0 0
        %1347 = vmatprep.subr.bf16.mxu0 0
        %1348 = vmatpush1.bf16.msra.mxu0 0
        %1349 = vmatprep.subr.bf16.mxu0 0
        %1350 = vmatpush1.bf16.msra.mxu0 0
        %1351 = vmatprep.subr.bf16.mxu0 0
        %1352 = vmatpush1.bf16.msra.mxu0 0
        %1353 = vmatprep.subr.bf16.mxu0 0
        %1354 = vmatpush1.bf16.msra.mxu0 0
        %1355 = vmatprep.subr.bf16.mxu0 0
        %1356 = vmatpush1.bf16.msra.mxu0 0
        %1357 = vmatprep.subr.bf16.mxu0 0
        %1358 = vmatpush1.bf16.msra.mxu0 0
        %1359 = vmatprep.subr.bf16.mxu0 0
        %1360 = vmatpush1.bf16.msra.mxu0 0
        %1361 = vmatprep.subr.bf16.mxu0 0
        %1362 = vmatpush1.bf16.msra.mxu0 0
        %1363 = vmatprep.subr.bf16.mxu0 0
        %1364 = vmatpush1.bf16.msra.mxu0 0
        %1365 = vmatprep.subr.bf16.mxu0 0
        %1366 = vmatpush1.bf16.msra.mxu0 0
        %1367 = vmatprep.subr.bf16.mxu0 0
        %1368 = vmatpush1.bf16.msra.mxu0 0
        %1369 = vmatprep.subr.bf16.mxu0 0
        %1370 = vmatpush1.bf16.msra.mxu0 0
        %1371 = vmatprep.mubr.bf16.mxu0 0
        %1372 = vmatmul.mubr.bf16.gmra.mrb[0].mxu0 %v1271
        %v1373 = vpop.f32.mrb[0].mxu0
        %v1374 = vadd.f32 %v1325, %v1373
        %v1375 = vpop.f32.mrb[0].mxu0
        %v1376 = vpop.f32.mrb[0].mxu0
        %v1377 = vadd.f32 %v1325, %v1376
        %v1378 = vpop.f32.mrb[0].mxu0
        %1379 = vdwg.mxu0
        %v1380 = vpack.c.bf16 %v1242, %v1239
        %v1381 = vpack.c.bf16 %v1311, %v1308
        %v1382 = vpack.c.bf16 %v1377, %v1374
        %s1383 = scalar_lea.vmem [#allocation5], 112
        %v1384 = vld [vmem:[%s1383] sm:$0xf]
        %v1385 = vld [vmem:[%s1383 + $0x4] sm:$0xf]
        %v1386 = vld [vmem:[%s1383 + $0x8] sm:$0xf]
        %v1387 = vld [vmem:[%s1383 + $0xc] sm:$0xf]
        %v1389 = vsel %vm435, %v1380, 0
        %v1392 = vsel %vm435, %v1381, 0
        %1394 = vmatprep.subr.bf16.mxu0 0
        %1395 = vmatpush1.bf16.xpose.msra.mxu0 %v1392
        %1396 = vmatprep.subr.bf16.mxu0 0
        %1397 = vmatpush1.bf16.xpose.msra.mxu0 0
        %1398 = vmatprep.subr.bf16.mxu0 0
        %1399 = vmatpush1.bf16.xpose.msra.mxu0 0
        %1400 = vmatprep.subr.bf16.mxu0 0
        %1401 = vmatpush1.bf16.xpose.msra.mxu0 0
        %1402 = vmatprep.subr.bf16.mxu0 0
        %1403 = vmatpush1.bf16.xpose.msra.mxu0 0
        %1404 = vmatprep.subr.bf16.mxu0 0
        %1405 = vmatpush1.bf16.xpose.msra.mxu0 0
        %1406 = vmatprep.subr.bf16.mxu0 0
        %1407 = vmatpush1.bf16.xpose.msra.mxu0 0
        %1408 = vmatprep.subr.bf16.mxu0 0
        %1409 = vmatpush1.bf16.xpose.msra.mxu0 0
        %1410 = vmatprep.subr.bf16.mxu0 0
        %1411 = vmatpush1.bf16.xpose.msra.mxu0 0
        %1412 = vmatprep.subr.bf16.mxu0 0
        %1413 = vmatpush1.bf16.xpose.msra.mxu0 0
        %1414 = vmatprep.subr.bf16.mxu0 0
        %1415 = vmatpush1.bf16.xpose.msra.mxu0 0
        %1416 = vmatprep.subr.bf16.mxu0 0
        %1417 = vmatpush1.bf16.xpose.msra.mxu0 0
        %1418 = vmatprep.subr.bf16.mxu0 0
        %1419 = vmatpush1.bf16.xpose.msra.mxu0 0
        %1420 = vmatprep.subr.bf16.mxu0 0
        %1421 = vmatpush1.bf16.xpose.msra.mxu0 0
        %1422 = vmatprep.subr.bf16.mxu0 0
        %1423 = vmatpush1.bf16.xpose.msra.mxu0 0
        %1424 = vmatprep.subr.bf16.mxu0 0
        %1425 = vmatpush1.bf16.xpose.msra.mxu0 0
        %1426 = vmatprep.mubr.bf16.mxu0 0
        %1427 = vmatmul.mubr.bf16.gmra.mrb[0].mxu0 %v1389
        %v1428 = vpop.f32.mrb[0].mxu0
        %v1429 = vadd.f32 0.0, %v1428
        %v1430 = vpop.f32.mrb[0].mxu0
        %v1431 = vpop.f32.mrb[0].mxu0
        %v1432 = vadd.f32 0.0, %v1431
        %v1433 = vpop.f32.mrb[0].mxu0
        %1434 = vdwg.mxu0
        %v1435 = vsel %vm483, %v1429, -inf
        %1436 = vmax.xlane.f32.xlu0 %v1435
        %v1437 = vpop.xlane.xlu0 %1436
        %v1438 = vsel %vm483, %v1432, -inf
        %1439 = vmax.xlane.f32.xlu0 %v1438
        %v1440 = vpop.xlane.xlu0 %1439
        %v1441 = vsub.f32 %v1429, %v1437
        %v1442 = vsub.f32 %v1432, %v1440
        %v1443 = vmul.f32 %v1441, 1.442695
        %v1444 = vpow.pop %v1443
        %v1445 = vmul.f32 %v1442, 1.442695
        %v1446 = vpow.pop %v1445
        %v1447 = vsel %vm483, %v1444, 0.0
        %1448 = vadd.xlane.f32.xlu0 %v1447
        %v1449 = vpop.xlane.xlu0 %1448
        %v1450 = vsel %vm483, %v1446, 0.0
        %1451 = vadd.xlane.f32.xlu0 %v1450
        %v1452 = vpop.xlane.xlu0 %1451
        %v1453 = vrcp.pop %v1449
        %v1454 = vrcp.pop %v1452
        %v1455 = vmul.f32 %v1444, %v1453
        %v1456 = vmul.f32 %v1446, %v1454
        %v1457 = vpack.c.bf16 %v1456, %v1455
        %v1459 = vsel %vm483, %v1457, 0
        %1461 = vmatprep.subr.bf16.mxu0 0
        %1462 = vmatpush1.bf16.msra.mxu0 %v1382
        %1463 = vmatprep.subr.bf16.mxu0 0
        %1464 = vmatpush1.bf16.msra.mxu0 0
        %1465 = vmatprep.subr.bf16.mxu0 0
        %1466 = vmatpush1.bf16.msra.mxu0 0
        %1467 = vmatprep.subr.bf16.mxu0 0
        %1468 = vmatpush1.bf16.msra.mxu0 0
        %1469 = vmatprep.subr.bf16.mxu0 0
        %1470 = vmatpush1.bf16.msra.mxu0 0
        %1471 = vmatprep.subr.bf16.mxu0 0
        %1472 = vmatpush1.bf16.msra.mxu0 0
        %1473 = vmatprep.subr.bf16.mxu0 0
        %1474 = vmatpush1.bf16.msra.mxu0 0
        %1475 = vmatprep.subr.bf16.mxu0 0
        %1476 = vmatpush1.bf16.msra.mxu0 0
        %1477 = vmatprep.subr.bf16.mxu0 0
        %1478 = vmatpush1.bf16.msra.mxu0 0
        %1479 = vmatprep.subr.bf16.mxu0 0
        %1480 = vmatpush1.bf16.msra.mxu0 0
        %1481 = vmatprep.subr.bf16.mxu0 0
        %1482 = vmatpush1.bf16.msra.mxu0 0
        %1483 = vmatprep.subr.bf16.mxu0 0
        %1484 = vmatpush1.bf16.msra.mxu0 0
        %1485 = vmatprep.subr.bf16.mxu0 0
        %1486 = vmatpush1.bf16.msra.mxu0 0
        %1487 = vmatprep.subr.bf16.mxu0 0
        %1488 = vmatpush1.bf16.msra.mxu0 0
        %1489 = vmatprep.subr.bf16.mxu0 0
        %1490 = vmatpush1.bf16.msra.mxu0 0
        %1491 = vmatprep.subr.bf16.mxu0 0
        %1492 = vmatpush1.bf16.msra.mxu0 0
        %1493 = vmatprep.mubr.bf16.mxu0 0
        %1494 = vmatmul.mubr.bf16.gmra.mrb[0].mxu0 %v1459
        %v1495 = vpop.f32.mrb[0].mxu0
        %v1496 = vadd.f32 0.0, %v1495
        %v1497 = vpop.f32.mrb[0].mxu0
        %v1498 = vpop.f32.mrb[0].mxu0
        %v1499 = vadd.f32 0.0, %v1498
        %v1500 = vpop.f32.mrb[0].mxu0
        %1501 = vdwg.mxu0
        %v1502 = vpack.c.bf16 %v1499, %v1496
        %1504 = vrot.lane.b32.xlu0 %v1380, 120
        %v1505 = vpop.permute.xlu0 %1504
        %1507 = vrot.lane.b32.xlu0 %v1381, 120
        %v1508 = vpop.permute.xlu0 %1507
        %v1510 = vsel %vm435, %v1505, 0
        %v1513 = vsel %vm435, %v1508, 0
        %1515 = vmatprep.subr.bf16.mxu0 0
        %1516 = vmatpush1.bf16.xpose.msra.mxu0 %v1513
        %1517 = vmatprep.subr.bf16.mxu0 0
        %1518 = vmatpush1.bf16.xpose.msra.mxu0 0
        %1519 = vmatprep.subr.bf16.mxu0 0
        %1520 = vmatpush1.bf16.xpose.msra.mxu0 0
        %1521 = vmatprep.subr.bf16.mxu0 0
        %1522 = vmatpush1.bf16.xpose.msra.mxu0 0
        %1523 = vmatprep.subr.bf16.mxu0 0
        %1524 = vmatpush1.bf16.xpose.msra.mxu0 0
        %1525 = vmatprep.subr.bf16.mxu0 0
        %1526 = vmatpush1.bf16.xpose.msra.mxu0 0
        %1527 = vmatprep.subr.bf16.mxu0 0
        %1528 = vmatpush1.bf16.xpose.msra.mxu0 0
        %1529 = vmatprep.subr.bf16.mxu0 0
        %1530 = vmatpush1.bf16.xpose.msra.mxu0 0
        %1531 = vmatprep.subr.bf16.mxu0 0
        %1532 = vmatpush1.bf16.xpose.msra.mxu0 0
        %1533 = vmatprep.subr.bf16.mxu0 0
        %1534 = vmatpush1.bf16.xpose.msra.mxu0 0
        %1535 = vmatprep.subr.bf16.mxu0 0
        %1536 = vmatpush1.bf16.xpose.msra.mxu0 0
        %1537 = vmatprep.subr.bf16.mxu0 0
        %1538 = vmatpush1.bf16.xpose.msra.mxu0 0
        %1539 = vmatprep.subr.bf16.mxu0 0
        %1540 = vmatpush1.bf16.xpose.msra.mxu0 0
        %1541 = vmatprep.subr.bf16.mxu0 0
        %1542 = vmatpush1.bf16.xpose.msra.mxu0 0
        %1543 = vmatprep.subr.bf16.mxu0 0
        %1544 = vmatpush1.bf16.xpose.msra.mxu0 0
        %1545 = vmatprep.subr.bf16.mxu0 0
        %1546 = vmatpush1.bf16.xpose.msra.mxu0 0
        %1547 = vmatprep.mubr.bf16.mxu0 0
        %1548 = vmatmul.mubr.bf16.gmra.mrb[0].mxu0 %v1510
        %v1549 = vpop.f32.mrb[0].mxu0
        %v1550 = vadd.f32 0.0, %v1549
        %v1551 = vpop.f32.mrb[0].mxu0
        %v1552 = vpop.f32.mrb[0].mxu0
        %v1553 = vadd.f32 0.0, %v1552
        %v1554 = vpop.f32.mrb[0].mxu0
        %1555 = vdwg.mxu0
        %v1556 = vsel %vm483, %v1550, -inf
        %1557 = vmax.xlane.f32.xlu0 %v1556
        %v1558 = vpop.xlane.xlu0 %1557
        %v1559 = vsel %vm483, %v1553, -inf
        %1560 = vmax.xlane.f32.xlu0 %v1559
        %v1561 = vpop.xlane.xlu0 %1560
        %v1562 = vsub.f32 %v1550, %v1558
        %v1563 = vsub.f32 %v1553, %v1561
        %v1564 = vmul.f32 %v1562, 1.442695
        %v1565 = vpow.pop %v1564
        %v1566 = vmul.f32 %v1563, 1.442695
        %v1567 = vpow.pop %v1566
        %v1568 = vsel %vm483, %v1565, 0.0
        %1569 = vadd.xlane.f32.xlu0 %v1568
        %v1570 = vpop.xlane.xlu0 %1569
        %v1571 = vsel %vm483, %v1567, 0.0
        %1572 = vadd.xlane.f32.xlu0 %v1571
        %v1573 = vpop.xlane.xlu0 %1572
        %v1574 = vrcp.pop %v1570
        %v1575 = vrcp.pop %v1573
        %v1576 = vmul.f32 %v1565, %v1574
        %v1577 = vmul.f32 %v1567, %v1575
        %v1578 = vpack.c.bf16 %v1577, %v1576
        %1580 = vrot.lane.b32.xlu0 %v1382, 120
        %v1581 = vpop.permute.xlu0 %1580
        %v1584 = vsel %vm483, %v1578, 0
        %1586 = vmatprep.subr.bf16.mxu0 0
        %1587 = vmatpush1.bf16.msra.mxu0 %v1581
        %1588 = vmatprep.subr.bf16.mxu0 0
        %1589 = vmatpush1.bf16.msra.mxu0 0
        %1590 = vmatprep.subr.bf16.mxu0 0
        %1591 = vmatpush1.bf16.msra.mxu0 0
        %1592 = vmatprep.subr.bf16.mxu0 0
        %1593 = vmatpush1.bf16.msra.mxu0 0
        %1594 = vmatprep.subr.bf16.mxu0 0
        %1595 = vmatpush1.bf16.msra.mxu0 0
        %1596 = vmatprep.subr.bf16.mxu0 0
        %1597 = vmatpush1.bf16.msra.mxu0 0
        %1598 = vmatprep.subr.bf16.mxu0 0
        %1599 = vmatpush1.bf16.msra.mxu0 0
        %1600 = vmatprep.subr.bf16.mxu0 0
        %1601 = vmatpush1.bf16.msra.mxu0 0
        %1602 = vmatprep.subr.bf16.mxu0 0
        %1603 = vmatpush1.bf16.msra.mxu0 0
        %1604 = vmatprep.subr.bf16.mxu0 0
        %1605 = vmatpush1.bf16.msra.mxu0 0
        %1606 = vmatprep.subr.bf16.mxu0 0
        %1607 = vmatpush1.bf16.msra.mxu0 0
        %1608 = vmatprep.subr.bf16.mxu0 0
        %1609 = vmatpush1.bf16.msra.mxu0 0
        %1610 = vmatprep.subr.bf16.mxu0 0
        %1611 = vmatpush1.bf16.msra.mxu0 0
        %1612 = vmatprep.subr.bf16.mxu0 0
        %1613 = vmatpush1.bf16.msra.mxu0 0
        %1614 = vmatprep.subr.bf16.mxu0 0
        %1615 = vmatpush1.bf16.msra.mxu0 0
        %1616 = vmatprep.subr.bf16.mxu0 0
        %1617 = vmatpush1.bf16.msra.mxu0 0
        %1618 = vmatprep.mubr.bf16.mxu0 0
        %1619 = vmatmul.mubr.bf16.gmra.mrb[0].mxu0 %v1584
        %v1620 = vpop.f32.mrb[0].mxu0
        %v1621 = vadd.f32 0.0, %v1620
        %v1622 = vpop.f32.mrb[0].mxu0
        %v1623 = vpop.f32.mrb[0].mxu0
        %v1624 = vadd.f32 0.0, %v1623
        %v1625 = vpop.f32.mrb[0].mxu0
        %1626 = vdwg.mxu0
        %v1627 = vpack.c.bf16 %v1624, %v1621
        %v1629 = vsel %vm435, %v1627, 0
        %v1632 = vsel %vm680, %v1385, 0
        %1634 = vmatprep.subr.bf16.mxu0 0
        %1635 = vmatpush1.bf16.msra.mxu0 %v1632
        %1636 = vmatprep.subr.bf16.mxu0 0
        %1637 = vmatpush1.bf16.msra.mxu0 0
        %1638 = vmatprep.subr.bf16.mxu0 0
        %1639 = vmatpush1.bf16.msra.mxu0 0
        %1640 = vmatprep.subr.bf16.mxu0 0
        %1641 = vmatpush1.bf16.msra.mxu0 0
        %1642 = vmatprep.subr.bf16.mxu0 0
        %1643 = vmatpush1.bf16.msra.mxu0 0
        %1644 = vmatprep.subr.bf16.mxu0 0
        %1645 = vmatpush1.bf16.msra.mxu0 0
        %1646 = vmatprep.subr.bf16.mxu0 0
        %1647 = vmatpush1.bf16.msra.mxu0 0
        %1648 = vmatprep.subr.bf16.mxu0 0
        %1649 = vmatpush1.bf16.msra.mxu0 0
        %1650 = vmatprep.subr.bf16.mxu0 0
        %1651 = vmatpush1.bf16.msra.mxu0 0
        %1652 = vmatprep.subr.bf16.mxu0 0
        %1653 = vmatpush1.bf16.msra.mxu0 0
        %1654 = vmatprep.subr.bf16.mxu0 0
        %1655 = vmatpush1.bf16.msra.mxu0 0
        %1656 = vmatprep.subr.bf16.mxu0 0
        %1657 = vmatpush1.bf16.msra.mxu0 0
        %1658 = vmatprep.subr.bf16.mxu0 0
        %1659 = vmatpush1.bf16.msra.mxu0 0
        %1660 = vmatprep.subr.bf16.mxu0 0
        %1661 = vmatpush1.bf16.msra.mxu0 0
        %1662 = vmatprep.subr.bf16.mxu0 0
        %1663 = vmatpush1.bf16.msra.mxu0 0
        %1664 = vmatprep.subr.bf16.mxu0 0
        %1665 = vmatpush1.bf16.msra.mxu0 0
        %1666 = vmatprep.mubr.bf16.mxu0 0
        %1667 = vmatmul.mubr.bf16.gmra.mrb[0].mxu0 %v1629
        %v1668 = vpop.f32.mrb[0].mxu0
        %v1669 = vadd.f32 0.0, %v1668
        %v1670 = vpop.f32.mrb[0].mxu0
        %v1671 = vpop.f32.mrb[0].mxu0
        %v1672 = vadd.f32 0.0, %v1671
        %v1673 = vpop.f32.mrb[0].mxu0
        %1674 = vdwg.mxu0
        %v1676 = vsel %vm435, %v1502, 0
        %v1679 = vsel %vm680, %v1384, 0
        %1681 = vmatprep.subr.bf16.mxu0 0
        %1682 = vmatpush1.bf16.msra.mxu0 %v1679
        %1683 = vmatprep.subr.bf16.mxu0 0
        %1684 = vmatpush1.bf16.msra.mxu0 0
        %1685 = vmatprep.subr.bf16.mxu0 0
        %1686 = vmatpush1.bf16.msra.mxu0 0
        %1687 = vmatprep.subr.bf16.mxu0 0
        %1688 = vmatpush1.bf16.msra.mxu0 0
        %1689 = vmatprep.subr.bf16.mxu0 0
        %1690 = vmatpush1.bf16.msra.mxu0 0
        %1691 = vmatprep.subr.bf16.mxu0 0
        %1692 = vmatpush1.bf16.msra.mxu0 0
        %1693 = vmatprep.subr.bf16.mxu0 0
        %1694 = vmatpush1.bf16.msra.mxu0 0
        %1695 = vmatprep.subr.bf16.mxu0 0
        %1696 = vmatpush1.bf16.msra.mxu0 0
        %1697 = vmatprep.subr.bf16.mxu0 0
        %1698 = vmatpush1.bf16.msra.mxu0 0
        %1699 = vmatprep.subr.bf16.mxu0 0
        %1700 = vmatpush1.bf16.msra.mxu0 0
        %1701 = vmatprep.subr.bf16.mxu0 0
        %1702 = vmatpush1.bf16.msra.mxu0 0
        %1703 = vmatprep.subr.bf16.mxu0 0
        %1704 = vmatpush1.bf16.msra.mxu0 0
        %1705 = vmatprep.subr.bf16.mxu0 0
        %1706 = vmatpush1.bf16.msra.mxu0 0
        %1707 = vmatprep.subr.bf16.mxu0 0
        %1708 = vmatpush1.bf16.msra.mxu0 0
        %1709 = vmatprep.subr.bf16.mxu0 0
        %1710 = vmatpush1.bf16.msra.mxu0 0
        %1711 = vmatprep.subr.bf16.mxu0 0
        %1712 = vmatpush1.bf16.msra.mxu0 0
        %1713 = vmatprep.mubr.bf16.mxu0 0
        %1714 = vmatmul.mubr.bf16.gmra.mrb[0].mxu0 %v1676
        %v1715 = vpop.f32.mrb[0].mxu0
        %v1716 = vadd.f32 %v1669, %v1715
        %v1717 = vpop.f32.mrb[0].mxu0
        %v1718 = vpop.f32.mrb[0].mxu0
        %v1719 = vadd.f32 %v1672, %v1718
        %v1720 = vpop.f32.mrb[0].mxu0
        %1721 = vdwg.mxu0
        %1722 = vrot.lane.b32.xlu0 %v1380, 112
        %v1723 = vpop.permute.xlu0 %1722
        %1724 = vrot.lane.b32.xlu0 %v1381, 112
        %v1725 = vpop.permute.xlu0 %1724
        %v1727 = vsel %vm435, %v1723, 0
        %v1730 = vsel %vm435, %v1725, 0
        %1732 = vmatprep.subr.bf16.mxu0 0
        %1733 = vmatpush1.bf16.xpose.msra.mxu0 %v1730
        %1734 = vmatprep.subr.bf16.mxu0 0
        %1735 = vmatpush1.bf16.xpose.msra.mxu0 0
        %1736 = vmatprep.subr.bf16.mxu0 0
        %1737 = vmatpush1.bf16.xpose.msra.mxu0 0
        %1738 = vmatprep.subr.bf16.mxu0 0
        %1739 = vmatpush1.bf16.xpose.msra.mxu0 0
        %1740 = vmatprep.subr.bf16.mxu0 0
        %1741 = vmatpush1.bf16.xpose.msra.mxu0 0
        %1742 = vmatprep.subr.bf16.mxu0 0
        %1743 = vmatpush1.bf16.xpose.msra.mxu0 0
        %1744 = vmatprep.subr.bf16.mxu0 0
        %1745 = vmatpush1.bf16.xpose.msra.mxu0 0
        %1746 = vmatprep.subr.bf16.mxu0 0
        %1747 = vmatpush1.bf16.xpose.msra.mxu0 0
        %1748 = vmatprep.subr.bf16.mxu0 0
        %1749 = vmatpush1.bf16.xpose.msra.mxu0 0
        %1750 = vmatprep.subr.bf16.mxu0 0
        %1751 = vmatpush1.bf16.xpose.msra.mxu0 0
        %1752 = vmatprep.subr.bf16.mxu0 0
        %1753 = vmatpush1.bf16.xpose.msra.mxu0 0
        %1754 = vmatprep.subr.bf16.mxu0 0
        %1755 = vmatpush1.bf16.xpose.msra.mxu0 0
        %1756 = vmatprep.subr.bf16.mxu0 0
        %1757 = vmatpush1.bf16.xpose.msra.mxu0 0
        %1758 = vmatprep.subr.bf16.mxu0 0
        %1759 = vmatpush1.bf16.xpose.msra.mxu0 0
        %1760 = vmatprep.subr.bf16.mxu0 0
        %1761 = vmatpush1.bf16.xpose.msra.mxu0 0
        %1762 = vmatprep.subr.bf16.mxu0 0
        %1763 = vmatpush1.bf16.xpose.msra.mxu0 0
        %1764 = vmatprep.mubr.bf16.mxu0 0
        %1765 = vmatmul.mubr.bf16.gmra.mrb[0].mxu0 %v1727
        %v1766 = vpop.f32.mrb[0].mxu0
        %v1767 = vadd.f32 0.0, %v1766
        %v1768 = vpop.f32.mrb[0].mxu0
        %v1769 = vpop.f32.mrb[0].mxu0
        %v1770 = vadd.f32 0.0, %v1769
        %v1771 = vpop.f32.mrb[0].mxu0
        %1772 = vdwg.mxu0
        %v1773 = vsel %vm483, %v1767, -inf
        %1774 = vmax.xlane.f32.xlu0 %v1773
        %v1775 = vpop.xlane.xlu0 %1774
        %v1776 = vsel %vm483, %v1770, -inf
        %1777 = vmax.xlane.f32.xlu0 %v1776
        %v1778 = vpop.xlane.xlu0 %1777
        %v1779 = vsub.f32 %v1767, %v1775
        %v1780 = vsub.f32 %v1770, %v1778
        %v1781 = vmul.f32 %v1779, 1.442695
        %v1782 = vpow.pop %v1781
        %v1783 = vmul.f32 %v1780, 1.442695
        %v1784 = vpow.pop %v1783
        %v1785 = vsel %vm483, %v1782, 0.0
        %1786 = vadd.xlane.f32.xlu0 %v1785
        %v1787 = vpop.xlane.xlu0 %1786
        %v1788 = vsel %vm483, %v1784, 0.0
        %1789 = vadd.xlane.f32.xlu0 %v1788
        %v1790 = vpop.xlane.xlu0 %1789
        %v1791 = vrcp.pop %v1787
        %v1792 = vrcp.pop %v1790
        %v1793 = vmul.f32 %v1782, %v1791
        %v1794 = vmul.f32 %v1784, %v1792
        %v1795 = vpack.c.bf16 %v1794, %v1793
        %1796 = vrot.lane.b32.xlu0 %v1382, 112
        %v1797 = vpop.permute.xlu0 %1796
        %v1800 = vsel %vm483, %v1795, 0
        %1802 = vmatprep.subr.bf16.mxu0 0
        %1803 = vmatpush1.bf16.msra.mxu0 %v1797
        %1804 = vmatprep.subr.bf16.mxu0 0
        %1805 = vmatpush1.bf16.msra.mxu0 0
        %1806 = vmatprep.subr.bf16.mxu0 0
        %1807 = vmatpush1.bf16.msra.mxu0 0
        %1808 = vmatprep.subr.bf16.mxu0 0
        %1809 = vmatpush1.bf16.msra.mxu0 0
        %1810 = vmatprep.subr.bf16.mxu0 0
        %1811 = vmatpush1.bf16.msra.mxu0 0
        %1812 = vmatprep.subr.bf16.mxu0 0
        %1813 = vmatpush1.bf16.msra.mxu0 0
        %1814 = vmatprep.subr.bf16.mxu0 0
        %1815 = vmatpush1.bf16.msra.mxu0 0
        %1816 = vmatprep.subr.bf16.mxu0 0
        %1817 = vmatpush1.bf16.msra.mxu0 0
        %1818 = vmatprep.subr.bf16.mxu0 0
        %1819 = vmatpush1.bf16.msra.mxu0 0
        %1820 = vmatprep.subr.bf16.mxu0 0
        %1821 = vmatpush1.bf16.msra.mxu0 0
        %1822 = vmatprep.subr.bf16.mxu0 0
        %1823 = vmatpush1.bf16.msra.mxu0 0
        %1824 = vmatprep.subr.bf16.mxu0 0
        %1825 = vmatpush1.bf16.msra.mxu0 0
        %1826 = vmatprep.subr.bf16.mxu0 0
        %1827 = vmatpush1.bf16.msra.mxu0 0
        %1828 = vmatprep.subr.bf16.mxu0 0
        %1829 = vmatpush1.bf16.msra.mxu0 0
        %1830 = vmatprep.subr.bf16.mxu0 0
        %1831 = vmatpush1.bf16.msra.mxu0 0
        %1832 = vmatprep.subr.bf16.mxu0 0
        %1833 = vmatpush1.bf16.msra.mxu0 0
        %1834 = vmatprep.mubr.bf16.mxu0 0
        %1835 = vmatmul.mubr.bf16.gmra.mrb[0].mxu0 %v1800
        %v1836 = vpop.f32.mrb[0].mxu0
        %v1837 = vadd.f32 0.0, %v1836
        %v1838 = vpop.f32.mrb[0].mxu0
        %v1839 = vpop.f32.mrb[0].mxu0
        %v1840 = vadd.f32 0.0, %v1839
        %v1841 = vpop.f32.mrb[0].mxu0
        %1842 = vdwg.mxu0
        %v1843 = vpack.c.bf16 %v1840, %v1837
        %v1845 = vsel %vm435, %v1843, 0
        %v1848 = vsel %vm680, %v1386, 0
        %1850 = vmatprep.subr.bf16.mxu0 0
        %1851 = vmatpush1.bf16.msra.mxu0 %v1848
        %1852 = vmatprep.subr.bf16.mxu0 0
        %1853 = vmatpush1.bf16.msra.mxu0 0
        %1854 = vmatprep.subr.bf16.mxu0 0
        %1855 = vmatpush1.bf16.msra.mxu0 0
        %1856 = vmatprep.subr.bf16.mxu0 0
        %1857 = vmatpush1.bf16.msra.mxu0 0
        %1858 = vmatprep.subr.bf16.mxu0 0
        %1859 = vmatpush1.bf16.msra.mxu0 0
        %1860 = vmatprep.subr.bf16.mxu0 0
        %1861 = vmatpush1.bf16.msra.mxu0 0
        %1862 = vmatprep.subr.bf16.mxu0 0
        %1863 = vmatpush1.bf16.msra.mxu0 0
        %1864 = vmatprep.subr.bf16.mxu0 0
        %1865 = vmatpush1.bf16.msra.mxu0 0
        %1866 = vmatprep.subr.bf16.mxu0 0
        %1867 = vmatpush1.bf16.msra.mxu0 0
        %1868 = vmatprep.subr.bf16.mxu0 0
        %1869 = vmatpush1.bf16.msra.mxu0 0
        %1870 = vmatprep.subr.bf16.mxu0 0
        %1871 = vmatpush1.bf16.msra.mxu0 0
        %1872 = vmatprep.subr.bf16.mxu0 0
        %1873 = vmatpush1.bf16.msra.mxu0 0
        %1874 = vmatprep.subr.bf16.mxu0 0
        %1875 = vmatpush1.bf16.msra.mxu0 0
        %1876 = vmatprep.subr.bf16.mxu0 0
        %1877 = vmatpush1.bf16.msra.mxu0 0
        %1878 = vmatprep.subr.bf16.mxu0 0
        %1879 = vmatpush1.bf16.msra.mxu0 0
        %1880 = vmatprep.subr.bf16.mxu0 0
        %1881 = vmatpush1.bf16.msra.mxu0 0
        %1882 = vmatprep.mubr.bf16.mxu0 0
        %1883 = vmatmul.mubr.bf16.gmra.mrb[0].mxu0 %v1845
        %v1884 = vpop.f32.mrb[0].mxu0
        %v1885 = vadd.f32 0.0, %v1884
        %v1886 = vpop.f32.mrb[0].mxu0
        %v1887 = vpop.f32.mrb[0].mxu0
        %v1888 = vadd.f32 0.0, %v1887
        %v1889 = vpop.f32.mrb[0].mxu0
        %1890 = vdwg.mxu0
        %v1891 = vadd.f32 %v1716, %v1885
        %v1892 = vadd.f32 %v1719, %v1888
        %1893 = vrot.lane.b32.xlu0 %v1380, 104
        %v1894 = vpop.permute.xlu0 %1893
        %1895 = vrot.lane.b32.xlu0 %v1381, 104
        %v1896 = vpop.permute.xlu0 %1895
        %v1898 = vsel %vm435, %v1894, 0
        %v1901 = vsel %vm435, %v1896, 0
        %1903 = vmatprep.subr.bf16.mxu0 0
        %1904 = vmatpush1.bf16.xpose.msra.mxu0 %v1901
        %1905 = vmatprep.subr.bf16.mxu0 0
        %1906 = vmatpush1.bf16.xpose.msra.mxu0 0
        %1907 = vmatprep.subr.bf16.mxu0 0
        %1908 = vmatpush1.bf16.xpose.msra.mxu0 0
        %1909 = vmatprep.subr.bf16.mxu0 0
        %1910 = vmatpush1.bf16.xpose.msra.mxu0 0
        %1911 = vmatprep.subr.bf16.mxu0 0
        %1912 = vmatpush1.bf16.xpose.msra.mxu0 0
        %1913 = vmatprep.subr.bf16.mxu0 0
        %1914 = vmatpush1.bf16.xpose.msra.mxu0 0
        %1915 = vmatprep.subr.bf16.mxu0 0
        %1916 = vmatpush1.bf16.xpose.msra.mxu0 0
        %1917 = vmatprep.subr.bf16.mxu0 0
        %1918 = vmatpush1.bf16.xpose.msra.mxu0 0
        %1919 = vmatprep.subr.bf16.mxu0 0
        %1920 = vmatpush1.bf16.xpose.msra.mxu0 0
        %1921 = vmatprep.subr.bf16.mxu0 0
        %1922 = vmatpush1.bf16.xpose.msra.mxu0 0
        %1923 = vmatprep.subr.bf16.mxu0 0
        %1924 = vmatpush1.bf16.xpose.msra.mxu0 0
        %1925 = vmatprep.subr.bf16.mxu0 0
        %1926 = vmatpush1.bf16.xpose.msra.mxu0 0
        %1927 = vmatprep.subr.bf16.mxu0 0
        %1928 = vmatpush1.bf16.xpose.msra.mxu0 0
        %1929 = vmatprep.subr.bf16.mxu0 0
        %1930 = vmatpush1.bf16.xpose.msra.mxu0 0
        %1931 = vmatprep.subr.bf16.mxu0 0
        %1932 = vmatpush1.bf16.xpose.msra.mxu0 0
        %1933 = vmatprep.subr.bf16.mxu0 0
        %1934 = vmatpush1.bf16.xpose.msra.mxu0 0
        %1935 = vmatprep.mubr.bf16.mxu0 0
        %1936 = vmatmul.mubr.bf16.gmra.mrb[0].mxu0 %v1898
        %v1937 = vpop.f32.mrb[0].mxu0
        %v1938 = vadd.f32 0.0, %v1937
        %v1939 = vpop.f32.mrb[0].mxu0
        %v1940 = vpop.f32.mrb[0].mxu0
        %v1941 = vadd.f32 0.0, %v1940
        %v1942 = vpop.f32.mrb[0].mxu0
        %1943 = vdwg.mxu0
        %v1944 = vsel %vm483, %v1938, -inf
        %1945 = vmax.xlane.f32.xlu0 %v1944
        %v1946 = vpop.xlane.xlu0 %1945
        %v1947 = vsel %vm483, %v1941, -inf
        %1948 = vmax.xlane.f32.xlu0 %v1947
        %v1949 = vpop.xlane.xlu0 %1948
        %v1950 = vsub.f32 %v1938, %v1946
        %v1951 = vsub.f32 %v1941, %v1949
        %v1952 = vmul.f32 %v1950, 1.442695
        %v1953 = vpow.pop %v1952
        %v1954 = vmul.f32 %v1951, 1.442695
        %v1955 = vpow.pop %v1954
        %v1956 = vsel %vm483, %v1953, 0.0
        %1957 = vadd.xlane.f32.xlu0 %v1956
        %v1958 = vpop.xlane.xlu0 %1957
        %v1959 = vsel %vm483, %v1955, 0.0
        %1960 = vadd.xlane.f32.xlu0 %v1959
        %v1961 = vpop.xlane.xlu0 %1960
        %v1962 = vrcp.pop %v1958
        %v1963 = vrcp.pop %v1961
        %v1964 = vmul.f32 %v1953, %v1962
        %v1965 = vmul.f32 %v1955, %v1963
        %v1966 = vpack.c.bf16 %v1965, %v1964
        %1967 = vrot.lane.b32.xlu0 %v1382, 104
        %v1968 = vpop.permute.xlu0 %1967
        %v1971 = vsel %vm483, %v1966, 0
        %1973 = vmatprep.subr.bf16.mxu0 0
        %1974 = vmatpush1.bf16.msra.mxu0 %v1968
        %1975 = vmatprep.subr.bf16.mxu0 0
        %1976 = vmatpush1.bf16.msra.mxu0 0
        %1977 = vmatprep.subr.bf16.mxu0 0
        %1978 = vmatpush1.bf16.msra.mxu0 0
        %1979 = vmatprep.subr.bf16.mxu0 0
        %1980 = vmatpush1.bf16.msra.mxu0 0
        %1981 = vmatprep.subr.bf16.mxu0 0
        %1982 = vmatpush1.bf16.msra.mxu0 0
        %1983 = vmatprep.subr.bf16.mxu0 0
        %1984 = vmatpush1.bf16.msra.mxu0 0
        %1985 = vmatprep.subr.bf16.mxu0 0
        %1986 = vmatpush1.bf16.msra.mxu0 0
        %1987 = vmatprep.subr.bf16.mxu0 0
        %1988 = vmatpush1.bf16.msra.mxu0 0
        %1989 = vmatprep.subr.bf16.mxu0 0
        %1990 = vmatpush1.bf16.msra.mxu0 0
        %1991 = vmatprep.subr.bf16.mxu0 0
        %1992 = vmatpush1.bf16.msra.mxu0 0
        %1993 = vmatprep.subr.bf16.mxu0 0
        %1994 = vmatpush1.bf16.msra.mxu0 0
        %1995 = vmatprep.subr.bf16.mxu0 0
        %1996 = vmatpush1.bf16.msra.mxu0 0
        %1997 = vmatprep.subr.bf16.mxu0 0
        %1998 = vmatpush1.bf16.msra.mxu0 0
        %1999 = vmatprep.subr.bf16.mxu0 0
        %2000 = vmatpush1.bf16.msra.mxu0 0
        %2001 = vmatprep.subr.bf16.mxu0 0
        %2002 = vmatpush1.bf16.msra.mxu0 0
        %2003 = vmatprep.subr.bf16.mxu0 0
        %2004 = vmatpush1.bf16.msra.mxu0 0
        %2005 = vmatprep.mubr.bf16.mxu0 0
        %2006 = vmatmul.mubr.bf16.gmra.mrb[0].mxu0 %v1971
        %v2007 = vpop.f32.mrb[0].mxu0
        %v2008 = vadd.f32 0.0, %v2007
        %v2009 = vpop.f32.mrb[0].mxu0
        %v2010 = vpop.f32.mrb[0].mxu0
        %v2011 = vadd.f32 0.0, %v2010
        %v2012 = vpop.f32.mrb[0].mxu0
        %2013 = vdwg.mxu0
        %v2014 = vpack.c.bf16 %v2011, %v2008
        %v2016 = vsel %vm435, %v2014, 0
        %v2019 = vsel %vm680, %v1387, 0
        %2021 = vmatprep.subr.bf16.mxu0 0
        %2022 = vmatpush1.bf16.msra.mxu0 %v2019
        %2023 = vmatprep.subr.bf16.mxu0 0
        %2024 = vmatpush1.bf16.msra.mxu0 0
        %2025 = vmatprep.subr.bf16.mxu0 0
        %2026 = vmatpush1.bf16.msra.mxu0 0
        %2027 = vmatprep.subr.bf16.mxu0 0
        %2028 = vmatpush1.bf16.msra.mxu0 0
        %2029 = vmatprep.subr.bf16.mxu0 0
        %2030 = vmatpush1.bf16.msra.mxu0 0
        %2031 = vmatprep.subr.bf16.mxu0 0
        %2032 = vmatpush1.bf16.msra.mxu0 0
        %2033 = vmatprep.subr.bf16.mxu0 0
        %2034 = vmatpush1.bf16.msra.mxu0 0
        %2035 = vmatprep.subr.bf16.mxu0 0
        %2036 = vmatpush1.bf16.msra.mxu0 0
        %2037 = vmatprep.subr.bf16.mxu0 0
        %2038 = vmatpush1.bf16.msra.mxu0 0
        %2039 = vmatprep.subr.bf16.mxu0 0
        %2040 = vmatpush1.bf16.msra.mxu0 0
        %2041 = vmatprep.subr.bf16.mxu0 0
        %2042 = vmatpush1.bf16.msra.mxu0 0
        %2043 = vmatprep.subr.bf16.mxu0 0
        %2044 = vmatpush1.bf16.msra.mxu0 0
        %2045 = vmatprep.subr.bf16.mxu0 0
        %2046 = vmatpush1.bf16.msra.mxu0 0
        %2047 = vmatprep.subr.bf16.mxu0 0
        %2048 = vmatpush1.bf16.msra.mxu0 0
        %2049 = vmatprep.subr.bf16.mxu0 0
        %2050 = vmatpush1.bf16.msra.mxu0 0
        %2051 = vmatprep.subr.bf16.mxu0 0
        %2052 = vmatpush1.bf16.msra.mxu0 0
        %2053 = vmatprep.mubr.bf16.mxu0 0
        %2054 = vmatmul.mubr.bf16.gmra.mrb[0].mxu0 %v2016
        %v2055 = vpop.f32.mrb[0].mxu0
        %v2056 = vadd.f32 0.0, %v2055
        %v2057 = vpop.f32.mrb[0].mxu0
        %v2058 = vpop.f32.mrb[0].mxu0
        %v2059 = vadd.f32 0.0, %v2058
        %v2060 = vpop.f32.mrb[0].mxu0
        %2061 = vdwg.mxu0
        %v2062 = vadd.f32 %v1891, %v2056
        %v2063 = vadd.f32 %v1892, %v2059
        %s2064 = scalar_lea.vmem [#allocation7], 7
        %v2065 = vld [vmem:[%s2064] sm:$0x1]
        %v2067 = vlaneseq
        %v2068 = vshrl.u32 %v2067, 7
        %v2069 = vsub.s32 0, %v2068
        %v2070 = vrot.slane %v2065, %v2069
        %v2072 = vadd.f32 %v2062, %v2070
        %v2073 = vadd.f32 %v2063, %v2070
        %v2074 = vmul.f32 %v2072, 0.5
        %v2075 = vmul.f32 %v2073, 0.5
        %v2076 = vmul.f32 %v2072, 0.70710677
        %v2077 = vmul.f32 %v2073, 0.70710677
        %vm2078 = vcmp.ge.f32.partialorder %v2076, 0.0
        %vm2079 = vcmp.ge.f32.partialorder %v2077, 0.0
        %v2080 = vsel %vm2078, 1.0, -1.0
        %v2081 = vsel %vm2079, 1.0, -1.0
        %v2082 = vand.u32 2147483647, %v2076
        %v2083 = vand.u32 2147483647, %v2077
        %v2084 = vmul.f32 %v2082, 0.3275911
        %v2085 = vmul.f32 %v2083, 0.3275911
        %v2086 = vadd.f32 %v2084, 1.0
        %v2087 = vadd.f32 %v2085, 1.0
        %v2088 = vrcp.pop %v2086
        %v2089 = vrcp.pop %v2087
        %v2090 = vmul.f32 %v2088, 1.0614054
        %v2091 = vmul.f32 %v2089, 1.0614054
        %v2092 = vadd.f32 %v2090, -1.4531521
        %v2093 = vadd.f32 %v2091, -1.4531521
        %v2094 = vmul.f32 %v2092, %v2088
        %v2095 = vmul.f32 %v2093, %v2089
        %v2096 = vadd.f32 %v2094, 1.4214138
        %v2097 = vadd.f32 %v2095, 1.4214138
        %v2098 = vmul.f32 %v2096, %v2088
        %v2099 = vmul.f32 %v2097, %v2089
        %v2100 = vadd.f32 %v2098, -0.28449672
        %v2101 = vadd.f32 %v2099, -0.28449672
        %v2102 = vmul.f32 %v2100, %v2088
        %v2103 = vmul.f32 %v2101, %v2089
        %v2104 = vadd.f32 %v2102, 0.2548296
        %v2105 = vadd.f32 %v2103, 0.2548296
        %v2106 = vmul.f32 %v2104, %v2088
        %v2107 = vmul.f32 %v2105, %v2089
        %v2108 = vsub.f32 0.0, %v2082
        %v2109 = vsub.f32 0.0, %v2083
        %v2110 = vmul.f32 %v2108, %v2082
        %v2111 = vmul.f32 %v2109, %v2083
        %v2112 = vmul.f32 %v2110, 1.442695
        %v2113 = vpow.pop %v2112
        %v2114 = vmul.f32 %v2111, 1.442695
        %v2115 = vpow.pop %v2114
        %v2116 = vmul.f32 %v2106, %v2113
        %v2117 = vmul.f32 %v2107, %v2115
        %v2118 = vsub.f32 1.0, %v2116
        %v2119 = vsub.f32 1.0, %v2117
        %v2120 = vmul.f32 %v2080, %v2118
        %v2121 = vmul.f32 %v2081, %v2119
        %v2122 = vadd.f32 %v2120, 1.0
        %v2123 = vadd.f32 %v2121, 1.0
        %v2124 = vmul.f32 %v2074, %v2122
        %v2125 = vmul.f32 %v2075, %v2123
        %v2126 = vadd.f32 %v218, %v2124
        %v2127 = vadd.f32 %v219, %v2125
        %v2128 = vadd.f32 %v218, %v220
        %v2129 = vadd.f32 %v219, %v221
        %v2130 = vmul.f32 %v2128, 0.5
        %v2131 = vmul.f32 %v2129, 0.5
        %v2132 = vsub.f32 %v2130, %v2126
        %v2133 = vsub.f32 %v2131, %v2127
        %v2135 = vsel %vm247, 0.03125, 0
        %v2138 = vsel %vm247, %v2132, 0
        %v2141 = vsel %vm247, %v2133, 0
        %v2144 = vsel %vm247, %v1176, 0
        %v2147 = vsel %vm247, %v1177, 0
        %2149 = vmatprep.subr.mxu0 0.0
        %2150 = vmatpush1.xpose.msra.mxu0 %v2138
        %2151 = vmatprep.subr.mxu0 0.0
        %2152 = vmatpush1.xpose.msra.mxu0 %v2141
        %2153 = vmatprep.subr.mxu0 0.0
        %2154 = vmatpush1.xpose.msra.mxu0 %v2144
        %2155 = vmatprep.subr.mxu0 0.0
        %2156 = vmatpush1.xpose.msra.mxu0 %v2147
        %2157 = vmatprep.subr.mxu0 0.0
        %2158 = vmatpush1.xpose.msra.mxu0 0.0
        %2159 = vmatprep.subr.mxu0 0.0
        %2160 = vmatpush1.xpose.msra.mxu0 0.0
        %2161 = vmatprep.subr.mxu0 0.0
        %2162 = vmatpush1.xpose.msra.mxu0 0.0
        %2163 = vmatprep.subr.mxu0 0.0
        %2164 = vmatpush1.xpose.msra.mxu0 0.0
        %2165 = vmatprep.subr.mxu0 0.0
        %2166 = vmatpush1.xpose.msra.mxu0 0.0
        %2167 = vmatprep.subr.mxu0 0.0
        %2168 = vmatpush1.xpose.msra.mxu0 0.0
        %2169 = vmatprep.subr.mxu0 0.0
        %2170 = vmatpush1.xpose.msra.mxu0 0.0
        %2171 = vmatprep.subr.mxu0 0.0
        %2172 = vmatpush1.xpose.msra.mxu0 0.0
        %2173 = vmatprep.subr.mxu0 0.0
        %2174 = vmatpush1.xpose.msra.mxu0 0.0
        %2175 = vmatprep.subr.mxu0 0.0
        %2176 = vmatpush1.xpose.msra.mxu0 0.0
        %2177 = vmatprep.subr.mxu0 0.0
        %2178 = vmatpush1.xpose.msra.mxu0 0.0
        %2179 = vmatprep.subr.mxu0 0.0
        %2180 = vmatpush1.xpose.msra.mxu0 0.0
        %2181 = vmatprep.subr.mxu0 0.0
        %2182 = vmatpush1.xpose.msra.mxu0 0.0
        %2183 = vmatprep.subr.mxu0 0.0
        %2184 = vmatpush1.xpose.msra.mxu0 0.0
        %2185 = vmatprep.subr.mxu0 0.0
        %2186 = vmatpush1.xpose.msra.mxu0 0.0
        %2187 = vmatprep.subr.mxu0 0.0
        %2188 = vmatpush1.xpose.msra.mxu0 0.0
        %2189 = vmatprep.subr.mxu0 0.0
        %2190 = vmatpush1.xpose.msra.mxu0 0.0
        %2191 = vmatprep.subr.mxu0 0.0
        %2192 = vmatpush1.xpose.msra.mxu0 0.0
        %2193 = vmatprep.subr.mxu0 0.0
        %2194 = vmatpush1.xpose.msra.mxu0 0.0
        %2195 = vmatprep.subr.mxu0 0.0
        %2196 = vmatpush1.xpose.msra.mxu0 0.0
        %2197 = vmatprep.subr.mxu0 0.0
        %2198 = vmatpush1.xpose.msra.mxu0 0.0
        %2199 = vmatprep.subr.mxu0 0.0
        %2200 = vmatpush1.xpose.msra.mxu0 0.0
        %2201 = vmatprep.subr.mxu0 0.0
        %2202 = vmatpush1.xpose.msra.mxu0 0.0
        %2203 = vmatprep.subr.mxu0 0.0
        %2204 = vmatpush1.xpose.msra.mxu0 0.0
        %2205 = vmatprep.subr.mxu0 0.0
        %2206 = vmatpush1.xpose.msra.mxu0 0.0
        %2207 = vmatprep.subr.mxu0 0.0
        %2208 = vmatpush1.xpose.msra.mxu0 0.0
        %2209 = vmatprep.subr.mxu0 0.0
        %2210 = vmatpush1.xpose.msra.mxu0 0.0
        %2211 = vmatprep.subr.mxu0 0.0
        %2212 = vmatpush1.xpose.msra.mxu0 0.0
        %2213 = vmatprep.mubr.f32.mxu0 0.0
        %2214 = vmatmul.mubr.f32.gmra.mrb[0].mxu0 %v2135
        %v2215 = vpop.f32.mrb[0].mxu0
        %v2216 = vadd.f32 0.0, %v2215
        %v2217 = vpop.f32.mrb[0].mxu0
        %2218 = vdwg.mxu0
        %vm2219 = vcmask 253952
        %2220 = vst.msk [vmem:[%s216] sm:$0x1] %vm2219, %v2216
        %s2221 = sand.u32 %s97, 1
        %s2222 = scalar_lea.sflag [#allocation4], %s2221
        %s2223 = sand.u32 %s97, 1
        %s2224 = scalar_lea.vmem [#allocation8], %s2223
        // Predicated region
        $region45: #{tpu_custom_call.1} parent=31 // pred_check
          %p2225 = pneg %p107
        $region46: #{tpu_custom_call.1} parent=31 // pred_check_branch
          %2227 = sbr.rel (%p2225) target = $region48
        $region47: #{tpu_custom_call.1} parent=31 // pred_region
          %s2229 = ssub.s32 16, 16
          %2230 = vsyncadd %s2222, %s2229
          %s2231 = smul.addr %s21, 16
          %s2232 = scalar_lea.hbm %s3, %s2231
          %s2234 = sshll.u32 %s2224, 4
          %s2235 = int_to_ptr.vmem [resolvable:$true] %s2234
          %2237 = dma.vmem_to_hbm [thread:$0]  %s2235, 16, %s2232, %s2222
        $region48: #{tpu_custom_call.1} parent=31 // pred_fallthru
          _
      $region32: #{tpu_custom_call.1} parent=5 // pred_fallthru
        _
      %p2238 = scmp.le.s32.totalorder 2, %s16
      // Predicated region
      $region49: #{tpu_custom_call.1} parent=5 // pred_check
        %p2239 = pneg %p2238
      $region50: #{tpu_custom_call.1} parent=5 // pred_check_branch
        %2241 = sbr.rel (%p2239) target = $region52
      $region51: #{tpu_custom_call.1} parent=5 // pred_region
        %s2242 = ssub.s32 %s16, 2
        // Predicated region
        $region53: #{tpu_custom_call.1} parent=51 // pred_check
          %p2243 = pneg %p113
        $region54: #{tpu_custom_call.1} parent=51 // pred_check_branch
          %2245 = sbr.rel (%p2243) target = $region56
        $region55: #{tpu_custom_call.1} parent=51 // pred_region
          %s2246 = sand.u32 %s98, 1
          %s2247 = scalar_lea.sflag [#allocation4], %s2246
          %s2248 = sand.u32 %s98, 1
          %s2249 = scalar_lea.vmem [#allocation8], %s2248
          %2250 = dma.done %s2247, 16
        $region56: #{tpu_custom_call.1} parent=51 // pred_fallthru
          _
      $region52: #{tpu_custom_call.1} parent=5 // pred_fallthru
        _
    $region6: #{tpu_custom_call.1} parent=1 // loop_footer
      %s20 = sadd.s32 1, %s16
    $region7: #{tpu_custom_call.1} parent=1 // loop_footer_branch
      %15 = sbr.rel target = $region3
    $region8: #{tpu_custom_call.1} parent=1 // loop_exit
      _
    %2251 = vsyncpa [#allocation3], 1
    %s2252 = scalar_lea.sflag [#allocation3], 1
    %2253 = vsyncpa %s2252, 1
    %2254 = vsyncpa [#allocation6], 1
    %2255 = vsyncpa [#allocation4], 1
    %s2256 = scalar_lea.sflag [#allocation4], 1
    %2257 = vsyncpa %s2256, 1

// kernel: tpu_custom_call.1
$region0: #{tpu_custom_call.1}
  #allocation0 [shape = 'u32[]', space=smem, size = 0x4, offset = 0x4, fixed_abs, tag = 'smem constant byte address 0x4 - core index']
  #allocation1 [shape = 'u32[144,128]{1,0:T(1,128)}', space=vmem, size = 0x12000, scoped, tag = 'internal scratch']
  %s0 = inlined_call_operand.hbm [shape: f32[4,2,16,32], index: 0, kind: input, shape index: {}]
  %s1 = inlined_call_operand.hbm [shape: bf16[8,32,32], index: 1, kind: input, shape index: {}]
  %s2 = inlined_call_operand.hbm [shape: f32[8,1,32], index: 2, kind: input, shape index: {}]
  %s3 = inlined_call_operand.hbm [shape: f32[4,1,32], index: 3, kind: output, shape index: {}]
  %s4 = sld [smem:[#allocation0]]
  $region57: #{tpu_custom_call.1} parent=0
    _
  %s6 = ssub.s32 1, %s4
  %s7 = scalar_select 0, %s6, %s4
  $region1: #{tpu_custom_call.1} parent=0
    #allocation2 [shape = 'u8[32768]{0}', space=vmem, size = 0x8000, scoped, tag = 'input window, operand 0']
    #allocation3 [shape = 's32[2]{0}', space=sflag, size = 0x8, scoped, tag = 'scoped memory for tpu_custom_call.1']
    #allocation4 [shape = 's32[2]{0}', space=sflag, size = 0x8, scoped, tag = 'scoped memory for tpu_custom_call.1']
    #allocation5 [shape = 'u8[65536]{0}', space=vmem, size = 0x10000, scoped, tag = 'input window, operand 1, single buffered']
    #allocation6 [shape = 's32[1]{0}', space=sflag, size = 0x4, scoped, tag = 'scoped memory for tpu_custom_call.1']
    #allocation7 [shape = 'u8[4096]{0}', space=vmem, size = 0x1000, scoped, tag = 'input window, operand 2, single buffered']
    #allocation8 [shape = 'u8[1024]{0}', space=vmem, size = 0x400, scoped, tag = 'output window, operand 0']
    %8 = vsyncpa [#allocation3], 0
    %s9 = scalar_lea.sflag [#allocation3], 1
    %10 = vsyncpa %s9, 0
    %11 = vsyncpa [#allocation6], 0
    %12 = vsyncpa [#allocation4], 0
    %s13 = scalar_lea.sflag [#allocation4], 1
    %14 = vsyncpa %s13, 0
    loop: start=0, step=1, limit=6
    $region2: #{tpu_custom_call.1} parent=1 // loop_pre_header
      _
    $region3: #{tpu_custom_call.1} parent=1 // loop_header
      %s16 = sphi 0, %s20
      %p17 = scmp.ge.s32.totalorder %s16, 6
      %s26 = sphi 0, %s28
      %s29 = sphi 0, %s26
      %s30 = sphi 0, %s29
      %s46 = sphi 0, %s30
      %s50 = sphi 0, %s50
      %s52 = sphi 0, %s50
      %s53 = sphi 0, %s52
      %s67 = sphi 0, %s53
      %s71 = sphi 0, %s71
      %s73 = sphi 0, %s71
      %s74 = sphi 0, %s73
      %s88 = sphi 0, %s74
      %s94 = sphi 0, %s96
      %s97 = sphi 0, %s94
      %s98 = sphi 0, %s97
      %s114 = sphi 0, %s98
    $region4: #{tpu_custom_call.1} parent=1 // loop_header_branch
      %19 = sbr.rel (%p17) target = $region8
    $region5: #{tpu_custom_call.1} parent=1 // loop_body
      %s21 = ssub.s32 %s16, 1
      %s22 = ssub.s32 %s16, 2
      %s23 = sadd.s32 %s16, 1
      %s24 = ssub.s32 %s16, %s23
      %p25 = scmp.eq.s32.totalorder %s24, 0
      %s27 = sadd.s32 %s26, 1
      %s28 = scalar_select %p25, %s26, %s27
      %p31 = pneg %p25
      %p32 = scmp.eq.s32.totalorder %s16, 3
      %p33 = por %p31, %p32
      %p34 = scmp.ne.s32.totalorder %s26, %s29
      %p35 = scmp.eq.s32.totalorder %s16, 0
      %p36 = por %p34, %p35
      %p37 = scmp.ne.s32.totalorder %s26, %s29
      %p38 = scmp.eq.s32.totalorder %s21, 3
      %p39 = por %p37, %p38
      %p40 = scmp.ne.s32.totalorder %s29, %s30
      %p41 = scmp.eq.s32.totalorder %s21, 0
      %p42 = por %p40, %p41
      %p43 = scmp.ne.s32.totalorder %s29, %s30
      %p44 = scmp.eq.s32.totalorder %s22, 3
      %p45 = por %p43, %p44
      %p47 = scmp.ne.s32.totalorder %s30, %s46
      %p48 = scmp.eq.s32.totalorder %s22, 0
      %p49 = por %p47, %p48
      %s51 = sadd.s32 %s50, 1
      %p54 = scmp.eq.s32.totalorder %s16, 3
      %p55 = scmp.ne.s32.totalorder %s50, %s52
      %p56 = scmp.eq.s32.totalorder %s16, 0
      %p57 = por %p55, %p56
      %p58 = scmp.ne.s32.totalorder %s50, %s52
      %p59 = scmp.eq.s32.totalorder %s21, 3
      %p60 = por %p58, %p59
      %p61 = scmp.ne.s32.totalorder %s52, %s53
      %p62 = scmp.eq.s32.totalorder %s21, 0
      %p63 = por %p61, %p62
      %p64 = scmp.ne.s32.totalorder %s52, %s53
      %p65 = scmp.eq.s32.totalorder %s22, 3
      %p66 = por %p64, %p65
      %p68 = scmp.ne.s32.totalorder %s53, %s67
      %p69 = scmp.eq.s32.totalorder %s22, 0
      %p70 = por %p68, %p69
      %s72 = sadd.s32 %s71, 1
      %p75 = scmp.eq.s32.totalorder %s16, 3
      %p76 = scmp.ne.s32.totalorder %s71, %s73
      %p77 = scmp.eq.s32.totalorder %s16, 0
      %p78 = por %p76, %p77
      %p79 = scmp.ne.s32.totalorder %s71, %s73
      %p80 = scmp.eq.s32.totalorder %s21, 3
      %p81 = por %p79, %p80
      %p82 = scmp.ne.s32.totalorder %s73, %s74
      %p83 = scmp.eq.s32.totalorder %s21, 0
      %p84 = por %p82, %p83
      %p85 = scmp.ne.s32.totalorder %s73, %s74
      %p86 = scmp.eq.s32.totalorder %s22, 3
      %p87 = por %p85, %p86
      %p89 = scmp.ne.s32.totalorder %s74, %s88
      %p90 = scmp.eq.s32.totalorder %s22, 0
      %p91 = por %p89, %p90
      %s92 = ssub.s32 %s16, %s23
      %p93 = scmp.eq.s32.totalorder %s92, 0
      %s95 = sadd.s32 %s94, 1
      %s96 = scalar_select %p93, %s94, %s95
      %p99 = pneg %p93
      %p100 = scmp.eq.s32.totalorder %s16, 3
      %p101 = por %p99, %p100
      %p102 = scmp.ne.s32.totalorder %s94, %s97
      %p103 = scmp.eq.s32.totalorder %s16, 0
      %p104 = por %p102, %p103
      %p105 = scmp.ne.s32.totalorder %s94, %s97
      %p106 = scmp.eq.s32.totalorder %s21, 3
      %p107 = por %p105, %p106
      %p108 = scmp.ne.s32.totalorder %s97, %s98
      %p109 = scmp.eq.s32.totalorder %s21, 0
      %p110 = por %p108, %p109
      %p111 = scmp.ne.s32.totalorder %s97, %s98
      %p112 = scmp.eq.s32.totalorder %s22, 3
      %p113 = por %p111, %p112
      %p115 = scmp.ne.s32.totalorder %s98, %s114
      %p116 = scmp.eq.s32.totalorder %s22, 0
      %p117 = por %p115, %p116
      %p118 = scmp.le.s32.totalorder 1, %s16
      %p119 = scmp.lt.s32.totalorder %s16, 5
      %p120 = pnand %p118, %p119
      %p121 = pneg %p120
      // Predicated region
      $region9: #{tpu_custom_call.1} parent=5 // pred_check
        _
      $region10: #{tpu_custom_call.1} parent=5 // pred_check_branch
        %123 = sbr.rel (%p120) target = $region12
      $region11: #{tpu_custom_call.1} parent=5 // pred_region
        %s124 = ssub.s32 %s16, 1
        // Predicated region
        $region13: #{tpu_custom_call.1} parent=11 // pred_check
          %p125 = pneg %p63
        $region14: #{tpu_custom_call.1} parent=11 // pred_check_branch
          %127 = sbr.rel (%p125) target = $region16
        $region15: #{tpu_custom_call.1} parent=11 // pred_region
          %s129 = ssub.s32 2048, 2048
          %130 = vsyncadd [#allocation6], %s129
          %s131 = sshll.u32 [#allocation5], 4
          %s132 = int_to_ptr.vmem [resolvable:$true] %s131
          %137 = dma.hbm_to_vmem [thread:$0]  %s1, 2048, %s132, [#allocation6], 64, 64, 4
        $region16: #{tpu_custom_call.1} parent=11 // pred_fallthru
          _
        // Predicated region
        $region17: #{tpu_custom_call.1} parent=11 // pred_check
          %p138 = pneg %p84
        $region18: #{tpu_custom_call.1} parent=11 // pred_check_branch
          %140 = sbr.rel (%p138) target = $region20
        $region19: #{tpu_custom_call.1} parent=11 // pred_region
          %s142 = ssub.s32 128, 128
          %143 = vsyncadd [#allocation6], %s142
          %s144 = sshll.u32 [#allocation7], 4
          %s145 = int_to_ptr.vmem [resolvable:$true] %s144
          %150 = dma.hbm_to_vmem [thread:$0]  %s2, 128, %s145, [#allocation6], 16, 16, 1
        $region20: #{tpu_custom_call.1} parent=11 // pred_fallthru
          _
      $region12: #{tpu_custom_call.1} parent=5 // pred_fallthru
        _
      %p151 = scmp.lt.s32.totalorder %s16, 4
      // Predicated region
      $region21: #{tpu_custom_call.1} parent=5 // pred_check
        %p152 = pneg %p151
      $region22: #{tpu_custom_call.1} parent=5 // pred_check_branch
        %154 = sbr.rel (%p152) target = $region24
      $region23: #{tpu_custom_call.1} parent=5 // pred_region
        // Predicated region
        $region25: #{tpu_custom_call.1} parent=23 // pred_check
          %p155 = pneg %p36
        $region26: #{tpu_custom_call.1} parent=23 // pred_check_branch
          %157 = sbr.rel (%p155) target = $region28
        $region27: #{tpu_custom_call.1} parent=23 // pred_region
          %s158 = sand.u32 %s26, 1
          %s159 = scalar_lea.sflag [#allocation3], %s158
          %s160 = sand.u32 %s26, 1
          %s161 = smul.addr %s160, 32
          %s162 = scalar_lea.vmem [#allocation2], %s161
          %s164 = ssub.s32 512, 512
          %165 = vsyncadd %s159, %s164
          %s166 = smul.addr %s16, 4
          %s167 = smul.addr %s166, 128
          %s168 = scalar_lea.hbm %s0, %s167
          %s169 = sshll.u32 %s162, 4
          %s170 = int_to_ptr.vmem [resolvable:$true] %s169
          %175 = dma.hbm_to_vmem [thread:$0]  %s168, 512, %s170, %s159, 128, 128, 8
        $region28: #{tpu_custom_call.1} parent=23 // pred_fallthru
          _
      $region24: #{tpu_custom_call.1} parent=5 // pred_fallthru
        _
      %p176 = scmp.le.s32.totalorder 1, %s16
      %p177 = scmp.lt.s32.totalorder %s16, 5
      %p178 = pnand %p176, %p177
      %p179 = pneg %p178
      // Predicated region
      $region29: #{tpu_custom_call.1} parent=5 // pred_check
        _
      $region30: #{tpu_custom_call.1} parent=5 // pred_check_branch
        %181 = sbr.rel (%p178) target = $region32
      $region31: #{tpu_custom_call.1} parent=5 // pred_region
        %s182 = ssub.s32 %s16, 1
        %s183 = sand.u32 %s29, 1
        %s184 = scalar_lea.sflag [#allocation3], %s183
        %s185 = sand.u32 %s29, 1
        %s186 = smul.addr %s185, 32
        %s187 = scalar_lea.vmem [#allocation2], %s186
        // Predicated region
        $region33: #{tpu_custom_call.1} parent=31 // pred_check
          %p188 = pneg %p42
        $region34: #{tpu_custom_call.1} parent=31 // pred_check_branch
          %190 = sbr.rel (%p188) target = $region36
        $region35: #{tpu_custom_call.1} parent=31 // pred_region
          %191 = dma.done %s184, 512
        $region36: #{tpu_custom_call.1} parent=31 // pred_fallthru
          _
        // Predicated region
        $region37: #{tpu_custom_call.1} parent=31 // pred_check
          %p192 = pneg %p63
        $region38: #{tpu_custom_call.1} parent=31 // pred_check_branch
          %194 = sbr.rel (%p192) target = $region40
        $region39: #{tpu_custom_call.1} parent=31 // pred_region
          %195 = dma.done [#allocation6], 2048
        $region40: #{tpu_custom_call.1} parent=31 // pred_fallthru
          _
        // Predicated region
        $region41: #{tpu_custom_call.1} parent=31 // pred_check
          %p196 = pneg %p84
        $region42: #{tpu_custom_call.1} parent=31 // pred_check_branch
          %198 = sbr.rel (%p196) target = $region44
        $region43: #{tpu_custom_call.1} parent=31 // pred_region
          %199 = dma.done [#allocation6], 128
        $region44: #{tpu_custom_call.1} parent=31 // pred_fallthru
          _
        %s200 = sand.u32 %s29, 1
        %s201 = scalar_lea.sflag [#allocation3], %s200
        %s202 = sand.u32 %s29, 1
        %s203 = smul.addr %s202, 32
        %s204 = scalar_lea.vmem [#allocation2], %s203
        %p205 = pneg %p42
        %p206 = pneg %p39
        %p207 = pneg %p63
        %p208 = pneg %p60
        %p209 = pneg %p84
        %p210 = pneg %p81
        %p211 = pneg %p110
        %p212 = pneg %p107
        %s213 = sand.u32 %s97, 1
        %s214 = scalar_lea.sflag [#allocation4], %s213
        %s215 = sand.u32 %s97, 1
        %s216 = scalar_lea.vmem [#allocation8], %s215
        %v218 = vld [vmem:[%s187] sm:$0xff]
        %v219 = vld [vmem:[%s187 + $0x8] sm:$0xff]
        %v220 = vld [vmem:[%s187 + $0x10] sm:$0xff]
        %v221 = vld [vmem:[%s187 + $0x18] sm:$0xff]
        %v222 = vpack.c.bf16 %v219, %v218
        %v223 = vpack.c.bf16 %v221, %v220
        %v224 = vld [vmem:[#allocation5] sm:$0xf]
        %v225 = vld [vmem:[#allocation5 + $0x4] sm:$0xf]
        %v226 = vld [vmem:[#allocation5 + $0x8] sm:$0xf]
        %v227 = vld [vmem:[#allocation5 + $0xc] sm:$0xf]
        %v228 = vld [vmem:[#allocation7] sm:$0x1]
        %v230 = vlaneseq
        %v231 = vshrl.u32 %v230, 7
        %v232 = vsub.s32 0, %v231
        %v233 = vrot.slane %v228, %v232
        %v239 = vunpack.c.l.b16 %v224
        %v240 = vunpack.c.l.b16 %v225
        %v241 = vunpack.c.l.b16 %v226
        %v242 = vunpack.c.l.b16 %v227
        %v243 = vpack.c.b16 %v240, %v239
        %v244 = vpack.c.b16 %v242, %v241
        %vm247 = vcmask 261120
        %v249 = vsel %vm247, %v223, 0
        %251 = vmatprep.subr.bf16.mxu0 0
        %252 = vmatpush1.bf16.msra.mxu0 %v243
        %253 = vmatprep.subr.bf16.mxu0 0
        %254 = vmatpush1.bf16.msra.mxu0 %v244
        %255 = vmatprep.subr.bf16.mxu0 0
        %256 = vmatpush1.bf16.msra.mxu0 0
        %257 = vmatprep.subr.bf16.mxu0 0
        %258 = vmatpush1.bf16.msra.mxu0 0
        %259 = vmatprep.subr.bf16.mxu0 0
        %260 = vmatpush1.bf16.msra.mxu0 0
        %261 = vmatprep.subr.bf16.mxu0 0
        %262 = vmatpush1.bf16.msra.mxu0 0
        %263 = vmatprep.subr.bf16.mxu0 0
        %264 = vmatpush1.bf16.msra.mxu0 0
        %265 = vmatprep.subr.bf16.mxu0 0
        %266 = vmatpush1.bf16.msra.mxu0 0
        %267 = vmatprep.subr.bf16.mxu0 0
        %268 = vmatpush1.bf16.msra.mxu0 0
        %269 = vmatprep.subr.bf16.mxu0 0
        %270 = vmatpush1.bf16.msra.mxu0 0
        %271 = vmatprep.subr.bf16.mxu0 0
        %272 = vmatpush1.bf16.msra.mxu0 0
        %273 = vmatprep.subr.bf16.mxu0 0
        %274 = vmatpush1.bf16.msra.mxu0 0
        %275 = vmatprep.subr.bf16.mxu0 0
        %276 = vmatpush1.bf16.msra.mxu0 0
        %277 = vmatprep.subr.bf16.mxu0 0
        %278 = vmatpush1.bf16.msra.mxu0 0
        %279 = vmatprep.subr.bf16.mxu0 0
        %280 = vmatpush1.bf16.msra.mxu0 0
        %281 = vmatprep.subr.bf16.mxu0 0
        %282 = vmatpush1.bf16.msra.mxu0 0
        %283 = vmatprep.mubr.bf16.mxu0 0
        %284 = vmatmul.mubr.bf16.gmra.mrb[0].mxu0 %v249
        %v285 = vpop.f32.mrb[0].mxu0
        %v286 = vadd.f32 %v233, %v285
        %v287 = vpop.f32.mrb[0].mxu0
        %v288 = vpop.f32.mrb[0].mxu0
        %v289 = vadd.f32 %v233, %v288
        %v290 = vpop.f32.mrb[0].mxu0
        %291 = vdwg.mxu0
        %s292 = scalar_lea.vmem [#allocation5], 16
        %v293 = vld [vmem:[%s292] sm:$0xf]
        %v294 = vld [vmem:[%s292 + $0x4] sm:$0xf]
        %v295 = vld [vmem:[%s292 + $0x8] sm:$0xf]
        %v296 = vld [vmem:[%s292 + $0xc] sm:$0xf]
        %s297 = scalar_lea.vmem [#allocation7], 1
        %v298 = vld [vmem:[%s297] sm:$0x1]
        %v300 = vlaneseq
        %v301 = vshrl.u32 %v300, 7
        %v302 = vsub.s32 0, %v301
        %v303 = vrot.slane %v298, %v302
        %v309 = vunpack.c.l.b16 %v293
        %v310 = vunpack.c.l.b16 %v294
        %v311 = vunpack.c.l.b16 %v295
        %v312 = vunpack.c.l.b16 %v296
        %v313 = vpack.c.b16 %v310, %v309
        %v314 = vpack.c.b16 %v312, %v311
        %v318 = vsel %vm247, %v222, 0
        %320 = vmatprep.subr.bf16.mxu0 0
        %321 = vmatpush1.bf16.msra.mxu0 %v313
        %322 = vmatprep.subr.bf16.mxu0 0
        %323 = vmatpush1.bf16.msra.mxu0 %v314
        %324 = vmatprep.subr.bf16.mxu0 0
        %325 = vmatpush1.bf16.msra.mxu0 0
        %326 = vmatprep.subr.bf16.mxu0 0
        %327 = vmatpush1.bf16.msra.mxu0 0
        %328 = vmatprep.subr.bf16.mxu0 0
        %329 = vmatpush1.bf16.msra.mxu0 0
        %330 = vmatprep.subr.bf16.mxu0 0
        %331 = vmatpush1.bf16.msra.mxu0 0
        %332 = vmatprep.subr.bf16.mxu0 0
        %333 = vmatpush1.bf16.msra.mxu0 0
        %334 = vmatprep.subr.bf16.mxu0 0
        %335 = vmatpush1.bf16.msra.mxu0 0
        %336 = vmatprep.subr.bf16.mxu0 0
        %337 = vmatpush1.bf16.msra.mxu0 0
        %338 = vmatprep.subr.bf16.mxu0 0
        %339 = vmatpush1.bf16.msra.mxu0 0
        %340 = vmatprep.subr.bf16.mxu0 0
        %341 = vmatpush1.bf16.msra.mxu0 0
        %342 = vmatprep.subr.bf16.mxu0 0
        %343 = vmatpush1.bf16.msra.mxu0 0
        %344 = vmatprep.subr.bf16.mxu0 0
        %345 = vmatpush1.bf16.msra.mxu0 0
        %346 = vmatprep.subr.bf16.mxu0 0
        %347 = vmatpush1.bf16.msra.mxu0 0
        %348 = vmatprep.subr.bf16.mxu0 0
        %349 = vmatpush1.bf16.msra.mxu0 0
        %350 = vmatprep.subr.bf16.mxu0 0
        %351 = vmatpush1.bf16.msra.mxu0 0
        %352 = vmatprep.mubr.bf16.mxu0 0
        %353 = vmatmul.mubr.bf16.gmra.mrb[0].mxu0 %v318
        %v354 = vpop.f32.mrb[0].mxu0
        %v355 = vadd.f32 %v303, %v354
        %v356 = vpop.f32.mrb[0].mxu0
        %v357 = vpop.f32.mrb[0].mxu0
        %v358 = vadd.f32 %v303, %v357
        %v359 = vpop.f32.mrb[0].mxu0
        %360 = vdwg.mxu0
        %s361 = scalar_lea.vmem [#allocation5], 32
        %v362 = vld [vmem:[%s361] sm:$0xf]
        %v363 = vld [vmem:[%s361 + $0x4] sm:$0xf]
        %v364 = vld [vmem:[%s361 + $0x8] sm:$0xf]
        %v365 = vld [vmem:[%s361 + $0xc] sm:$0xf]
        %s366 = scalar_lea.vmem [#allocation7], 2
        %v367 = vld [vmem:[%s366] sm:$0x1]
        %v369 = vlaneseq
        %v370 = vshrl.u32 %v369, 7
        %v371 = vsub.s32 0, %v370
        %v372 = vrot.slane %v367, %v371
        %v378 = vunpack.c.l.b16 %v362
        %v379 = vunpack.c.l.b16 %v363
        %v380 = vunpack.c.l.b16 %v364
        %v381 = vunpack.c.l.b16 %v365
        %v382 = vpack.c.b16 %v379, %v378
        %v383 = vpack.c.b16 %v381, %v380
        %386 = vmatprep.subr.bf16.mxu0 0
        %387 = vmatpush1.bf16.msra.mxu0 %v382
        %388 = vmatprep.subr.bf16.mxu0 0
        %389 = vmatpush1.bf16.msra.mxu0 %v383
        %390 = vmatprep.subr.bf16.mxu0 0
        %391 = vmatpush1.bf16.msra.mxu0 0
        %392 = vmatprep.subr.bf16.mxu0 0
        %393 = vmatpush1.bf16.msra.mxu0 0
        %394 = vmatprep.subr.bf16.mxu0 0
        %395 = vmatpush1.bf16.msra.mxu0 0
        %396 = vmatprep.subr.bf16.mxu0 0
        %397 = vmatpush1.bf16.msra.mxu0 0
        %398 = vmatprep.subr.bf16.mxu0 0
        %399 = vmatpush1.bf16.msra.mxu0 0
        %400 = vmatprep.subr.bf16.mxu0 0
        %401 = vmatpush1.bf16.msra.mxu0 0
        %402 = vmatprep.subr.bf16.mxu0 0
        %403 = vmatpush1.bf16.msra.mxu0 0
        %404 = vmatprep.subr.bf16.mxu0 0
        %405 = vmatpush1.bf16.msra.mxu0 0
        %406 = vmatprep.subr.bf16.mxu0 0
        %407 = vmatpush1.bf16.msra.mxu0 0
        %408 = vmatprep.subr.bf16.mxu0 0
        %409 = vmatpush1.bf16.msra.mxu0 0
        %410 = vmatprep.subr.bf16.mxu0 0
        %411 = vmatpush1.bf16.msra.mxu0 0
        %412 = vmatprep.subr.bf16.mxu0 0
        %413 = vmatpush1.bf16.msra.mxu0 0
        %414 = vmatprep.subr.bf16.mxu0 0
        %415 = vmatpush1.bf16.msra.mxu0 0
        %416 = vmatprep.subr.bf16.mxu0 0
        %417 = vmatpush1.bf16.msra.mxu0 0
        %418 = vmatprep.mubr.bf16.mxu0 0
        %419 = vmatmul.mubr.bf16.gmra.mrb[0].mxu0 %v318
        %v420 = vpop.f32.mrb[0].mxu0
        %v421 = vadd.f32 %v372, %v420
        %v422 = vpop.f32.mrb[0].mxu0
        %v423 = vpop.f32.mrb[0].mxu0
        %v424 = vadd.f32 %v372, %v423
        %v425 = vpop.f32.mrb[0].mxu0
        %426 = vdwg.mxu0
        %v427 = vpack.c.bf16 %v289, %v286
        %v428 = vpack.c.bf16 %v358, %v355
        %v429 = vpack.c.bf16 %v424, %v421
        %s430 = scalar_lea.vmem [#allocation5], 48
        %v431 = vld [vmem:[%s430] sm:$0xf]
        %v432 = vld [vmem:[%s430 + $0x4] sm:$0xf]
        %v433 = vld [vmem:[%s430 + $0x8] sm:$0xf]
        %v434 = vld [vmem:[%s430 + $0xc] sm:$0xf]
        %vm435 = vcmask 64512
        %v437 = vsel %vm435, %v427, 0
        %v440 = vsel %vm435, %v428, 0
        %442 = vmatprep.subr.bf16.mxu0 0
        %443 = vmatpush1.bf16.xpose.msra.mxu0 %v440
        %444 = vmatprep.subr.bf16.mxu0 0
        %445 = vmatpush1.bf16.xpose.msra.mxu0 0
        %446 = vmatprep.subr.bf16.mxu0 0
        %447 = vmatpush1.bf16.xpose.msra.mxu0 0
        %448 = vmatprep.subr.bf16.mxu0 0
        %449 = vmatpush1.bf16.xpose.msra.mxu0 0
        %450 = vmatprep.subr.bf16.mxu0 0
        %451 = vmatpush1.bf16.xpose.msra.mxu0 0
        %452 = vmatprep.subr.bf16.mxu0 0
        %453 = vmatpush1.bf16.xpose.msra.mxu0 0
        %454 = vmatprep.subr.bf16.mxu0 0
        %455 = vmatpush1.bf16.xpose.msra.mxu0 0
        %456 = vmatprep.subr.bf16.mxu0 0
        %457 = vmatpush1.bf16.xpose.msra.mxu0 0
        %458 = vmatprep.subr.bf16.mxu0 0
        %459 = vmatpush1.bf16.xpose.msra.mxu0 0
        %460 = vmatprep.subr.bf16.mxu0 0
        %461 = vmatpush1.bf16.xpose.msra.mxu0 0
        %462 = vmatprep.subr.bf16.mxu0 0
        %463 = vmatpush1.bf16.xpose.msra.mxu0 0
        %464 = vmatprep.subr.bf16.mxu0 0
        %465 = vmatpush1.bf16.xpose.msra.mxu0 0
        %466 = vmatprep.subr.bf16.mxu0 0
        %467 = vmatpush1.bf16.xpose.msra.mxu0 0
        %468 = vmatprep.subr.bf16.mxu0 0
        %469 = vmatpush1.bf16.xpose.msra.mxu0 0
        %470 = vmatprep.subr.bf16.mxu0 0
        %471 = vmatpush1.bf16.xpose.msra.mxu0 0
        %472 = vmatprep.subr.bf16.mxu0 0
        %473 = vmatpush1.bf16.xpose.msra.mxu0 0
        %474 = vmatprep.mubr.bf16.mxu0 0
        %475 = vmatmul.mubr.bf16.gmra.mrb[0].mxu0 %v437
        %v476 = vpop.f32.mrb[0].mxu0
        %v477 = vadd.f32 0.0, %v476
        %v478 = vpop.f32.mrb[0].mxu0
        %v479 = vpop.f32.mrb[0].mxu0
        %v480 = vadd.f32 0.0, %v479
        %v481 = vpop.f32.mrb[0].mxu0
        %482 = vdwg.mxu0
        %vm483 = vcmask 130048
        %v484 = vsel %vm483, %v477, -inf
        %485 = vmax.xlane.f32.xlu0 %v484
        %v486 = vpop.xlane.xlu0 %485
        %v487 = vsel %vm483, %v480, -inf
        %488 = vmax.xlane.f32.xlu0 %v487
        %v489 = vpop.xlane.xlu0 %488
        %v490 = vsub.f32 %v477, %v486
        %v491 = vsub.f32 %v480, %v489
        %v492 = vmul.f32 %v490, 1.442695
        %v493 = vpow.pop %v492
        %v494 = vmul.f32 %v491, 1.442695
        %v495 = vpow.pop %v494
        %v496 = vsel %vm483, %v493, 0.0
        %497 = vadd.xlane.f32.xlu0 %v496
        %v498 = vpop.xlane.xlu0 %497
        %v499 = vsel %vm483, %v495, 0.0
        %500 = vadd.xlane.f32.xlu0 %v499
        %v501 = vpop.xlane.xlu0 %500
        %v502 = vrcp.pop %v498
        %v503 = vrcp.pop %v501
        %v504 = vmul.f32 %v493, %v502
        %v505 = vmul.f32 %v495, %v503
        %v506 = vpack.c.bf16 %v505, %v504
        %v508 = vsel %vm483, %v506, 0
        %510 = vmatprep.subr.bf16.mxu0 0
        %511 = vmatpush1.bf16.msra.mxu0 %v429
        %512 = vmatprep.subr.bf16.mxu0 0
        %513 = vmatpush1.bf16.msra.mxu0 0
        %514 = vmatprep.subr.bf16.mxu0 0
        %515 = vmatpush1.bf16.msra.mxu0 0
        %516 = vmatprep.subr.bf16.mxu0 0
        %517 = vmatpush1.bf16.msra.mxu0 0
        %518 = vmatprep.subr.bf16.mxu0 0
        %519 = vmatpush1.bf16.msra.mxu0 0
        %520 = vmatprep.subr.bf16.mxu0 0
        %521 = vmatpush1.bf16.msra.mxu0 0
        %522 = vmatprep.subr.bf16.mxu0 0
        %523 = vmatpush1.bf16.msra.mxu0 0
        %524 = vmatprep.subr.bf16.mxu0 0
        %525 = vmatpush1.bf16.msra.mxu0 0
        %526 = vmatprep.subr.bf16.mxu0 0
        %527 = vmatpush1.bf16.msra.mxu0 0
        %528 = vmatprep.subr.bf16.mxu0 0
        %529 = vmatpush1.bf16.msra.mxu0 0
        %530 = vmatprep.subr.bf16.mxu0 0
        %531 = vmatpush1.bf16.msra.mxu0 0
        %532 = vmatprep.subr.bf16.mxu0 0
        %533 = vmatpush1.bf16.msra.mxu0 0
        %534 = vmatprep.subr.bf16.mxu0 0
        %535 = vmatpush1.bf16.msra.mxu0 0
        %536 = vmatprep.subr.bf16.mxu0 0
        %537 = vmatpush1.bf16.msra.mxu0 0
        %538 = vmatprep.subr.bf16.mxu0 0
        %539 = vmatpush1.bf16.msra.mxu0 0
        %540 = vmatprep.subr.bf16.mxu0 0
        %541 = vmatpush1.bf16.msra.mxu0 0
        %542 = vmatprep.mubr.bf16.mxu0 0
        %543 = vmatmul.mubr.bf16.gmra.mrb[0].mxu0 %v508
        %v544 = vpop.f32.mrb[0].mxu0
        %v545 = vadd.f32 0.0, %v544
        %v546 = vpop.f32.mrb[0].mxu0
        %v547 = vpop.f32.mrb[0].mxu0
        %v548 = vadd.f32 0.0, %v547
        %v549 = vpop.f32.mrb[0].mxu0
        %550 = vdwg.mxu0
        %v551 = vpack.c.bf16 %v548, %v545
        %553 = vrot.lane.b32.xlu0 %v427, 120
        %v554 = vpop.permute.xlu0 %553
        %556 = vrot.lane.b32.xlu0 %v428, 120
        %v557 = vpop.permute.xlu0 %556
        %v559 = vsel %vm435, %v554, 0
        %v562 = vsel %vm435, %v557, 0
        %564 = vmatprep.subr.bf16.mxu0 0
        %565 = vmatpush1.bf16.xpose.msra.mxu0 %v562
        %566 = vmatprep.subr.bf16.mxu0 0
        %567 = vmatpush1.bf16.xpose.msra.mxu0 0
        %568 = vmatprep.subr.bf16.mxu0 0
        %569 = vmatpush1.bf16.xpose.msra.mxu0 0
        %570 = vmatprep.subr.bf16.mxu0 0
        %571 = vmatpush1.bf16.xpose.msra.mxu0 0
        %572 = vmatprep.subr.bf16.mxu0 0
        %573 = vmatpush1.bf16.xpose.msra.mxu0 0
        %574 = vmatprep.subr.bf16.mxu0 0
        %575 = vmatpush1.bf16.xpose.msra.mxu0 0
        %576 = vmatprep.subr.bf16.mxu0 0
        %577 = vmatpush1.bf16.xpose.msra.mxu0 0
        %578 = vmatprep.subr.bf16.mxu0 0
        %579 = vmatpush1.bf16.xpose.msra.mxu0 0
        %580 = vmatprep.subr.bf16.mxu0 0
        %581 = vmatpush1.bf16.xpose.msra.mxu0 0
        %582 = vmatprep.subr.bf16.mxu0 0
        %583 = vmatpush1.bf16.xpose.msra.mxu0 0
        %584 = vmatprep.subr.bf16.mxu0 0
        %585 = vmatpush1.bf16.xpose.msra.mxu0 0
        %586 = vmatprep.subr.bf16.mxu0 0
        %587 = vmatpush1.bf16.xpose.msra.mxu0 0
        %588 = vmatprep.subr.bf16.mxu0 0
        %589 = vmatpush1.bf16.xpose.msra.mxu0 0
        %590 = vmatprep.subr.bf16.mxu0 0
        %591 = vmatpush1.bf16.xpose.msra.mxu0 0
        %592 = vmatprep.subr.bf16.mxu0 0
        %593 = vmatpush1.bf16.xpose.msra.mxu0 0
        %594 = vmatprep.subr.bf16.mxu0 0
        %595 = vmatpush1.bf16.xpose.msra.mxu0 0
        %596 = vmatprep.mubr.bf16.mxu0 0
        %597 = vmatmul.mubr.bf16.gmra.mrb[0].mxu0 %v559
        %v598 = vpop.f32.mrb[0].mxu0
        %v599 = vadd.f32 0.0, %v598
        %v600 = vpop.f32.mrb[0].mxu0
        %v601 = vpop.f32.mrb[0].mxu0
        %v602 = vadd.f32 0.0, %v601
        %v603 = vpop.f32.mrb[0].mxu0
        %604 = vdwg.mxu0
        %v605 = vsel %vm483, %v599, -inf
        %606 = vmax.xlane.f32.xlu0 %v605
        %v607 = vpop.xlane.xlu0 %606
        %v608 = vsel %vm483, %v602, -inf
        %609 = vmax.xlane.f32.xlu0 %v608
        %v610 = vpop.xlane.xlu0 %609
        %v611 = vsub.f32 %v599, %v607
        %v612 = vsub.f32 %v602, %v610
        %v613 = vmul.f32 %v611, 1.442695
        %v614 = vpow.pop %v613
        %v615 = vmul.f32 %v612, 1.442695
        %v616 = vpow.pop %v615
        %v617 = vsel %vm483, %v614, 0.0
        %618 = vadd.xlane.f32.xlu0 %v617
        %v619 = vpop.xlane.xlu0 %618
        %v620 = vsel %vm483, %v616, 0.0
        %621 = vadd.xlane.f32.xlu0 %v620
        %v622 = vpop.xlane.xlu0 %621
        %v623 = vrcp.pop %v619
        %v624 = vrcp.pop %v622
        %v625 = vmul.f32 %v614, %v623
        %v626 = vmul.f32 %v616, %v624
        %v627 = vpack.c.bf16 %v626, %v625
        %629 = vrot.lane.b32.xlu0 %v429, 120
        %v630 = vpop.permute.xlu0 %629
        %v633 = vsel %vm483, %v627, 0
        %635 = vmatprep.subr.bf16.mxu0 0
        %636 = vmatpush1.bf16.msra.mxu0 %v630
        %637 = vmatprep.subr.bf16.mxu0 0
        %638 = vmatpush1.bf16.msra.mxu0 0
        %639 = vmatprep.subr.bf16.mxu0 0
        %640 = vmatpush1.bf16.msra.mxu0 0
        %641 = vmatprep.subr.bf16.mxu0 0
        %642 = vmatpush1.bf16.msra.mxu0 0
        %643 = vmatprep.subr.bf16.mxu0 0
        %644 = vmatpush1.bf16.msra.mxu0 0
        %645 = vmatprep.subr.bf16.mxu0 0
        %646 = vmatpush1.bf16.msra.mxu0 0
        %647 = vmatprep.subr.bf16.mxu0 0
        %648 = vmatpush1.bf16.msra.mxu0 0
        %649 = vmatprep.subr.bf16.mxu0 0
        %650 = vmatpush1.bf16.msra.mxu0 0
        %651 = vmatprep.subr.bf16.mxu0 0
        %652 = vmatpush1.bf16.msra.mxu0 0
        %653 = vmatprep.subr.bf16.mxu0 0
        %654 = vmatpush1.bf16.msra.mxu0 0
        %655 = vmatprep.subr.bf16.mxu0 0
        %656 = vmatpush1.bf16.msra.mxu0 0
        %657 = vmatprep.subr.bf16.mxu0 0
        %658 = vmatpush1.bf16.msra.mxu0 0
        %659 = vmatprep.subr.bf16.mxu0 0
        %660 = vmatpush1.bf16.msra.mxu0 0
        %661 = vmatprep.subr.bf16.mxu0 0
        %662 = vmatpush1.bf16.msra.mxu0 0
        %663 = vmatprep.subr.bf16.mxu0 0
        %664 = vmatpush1.bf16.msra.mxu0 0
        %665 = vmatprep.subr.bf16.mxu0 0
        %666 = vmatpush1.bf16.msra.mxu0 0
        %667 = vmatprep.mubr.bf16.mxu0 0
        %668 = vmatmul.mubr.bf16.gmra.mrb[0].mxu0 %v633
        %v669 = vpop.f32.mrb[0].mxu0
        %v670 = vadd.f32 0.0, %v669
        %v671 = vpop.f32.mrb[0].mxu0
        %v672 = vpop.f32.mrb[0].mxu0
        %v673 = vadd.f32 0.0, %v672
        %v674 = vpop.f32.mrb[0].mxu0
        %675 = vdwg.mxu0
        %v676 = vpack.c.bf16 %v673, %v670
        %v678 = vsel %vm435, %v676, 0
        %vm680 = vcmask 1043456
        %v682 = vsel %vm680, %v432, 0
        %684 = vmatprep.subr.bf16.mxu0 0
        %685 = vmatpush1.bf16.msra.mxu0 %v682
        %686 = vmatprep.subr.bf16.mxu0 0
        %687 = vmatpush1.bf16.msra.mxu0 0
        %688 = vmatprep.subr.bf16.mxu0 0
        %689 = vmatpush1.bf16.msra.mxu0 0
        %690 = vmatprep.subr.bf16.mxu0 0
        %691 = vmatpush1.bf16.msra.mxu0 0
        %692 = vmatprep.subr.bf16.mxu0 0
        %693 = vmatpush1.bf16.msra.mxu0 0
        %694 = vmatprep.subr.bf16.mxu0 0
        %695 = vmatpush1.bf16.msra.mxu0 0
        %696 = vmatprep.subr.bf16.mxu0 0
        %697 = vmatpush1.bf16.msra.mxu0 0
        %698 = vmatprep.subr.bf16.mxu0 0
        %699 = vmatpush1.bf16.msra.mxu0 0
        %700 = vmatprep.subr.bf16.mxu0 0
        %701 = vmatpush1.bf16.msra.mxu0 0
        %702 = vmatprep.subr.bf16.mxu0 0
        %703 = vmatpush1.bf16.msra.mxu0 0
        %704 = vmatprep.subr.bf16.mxu0 0
        %705 = vmatpush1.bf16.msra.mxu0 0
        %706 = vmatprep.subr.bf16.mxu0 0
        %707 = vmatpush1.bf16.msra.mxu0 0
        %708 = vmatprep.subr.bf16.mxu0 0
        %709 = vmatpush1.bf16.msra.mxu0 0
        %710 = vmatprep.subr.bf16.mxu0 0
        %711 = vmatpush1.bf16.msra.mxu0 0
        %712 = vmatprep.subr.bf16.mxu0 0
        %713 = vmatpush1.bf16.msra.mxu0 0
        %714 = vmatprep.subr.bf16.mxu0 0
        %715 = vmatpush1.bf16.msra.mxu0 0
        %716 = vmatprep.mubr.bf16.mxu0 0
        %717 = vmatmul.mubr.bf16.gmra.mrb[0].mxu0 %v678
        %v718 = vpop.f32.mrb[0].mxu0
        %v719 = vadd.f32 0.0, %v718
        %v720 = vpop.f32.mrb[0].mxu0
        %v721 = vpop.f32.mrb[0].mxu0
        %v722 = vadd.f32 0.0, %v721
        %v723 = vpop.f32.mrb[0].mxu0
        %724 = vdwg.mxu0
        %v726 = vsel %vm435, %v551, 0
        %v729 = vsel %vm680, %v431, 0
        %731 = vmatprep.subr.bf16.mxu0 0
        %732 = vmatpush1.bf16.msra.mxu0 %v729
        %733 = vmatprep.subr.bf16.mxu0 0
        %734 = vmatpush1.bf16.msra.mxu0 0
        %735 = vmatprep.subr.bf16.mxu0 0
        %736 = vmatpush1.bf16.msra.mxu0 0
        %737 = vmatprep.subr.bf16.mxu0 0
        %738 = vmatpush1.bf16.msra.mxu0 0
        %739 = vmatprep.subr.bf16.mxu0 0
        %740 = vmatpush1.bf16.msra.mxu0 0
        %741 = vmatprep.subr.bf16.mxu0 0
        %742 = vmatpush1.bf16.msra.mxu0 0
        %743 = vmatprep.subr.bf16.mxu0 0
        %744 = vmatpush1.bf16.msra.mxu0 0
        %745 = vmatprep.subr.bf16.mxu0 0
        %746 = vmatpush1.bf16.msra.mxu0 0
        %747 = vmatprep.subr.bf16.mxu0 0
        %748 = vmatpush1.bf16.msra.mxu0 0
        %749 = vmatprep.subr.bf16.mxu0 0
        %750 = vmatpush1.bf16.msra.mxu0 0
        %751 = vmatprep.subr.bf16.mxu0 0
        %752 = vmatpush1.bf16.msra.mxu0 0
        %753 = vmatprep.subr.bf16.mxu0 0
        %754 = vmatpush1.bf16.msra.mxu0 0
        %755 = vmatprep.subr.bf16.mxu0 0
        %756 = vmatpush1.bf16.msra.mxu0 0
        %757 = vmatprep.subr.bf16.mxu0 0
        %758 = vmatpush1.bf16.msra.mxu0 0
        %759 = vmatprep.subr.bf16.mxu0 0
        %760 = vmatpush1.bf16.msra.mxu0 0
        %761 = vmatprep.subr.bf16.mxu0 0
        %762 = vmatpush1.bf16.msra.mxu0 0
        %763 = vmatprep.mubr.bf16.mxu0 0
        %764 = vmatmul.mubr.bf16.gmra.mrb[0].mxu0 %v726
        %v765 = vpop.f32.mrb[0].mxu0
        %v766 = vadd.f32 %v719, %v765
        %v767 = vpop.f32.mrb[0].mxu0
        %v768 = vpop.f32.mrb[0].mxu0
        %v769 = vadd.f32 %v722, %v768
        %v770 = vpop.f32.mrb[0].mxu0
        %771 = vdwg.mxu0
        %772 = vrot.lane.b32.xlu0 %v427, 112
        %v773 = vpop.permute.xlu0 %772
        %774 = vrot.lane.b32.xlu0 %v428, 112
        %v775 = vpop.permute.xlu0 %774
        %v777 = vsel %vm435, %v773, 0
        %v780 = vsel %vm435, %v775, 0
        %782 = vmatprep.subr.bf16.mxu0 0
        %783 = vmatpush1.bf16.xpose.msra.mxu0 %v780
        %784 = vmatprep.subr.bf16.mxu0 0
        %785 = vmatpush1.bf16.xpose.msra.mxu0 0
        %786 = vmatprep.subr.bf16.mxu0 0
        %787 = vmatpush1.bf16.xpose.msra.mxu0 0
        %788 = vmatprep.subr.bf16.mxu0 0
        %789 = vmatpush1.bf16.xpose.msra.mxu0 0
        %790 = vmatprep.subr.bf16.mxu0 0
        %791 = vmatpush1.bf16.xpose.msra.mxu0 0
        %792 = vmatprep.subr.bf16.mxu0 0
        %793 = vmatpush1.bf16.xpose.msra.mxu0 0
        %794 = vmatprep.subr.bf16.mxu0 0
        %795 = vmatpush1.bf16.xpose.msra.mxu0 0
        %796 = vmatprep.subr.bf16.mxu0 0
        %797 = vmatpush1.bf16.xpose.msra.mxu0 0
        %798 = vmatprep.subr.bf16.mxu0 0
        %799 = vmatpush1.bf16.xpose.msra.mxu0 0
        %800 = vmatprep.subr.bf16.mxu0 0
        %801 = vmatpush1.bf16.xpose.msra.mxu0 0
        %802 = vmatprep.subr.bf16.mxu0 0
        %803 = vmatpush1.bf16.xpose.msra.mxu0 0
        %804 = vmatprep.subr.bf16.mxu0 0
        %805 = vmatpush1.bf16.xpose.msra.mxu0 0
        %806 = vmatprep.subr.bf16.mxu0 0
        %807 = vmatpush1.bf16.xpose.msra.mxu0 0
        %808 = vmatprep.subr.bf16.mxu0 0
        %809 = vmatpush1.bf16.xpose.msra.mxu0 0
        %810 = vmatprep.subr.bf16.mxu0 0
        %811 = vmatpush1.bf16.xpose.msra.mxu0 0
        %812 = vmatprep.subr.bf16.mxu0 0
        %813 = vmatpush1.bf16.xpose.msra.mxu0 0
        %814 = vmatprep.mubr.bf16.mxu0 0
        %815 = vmatmul.mubr.bf16.gmra.mrb[0].mxu0 %v777
        %v816 = vpop.f32.mrb[0].mxu0
        %v817 = vadd.f32 0.0, %v816
        %v818 = vpop.f32.mrb[0].mxu0
        %v819 = vpop.f32.mrb[0].mxu0
        %v820 = vadd.f32 0.0, %v819
        %v821 = vpop.f32.mrb[0].mxu0
        %822 = vdwg.mxu0
        %v823 = vsel %vm483, %v817, -inf
        %824 = vmax.xlane.f32.xlu0 %v823
        %v825 = vpop.xlane.xlu0 %824
        %v826 = vsel %vm483, %v820, -inf
        %827 = vmax.xlane.f32.xlu0 %v826
        %v828 = vpop.xlane.xlu0 %827
        %v829 = vsub.f32 %v817, %v825
        %v830 = vsub.f32 %v820, %v828
        %v831 = vmul.f32 %v829, 1.442695
        %v832 = vpow.pop %v831
        %v833 = vmul.f32 %v830, 1.442695
        %v834 = vpow.pop %v833
        %v835 = vsel %vm483, %v832, 0.0
        %836 = vadd.xlane.f32.xlu0 %v835
        %v837 = vpop.xlane.xlu0 %836
        %v838 = vsel %vm483, %v834, 0.0
        %839 = vadd.xlane.f32.xlu0 %v838
        %v840 = vpop.xlane.xlu0 %839
        %v841 = vrcp.pop %v837
        %v842 = vrcp.pop %v840
        %v843 = vmul.f32 %v832, %v841
        %v844 = vmul.f32 %v834, %v842
        %v845 = vpack.c.bf16 %v844, %v843
        %846 = vrot.lane.b32.xlu0 %v429, 112
        %v847 = vpop.permute.xlu0 %846
        %v850 = vsel %vm483, %v845, 0
        %852 = vmatprep.subr.bf16.mxu0 0
        %853 = vmatpush1.bf16.msra.mxu0 %v847
        %854 = vmatprep.subr.bf16.mxu0 0
        %855 = vmatpush1.bf16.msra.mxu0 0
        %856 = vmatprep.subr.bf16.mxu0 0
        %857 = vmatpush1.bf16.msra.mxu0 0
        %858 = vmatprep.subr.bf16.mxu0 0
        %859 = vmatpush1.bf16.msra.mxu0 0
        %860 = vmatprep.subr.bf16.mxu0 0
        %861 = vmatpush1.bf16.msra.mxu0 0
        %862 = vmatprep.subr.bf16.mxu0 0
        %863 = vmatpush1.bf16.msra.mxu0 0
        %864 = vmatprep.subr.bf16.mxu0 0
        %865 = vmatpush1.bf16.msra.mxu0 0
        %866 = vmatprep.subr.bf16.mxu0 0
        %867 = vmatpush1.bf16.msra.mxu0 0
        %868 = vmatprep.subr.bf16.mxu0 0
        %869 = vmatpush1.bf16.msra.mxu0 0
        %870 = vmatprep.subr.bf16.mxu0 0
        %871 = vmatpush1.bf16.msra.mxu0 0
        %872 = vmatprep.subr.bf16.mxu0 0
        %873 = vmatpush1.bf16.msra.mxu0 0
        %874 = vmatprep.subr.bf16.mxu0 0
        %875 = vmatpush1.bf16.msra.mxu0 0
        %876 = vmatprep.subr.bf16.mxu0 0
        %877 = vmatpush1.bf16.msra.mxu0 0
        %878 = vmatprep.subr.bf16.mxu0 0
        %879 = vmatpush1.bf16.msra.mxu0 0
        %880 = vmatprep.subr.bf16.mxu0 0
        %881 = vmatpush1.bf16.msra.mxu0 0
        %882 = vmatprep.subr.bf16.mxu0 0
        %883 = vmatpush1.bf16.msra.mxu0 0
        %884 = vmatprep.mubr.bf16.mxu0 0
        %885 = vmatmul.mubr.bf16.gmra.mrb[0].mxu0 %v850
        %v886 = vpop.f32.mrb[0].mxu0
        %v887 = vadd.f32 0.0, %v886
        %v888 = vpop.f32.mrb[0].mxu0
        %v889 = vpop.f32.mrb[0].mxu0
        %v890 = vadd.f32 0.0, %v889
        %v891 = vpop.f32.mrb[0].mxu0
        %892 = vdwg.mxu0
        %v893 = vpack.c.bf16 %v890, %v887
        %v895 = vsel %vm435, %v893, 0
        %v898 = vsel %vm680, %v433, 0
        %900 = vmatprep.subr.bf16.mxu0 0
        %901 = vmatpush1.bf16.msra.mxu0 %v898
        %902 = vmatprep.subr.bf16.mxu0 0
        %903 = vmatpush1.bf16.msra.mxu0 0
        %904 = vmatprep.subr.bf16.mxu0 0
        %905 = vmatpush1.bf16.msra.mxu0 0
        %906 = vmatprep.subr.bf16.mxu0 0
        %907 = vmatpush1.bf16.msra.mxu0 0
        %908 = vmatprep.subr.bf16.mxu0 0
        %909 = vmatpush1.bf16.msra.mxu0 0
        %910 = vmatprep.subr.bf16.mxu0 0
        %911 = vmatpush1.bf16.msra.mxu0 0
        %912 = vmatprep.subr.bf16.mxu0 0
        %913 = vmatpush1.bf16.msra.mxu0 0
        %914 = vmatprep.subr.bf16.mxu0 0
        %915 = vmatpush1.bf16.msra.mxu0 0
        %916 = vmatprep.subr.bf16.mxu0 0
        %917 = vmatpush1.bf16.msra.mxu0 0
        %918 = vmatprep.subr.bf16.mxu0 0
        %919 = vmatpush1.bf16.msra.mxu0 0
        %920 = vmatprep.subr.bf16.mxu0 0
        %921 = vmatpush1.bf16.msra.mxu0 0
        %922 = vmatprep.subr.bf16.mxu0 0
        %923 = vmatpush1.bf16.msra.mxu0 0
        %924 = vmatprep.subr.bf16.mxu0 0
        %925 = vmatpush1.bf16.msra.mxu0 0
        %926 = vmatprep.subr.bf16.mxu0 0
        %927 = vmatpush1.bf16.msra.mxu0 0
        %928 = vmatprep.subr.bf16.mxu0 0
        %929 = vmatpush1.bf16.msra.mxu0 0
        %930 = vmatprep.subr.bf16.mxu0 0
        %931 = vmatpush1.bf16.msra.mxu0 0
        %932 = vmatprep.mubr.bf16.mxu0 0
        %933 = vmatmul.mubr.bf16.gmra.mrb[0].mxu0 %v895
        %v934 = vpop.f32.mrb[0].mxu0
        %v935 = vadd.f32 0.0, %v934
        %v936 = vpop.f32.mrb[0].mxu0
        %v937 = vpop.f32.mrb[0].mxu0
        %v938 = vadd.f32 0.0, %v937
        %v939 = vpop.f32.mrb[0].mxu0
        %940 = vdwg.mxu0
        %v941 = vadd.f32 %v766, %v935
        %v942 = vadd.f32 %v769, %v938
        %943 = vrot.lane.b32.xlu0 %v427, 104
        %v944 = vpop.permute.xlu0 %943
        %945 = vrot.lane.b32.xlu0 %v428, 104
        %v946 = vpop.permute.xlu0 %945
        %v948 = vsel %vm435, %v944, 0
        %v951 = vsel %vm435, %v946, 0
        %953 = vmatprep.subr.bf16.mxu0 0
        %954 = vmatpush1.bf16.xpose.msra.mxu0 %v951
        %955 = vmatprep.subr.bf16.mxu0 0
        %956 = vmatpush1.bf16.xpose.msra.mxu0 0
        %957 = vmatprep.subr.bf16.mxu0 0
        %958 = vmatpush1.bf16.xpose.msra.mxu0 0
        %959 = vmatprep.subr.bf16.mxu0 0
        %960 = vmatpush1.bf16.xpose.msra.mxu0 0
        %961 = vmatprep.subr.bf16.mxu0 0
        %962 = vmatpush1.bf16.xpose.msra.mxu0 0
        %963 = vmatprep.subr.bf16.mxu0 0
        %964 = vmatpush1.bf16.xpose.msra.mxu0 0
        %965 = vmatprep.subr.bf16.mxu0 0
        %966 = vmatpush1.bf16.xpose.msra.mxu0 0
        %967 = vmatprep.subr.bf16.mxu0 0
        %968 = vmatpush1.bf16.xpose.msra.mxu0 0
        %969 = vmatprep.subr.bf16.mxu0 0
        %970 = vmatpush1.bf16.xpose.msra.mxu0 0
        %971 = vmatprep.subr.bf16.mxu0 0
        %972 = vmatpush1.bf16.xpose.msra.mxu0 0
        %973 = vmatprep.subr.bf16.mxu0 0
        %974 = vmatpush1.bf16.xpose.msra.mxu0 0
        %975 = vmatprep.subr.bf16.mxu0 0
        %976 = vmatpush1.bf16.xpose.msra.mxu0 0
        %977 = vmatprep.subr.bf16.mxu0 0
        %978 = vmatpush1.bf16.xpose.msra.mxu0 0
        %979 = vmatprep.subr.bf16.mxu0 0
        %980 = vmatpush1.bf16.xpose.msra.mxu0 0
        %981 = vmatprep.subr.bf16.mxu0 0
        %982 = vmatpush1.bf16.xpose.msra.mxu0 0
        %983 = vmatprep.subr.bf16.mxu0 0
        %984 = vmatpush1.bf16.xpose.msra.mxu0 0
        %985 = vmatprep.mubr.bf16.mxu0 0
        %986 = vmatmul.mubr.bf16.gmra.mrb[0].mxu0 %v948
        %v987 = vpop.f32.mrb[0].mxu0
        %v988 = vadd.f32 0.0, %v987
        %v989 = vpop.f32.mrb[0].mxu0
        %v990 = vpop.f32.mrb[0].mxu0
        %v991 = vadd.f32 0.0, %v990
        %v992 = vpop.f32.mrb[0].mxu0
        %993 = vdwg.mxu0
        %v994 = vsel %vm483, %v988, -inf
        %995 = vmax.xlane.f32.xlu0 %v994
        %v996 = vpop.xlane.xlu0 %995
        %v997 = vsel %vm483, %v991, -inf
        %998 = vmax.xlane.f32.xlu0 %v997
        %v999 = vpop.xlane.xlu0 %998
        %v1000 = vsub.f32 %v988, %v996
        %v1001 = vsub.f32 %v991, %v999
        %v1002 = vmul.f32 %v1000, 1.442695
        %v1003 = vpow.pop %v1002
        %v1004 = vmul.f32 %v1001, 1.442695
        %v1005 = vpow.pop %v1004
        %v1006 = vsel %vm483, %v1003, 0.0
        %1007 = vadd.xlane.f32.xlu0 %v1006
        %v1008 = vpop.xlane.xlu0 %1007
        %v1009 = vsel %vm483, %v1005, 0.0
        %1010 = vadd.xlane.f32.xlu0 %v1009
        %v1011 = vpop.xlane.xlu0 %1010
        %v1012 = vrcp.pop %v1008
        %v1013 = vrcp.pop %v1011
        %v1014 = vmul.f32 %v1003, %v1012
        %v1015 = vmul.f32 %v1005, %v1013
        %v1016 = vpack.c.bf16 %v1015, %v1014
        %1017 = vrot.lane.b32.xlu0 %v429, 104
        %v1018 = vpop.permute.xlu0 %1017
        %v1021 = vsel %vm483, %v1016, 0
        %1023 = vmatprep.subr.bf16.mxu0 0
        %1024 = vmatpush1.bf16.msra.mxu0 %v1018
        %1025 = vmatprep.subr.bf16.mxu0 0
        %1026 = vmatpush1.bf16.msra.mxu0 0
        %1027 = vmatprep.subr.bf16.mxu0 0
        %1028 = vmatpush1.bf16.msra.mxu0 0
        %1029 = vmatprep.subr.bf16.mxu0 0
        %1030 = vmatpush1.bf16.msra.mxu0 0
        %1031 = vmatprep.subr.bf16.mxu0 0
        %1032 = vmatpush1.bf16.msra.mxu0 0
        %1033 = vmatprep.subr.bf16.mxu0 0
        %1034 = vmatpush1.bf16.msra.mxu0 0
        %1035 = vmatprep.subr.bf16.mxu0 0
        %1036 = vmatpush1.bf16.msra.mxu0 0
        %1037 = vmatprep.subr.bf16.mxu0 0
        %1038 = vmatpush1.bf16.msra.mxu0 0
        %1039 = vmatprep.subr.bf16.mxu0 0
        %1040 = vmatpush1.bf16.msra.mxu0 0
        %1041 = vmatprep.subr.bf16.mxu0 0
        %1042 = vmatpush1.bf16.msra.mxu0 0
        %1043 = vmatprep.subr.bf16.mxu0 0
        %1044 = vmatpush1.bf16.msra.mxu0 0
        %1045 = vmatprep.subr.bf16.mxu0 0
        %1046 = vmatpush1.bf16.msra.mxu0 0
        %1047 = vmatprep.subr.bf16.mxu0 0
        %1048 = vmatpush1.bf16.msra.mxu0 0
        %1049 = vmatprep.subr.bf16.mxu0 0
        %1050 = vmatpush1.bf16.msra.mxu0 0
        %1051 = vmatprep.subr.bf16.mxu0 0
        %1052 = vmatpush1.bf16.msra.mxu0 0
        %1053 = vmatprep.subr.bf16.mxu0 0
        %1054 = vmatpush1.bf16.msra.mxu0 0
        %1055 = vmatprep.mubr.bf16.mxu0 0
        %1056 = vmatmul.mubr.bf16.gmra.mrb[0].mxu0 %v1021
        %v1057 = vpop.f32.mrb[0].mxu0
        %v1058 = vadd.f32 0.0, %v1057
        %v1059 = vpop.f32.mrb[0].mxu0
        %v1060 = vpop.f32.mrb[0].mxu0
        %v1061 = vadd.f32 0.0, %v1060
        %v1062 = vpop.f32.mrb[0].mxu0
        %1063 = vdwg.mxu0
        %v1064 = vpack.c.bf16 %v1061, %v1058
        %v1066 = vsel %vm435, %v1064, 0
        %v1069 = vsel %vm680, %v434, 0
        %1071 = vmatprep.subr.bf16.mxu0 0
        %1072 = vmatpush1.bf16.msra.mxu0 %v1069
        %1073 = vmatprep.subr.bf16.mxu0 0
        %1074 = vmatpush1.bf16.msra.mxu0 0
        %1075 = vmatprep.subr.bf16.mxu0 0
        %1076 = vmatpush1.bf16.msra.mxu0 0
        %1077 = vmatprep.subr.bf16.mxu0 0
        %1078 = vmatpush1.bf16.msra.mxu0 0
        %1079 = vmatprep.subr.bf16.mxu0 0
        %1080 = vmatpush1.bf16.msra.mxu0 0
        %1081 = vmatprep.subr.bf16.mxu0 0
        %1082 = vmatpush1.bf16.msra.mxu0 0
        %1083 = vmatprep.subr.bf16.mxu0 0
        %1084 = vmatpush1.bf16.msra.mxu0 0
        %1085 = vmatprep.subr.bf16.mxu0 0
        %1086 = vmatpush1.bf16.msra.mxu0 0
        %1087 = vmatprep.subr.bf16.mxu0 0
        %1088 = vmatpush1.bf16.msra.mxu0 0
        %1089 = vmatprep.subr.bf16.mxu0 0
        %1090 = vmatpush1.bf16.msra.mxu0 0
        %1091 = vmatprep.subr.bf16.mxu0 0
        %1092 = vmatpush1.bf16.msra.mxu0 0
        %1093 = vmatprep.subr.bf16.mxu0 0
        %1094 = vmatpush1.bf16.msra.mxu0 0
        %1095 = vmatprep.subr.bf16.mxu0 0
        %1096 = vmatpush1.bf16.msra.mxu0 0
        %1097 = vmatprep.subr.bf16.mxu0 0
        %1098 = vmatpush1.bf16.msra.mxu0 0
        %1099 = vmatprep.subr.bf16.mxu0 0
        %1100 = vmatpush1.bf16.msra.mxu0 0
        %1101 = vmatprep.subr.bf16.mxu0 0
        %1102 = vmatpush1.bf16.msra.mxu0 0
        %1103 = vmatprep.mubr.bf16.mxu0 0
        %1104 = vmatmul.mubr.bf16.gmra.mrb[0].mxu0 %v1066
        %v1105 = vpop.f32.mrb[0].mxu0
        %v1106 = vadd.f32 0.0, %v1105
        %v1107 = vpop.f32.mrb[0].mxu0
        %v1108 = vpop.f32.mrb[0].mxu0
        %v1109 = vadd.f32 0.0, %v1108
        %v1110 = vpop.f32.mrb[0].mxu0
        %1111 = vdwg.mxu0
        %v1112 = vadd.f32 %v941, %v1106
        %v1113 = vadd.f32 %v942, %v1109
        %s1114 = scalar_lea.vmem [#allocation7], 3
        %v1115 = vld [vmem:[%s1114] sm:$0x1]
        %v1117 = vlaneseq
        %v1118 = vshrl.u32 %v1117, 7
        %v1119 = vsub.s32 0, %v1118
        %v1120 = vrot.slane %v1115, %v1119
        %v1122 = vadd.f32 %v1112, %v1120
        %v1123 = vadd.f32 %v1113, %v1120
        %v1124 = vmul.f32 %v1122, 0.5
        %v1125 = vmul.f32 %v1123, 0.5
        %v1126 = vmul.f32 %v1122, 0.70710677
        %v1127 = vmul.f32 %v1123, 0.70710677
        %vm1128 = vcmp.ge.f32.partialorder %v1126, 0.0
        %vm1129 = vcmp.ge.f32.partialorder %v1127, 0.0
        %v1130 = vsel %vm1128, 1.0, -1.0
        %v1131 = vsel %vm1129, 1.0, -1.0
        %v1132 = vand.u32 2147483647, %v1126
        %v1133 = vand.u32 2147483647, %v1127
        %v1134 = vmul.f32 %v1132, 0.3275911
        %v1135 = vmul.f32 %v1133, 0.3275911
        %v1136 = vadd.f32 %v1134, 1.0
        %v1137 = vadd.f32 %v1135, 1.0
        %v1138 = vrcp.pop %v1136
        %v1139 = vrcp.pop %v1137
        %v1140 = vmul.f32 %v1138, 1.0614054
        %v1141 = vmul.f32 %v1139, 1.0614054
        %v1142 = vadd.f32 %v1140, -1.4531521
        %v1143 = vadd.f32 %v1141, -1.4531521
        %v1144 = vmul.f32 %v1142, %v1138
        %v1145 = vmul.f32 %v1143, %v1139
        %v1146 = vadd.f32 %v1144, 1.4214138
        %v1147 = vadd.f32 %v1145, 1.4214138
        %v1148 = vmul.f32 %v1146, %v1138
        %v1149 = vmul.f32 %v1147, %v1139
        %v1150 = vadd.f32 %v1148, -0.28449672
        %v1151 = vadd.f32 %v1149, -0.28449672
        %v1152 = vmul.f32 %v1150, %v1138
        %v1153 = vmul.f32 %v1151, %v1139
        %v1154 = vadd.f32 %v1152, 0.2548296
        %v1155 = vadd.f32 %v1153, 0.2548296
        %v1156 = vmul.f32 %v1154, %v1138
        %v1157 = vmul.f32 %v1155, %v1139
        %v1158 = vsub.f32 0.0, %v1132
        %v1159 = vsub.f32 0.0, %v1133
        %v1160 = vmul.f32 %v1158, %v1132
        %v1161 = vmul.f32 %v1159, %v1133
        %v1162 = vmul.f32 %v1160, 1.442695
        %v1163 = vpow.pop %v1162
        %v1164 = vmul.f32 %v1161, 1.442695
        %v1165 = vpow.pop %v1164
        %v1166 = vmul.f32 %v1156, %v1163
        %v1167 = vmul.f32 %v1157, %v1165
        %v1168 = vsub.f32 1.0, %v1166
        %v1169 = vsub.f32 1.0, %v1167
        %v1170 = vmul.f32 %v1130, %v1168
        %v1171 = vmul.f32 %v1131, %v1169
        %v1172 = vadd.f32 %v1170, 1.0
        %v1173 = vadd.f32 %v1171, 1.0
        %v1174 = vmul.f32 %v1124, %v1172
        %v1175 = vmul.f32 %v1125, %v1173
        %v1176 = vsub.f32 %v220, %v1174
        %v1177 = vsub.f32 %v221, %v1175
        %v1178 = vpack.c.bf16 %v1177, %v1176
        %s1179 = scalar_lea.vmem [#allocation5], 64
        %v1180 = vld [vmem:[%s1179] sm:$0xf]
        %v1181 = vld [vmem:[%s1179 + $0x4] sm:$0xf]
        %v1182 = vld [vmem:[%s1179 + $0x8] sm:$0xf]
        %v1183 = vld [vmem:[%s1179 + $0xc] sm:$0xf]
        %s1184 = scalar_lea.vmem [#allocation7], 4
        %v1185 = vld [vmem:[%s1184] sm:$0x1]
        %v1187 = vlaneseq
        %v1188 = vshrl.u32 %v1187, 7
        %v1189 = vsub.s32 0, %v1188
        %v1190 = vrot.slane %v1185, %v1189
        %v1196 = vunpack.c.l.b16 %v1180
        %v1197 = vunpack.c.l.b16 %v1181
        %v1198 = vunpack.c.l.b16 %v1182
        %v1199 = vunpack.c.l.b16 %v1183
        %v1200 = vpack.c.b16 %v1197, %v1196
        %v1201 = vpack.c.b16 %v1199, %v1198
        %1204 = vmatprep.subr.bf16.mxu0 0
        %1205 = vmatpush1.bf16.msra.mxu0 %v1200
        %1206 = vmatprep.subr.bf16.mxu0 0
        %1207 = vmatpush1.bf16.msra.mxu0 %v1201
        %1208 = vmatprep.subr.bf16.mxu0 0
        %1209 = vmatpush1.bf16.msra.mxu0 0
        %1210 = vmatprep.subr.bf16.mxu0 0
        %1211 = vmatpush1.bf16.msra.mxu0 0
        %1212 = vmatprep.subr.bf16.mxu0 0
        %1213 = vmatpush1.bf16.msra.mxu0 0
        %1214 = vmatprep.subr.bf16.mxu0 0
        %1215 = vmatpush1.bf16.msra.mxu0 0
        %1216 = vmatprep.subr.bf16.mxu0 0
        %1217 = vmatpush1.bf16.msra.mxu0 0
        %1218 = vmatprep.subr.bf16.mxu0 0
        %1219 = vmatpush1.bf16.msra.mxu0 0
        %1220 = vmatprep.subr.bf16.mxu0 0
        %1221 = vmatpush1.bf16.msra.mxu0 0
        %1222 = vmatprep.subr.bf16.mxu0 0
        %1223 = vmatpush1.bf16.msra.mxu0 0
        %1224 = vmatprep.subr.bf16.mxu0 0
        %1225 = vmatpush1.bf16.msra.mxu0 0
        %1226 = vmatprep.subr.bf16.mxu0 0
        %1227 = vmatpush1.bf16.msra.mxu0 0
        %1228 = vmatprep.subr.bf16.mxu0 0
        %1229 = vmatpush1.bf16.msra.mxu0 0
        %1230 = vmatprep.subr.bf16.mxu0 0
        %1231 = vmatpush1.bf16.msra.mxu0 0
        %1232 = vmatprep.subr.bf16.mxu0 0
        %1233 = vmatpush1.bf16.msra.mxu0 0
        %1234 = vmatprep.subr.bf16.mxu0 0
        %1235 = vmatpush1.bf16.msra.mxu0 0
        %1236 = vmatprep.mubr.bf16.mxu0 0
        %1237 = vmatmul.mubr.bf16.gmra.mrb[0].mxu0 %v318
        %v1238 = vpop.f32.mrb[0].mxu0
        %v1239 = vadd.f32 %v1190, %v1238
        %v1240 = vpop.f32.mrb[0].mxu0
        %v1241 = vpop.f32.mrb[0].mxu0
        %v1242 = vadd.f32 %v1190, %v1241
        %v1243 = vpop.f32.mrb[0].mxu0
        %1244 = vdwg.mxu0
        %s1245 = scalar_lea.vmem [#allocation5], 80
        %v1246 = vld [vmem:[%s1245] sm:$0xf]
        %v1247 = vld [vmem:[%s1245 + $0x4] sm:$0xf]
        %v1248 = vld [vmem:[%s1245 + $0x8] sm:$0xf]
        %v1249 = vld [vmem:[%s1245 + $0xc] sm:$0xf]
        %s1250 = scalar_lea.vmem [#allocation7], 5
        %v1251 = vld [vmem:[%s1250] sm:$0x1]
        %v1253 = vlaneseq
        %v1254 = vshrl.u32 %v1253, 7
        %v1255 = vsub.s32 0, %v1254
        %v1256 = vrot.slane %v1251, %v1255
        %v1262 = vunpack.c.l.b16 %v1246
        %v1263 = vunpack.c.l.b16 %v1247
        %v1264 = vunpack.c.l.b16 %v1248
        %v1265 = vunpack.c.l.b16 %v1249
        %v1266 = vpack.c.b16 %v1263, %v1262
        %v1267 = vpack.c.b16 %v1265, %v1264
        %v1271 = vsel %vm247, %v1178, 0
        %1273 = vmatprep.subr.bf16.mxu0 0
        %1274 = vmatpush1.bf16.msra.mxu0 %v1266
        %1275 = vmatprep.subr.bf16.mxu0 0
        %1276 = vmatpush1.bf16.msra.mxu0 %v1267
        %1277 = vmatprep.subr.bf16.mxu0 0
        %1278 = vmatpush1.bf16.msra.mxu0 0
        %1279 = vmatprep.subr.bf16.mxu0 0
        %1280 = vmatpush1.bf16.msra.mxu0 0
        %1281 = vmatprep.subr.bf16.mxu0 0
        %1282 = vmatpush1.bf16.msra.mxu0 0
        %1283 = vmatprep.subr.bf16.mxu0 0
        %1284 = vmatpush1.bf16.msra.mxu0 0
        %1285 = vmatprep.subr.bf16.mxu0 0
        %1286 = vmatpush1.bf16.msra.mxu0 0
        %1287 = vmatprep.subr.bf16.mxu0 0
        %1288 = vmatpush1.bf16.msra.mxu0 0
        %1289 = vmatprep.subr.bf16.mxu0 0
        %1290 = vmatpush1.bf16.msra.mxu0 0
        %1291 = vmatprep.subr.bf16.mxu0 0
        %1292 = vmatpush1.bf16.msra.mxu0 0
        %1293 = vmatprep.subr.bf16.mxu0 0
        %1294 = vmatpush1.bf16.msra.mxu0 0
        %1295 = vmatprep.subr.bf16.mxu0 0
        %1296 = vmatpush1.bf16.msra.mxu0 0
        %1297 = vmatprep.subr.bf16.mxu0 0
        %1298 = vmatpush1.bf16.msra.mxu0 0
        %1299 = vmatprep.subr.bf16.mxu0 0
        %1300 = vmatpush1.bf16.msra.mxu0 0
        %1301 = vmatprep.subr.bf16.mxu0 0
        %1302 = vmatpush1.bf16.msra.mxu0 0
        %1303 = vmatprep.subr.bf16.mxu0 0
        %1304 = vmatpush1.bf16.msra.mxu0 0
        %1305 = vmatprep.mubr.bf16.mxu0 0
        %1306 = vmatmul.mubr.bf16.gmra.mrb[0].mxu0 %v1271
        %v1307 = vpop.f32.mrb[0].mxu0
        %v1308 = vadd.f32 %v1256, %v1307
        %v1309 = vpop.f32.mrb[0].mxu0
        %v1310 = vpop.f32.mrb[0].mxu0
        %v1311 = vadd.f32 %v1256, %v1310
        %v1312 = vpop.f32.mrb[0].mxu0
        %1313 = vdwg.mxu0
        %s1314 = scalar_lea.vmem [#allocation5], 96
        %v1315 = vld [vmem:[%s1314] sm:$0xf]
        %v1316 = vld [vmem:[%s1314 + $0x4] sm:$0xf]
        %v1317 = vld [vmem:[%s1314 + $0x8] sm:$0xf]
        %v1318 = vld [vmem:[%s1314 + $0xc] sm:$0xf]
        %s1319 = scalar_lea.vmem [#allocation7], 6
        %v1320 = vld [vmem:[%s1319] sm:$0x1]
        %v1322 = vlaneseq
        %v1323 = vshrl.u32 %v1322, 7
        %v1324 = vsub.s32 0, %v1323
        %v1325 = vrot.slane %v1320, %v1324
        %v1331 = vunpack.c.l.b16 %v1315
        %v1332 = vunpack.c.l.b16 %v1316
        %v1333 = vunpack.c.l.b16 %v1317
        %v1334 = vunpack.c.l.b16 %v1318
        %v1335 = vpack.c.b16 %v1332, %v1331
        %v1336 = vpack.c.b16 %v1334, %v1333
        %1339 = vmatprep.subr.bf16.mxu0 0
        %1340 = vmatpush1.bf16.msra.mxu0 %v1335
        %1341 = vmatprep.subr.bf16.mxu0 0
        %1342 = vmatpush1.bf16.msra.mxu0 %v1336
        %1343 = vmatprep.subr.bf16.mxu0 0
        %1344 = vmatpush1.bf16.msra.mxu0 0
        %1345 = vmatprep.subr.bf16.mxu0 0
        %1346 = vmatpush1.bf16.msra.mxu0 0
        %1347 = vmatprep.subr.bf16.mxu0 0
        %1348 = vmatpush1.bf16.msra.mxu0 0
        %1349 = vmatprep.subr.bf16.mxu0 0
        %1350 = vmatpush1.bf16.msra.mxu0 0
        %1351 = vmatprep.subr.bf16.mxu0 0
        %1352 = vmatpush1.bf16.msra.mxu0 0
        %1353 = vmatprep.subr.bf16.mxu0 0
        %1354 = vmatpush1.bf16.msra.mxu0 0
        %1355 = vmatprep.subr.bf16.mxu0 0
        %1356 = vmatpush1.bf16.msra.mxu0 0
        %1357 = vmatprep.subr.bf16.mxu0 0
        %1358 = vmatpush1.bf16.msra.mxu0 0
        %1359 = vmatprep.subr.bf16.mxu0 0
        %1360 = vmatpush1.bf16.msra.mxu0 0
        %1361 = vmatprep.subr.bf16.mxu0 0
        %1362 = vmatpush1.bf16.msra.mxu0 0
        %1363 = vmatprep.subr.bf16.mxu0 0
        %1364 = vmatpush1.bf16.msra.mxu0 0
        %1365 = vmatprep.subr.bf16.mxu0 0
        %1366 = vmatpush1.bf16.msra.mxu0 0
        %1367 = vmatprep.subr.bf16.mxu0 0
        %1368 = vmatpush1.bf16.msra.mxu0 0
        %1369 = vmatprep.subr.bf16.mxu0 0
        %1370 = vmatpush1.bf16.msra.mxu0 0
        %1371 = vmatprep.mubr.bf16.mxu0 0
        %1372 = vmatmul.mubr.bf16.gmra.mrb[0].mxu0 %v1271
        %v1373 = vpop.f32.mrb[0].mxu0
        %v1374 = vadd.f32 %v1325, %v1373
        %v1375 = vpop.f32.mrb[0].mxu0
        %v1376 = vpop.f32.mrb[0].mxu0
        %v1377 = vadd.f32 %v1325, %v1376
        %v1378 = vpop.f32.mrb[0].mxu0
        %1379 = vdwg.mxu0
        %v1380 = vpack.c.bf16 %v1242, %v1239
        %v1381 = vpack.c.bf16 %v1311, %v1308
        %v1382 = vpack.c.bf16 %v1377, %v1374
        %s1383 = scalar_lea.vmem [#allocation5], 112
        %v1384 = vld [vmem:[%s1383] sm:$0xf]
        %v1385 = vld [vmem:[%s1383 + $0x4] sm:$0xf]
        %v1386 = vld [vmem:[%s1383 + $0x8] sm:$0xf]
        %v1387 = vld [vmem:[%s1383 + $0xc] sm:$0xf]
        %v1389 = vsel %vm435, %v1380, 0
        %v1392 = vsel %vm435, %v1381, 0
        %1394 = vmatprep.subr.bf16.mxu0 0
        %1395 = vmatpush1.bf16.xpose.msra.mxu0 %v1392
        %1396 = vmatprep.subr.bf16.mxu0 0
        %1397 = vmatpush1.bf16.xpose.msra.mxu0 0
        %1398 = vmatprep.subr.bf16.mxu0 0
        %1399 = vmatpush1.bf16.xpose.msra.mxu0 0
        %1400 = vmatprep.subr.bf16.mxu0 0
        %1401 = vmatpush1.bf16.xpose.msra.mxu0 0
        %1402 = vmatprep.subr.bf16.mxu0 0
        %1403 = vmatpush1.bf16.xpose.msra.mxu0 0
        %1404 = vmatprep.subr.bf16.mxu0 0
        %1405 = vmatpush1.bf16.xpose.msra.mxu0 0
        %1406 = vmatprep.subr.bf16.mxu0 0
        %1407 = vmatpush1.bf16.xpose.msra.mxu0 0
        %1408 = vmatprep.subr.bf16.mxu0 0
        %1409 = vmatpush1.bf16.xpose.msra.mxu0 0
        %1410 = vmatprep.subr.bf16.mxu0 0
        %1411 = vmatpush1.bf16.xpose.msra.mxu0 0
        %1412 = vmatprep.subr.bf16.mxu0 0
        %1413 = vmatpush1.bf16.xpose.msra.mxu0 0
        %1414 = vmatprep.subr.bf16.mxu0 0
        %1415 = vmatpush1.bf16.xpose.msra.mxu0 0
        %1416 = vmatprep.subr.bf16.mxu0 0
        %1417 = vmatpush1.bf16.xpose.msra.mxu0 0
        %1418 = vmatprep.subr.bf16.mxu0 0
        %1419 = vmatpush1.bf16.xpose.msra.mxu0 0
        %1420 = vmatprep.subr.bf16.mxu0 0
        %1421 = vmatpush1.bf16.xpose.msra.mxu0 0
        %1422 = vmatprep.subr.bf16.mxu0 0
        %1423 = vmatpush1.bf16.xpose.msra.mxu0 0
        %1424 = vmatprep.subr.bf16.mxu0 0
        %1425 = vmatpush1.bf16.xpose.msra.mxu0 0
        %1426 = vmatprep.mubr.bf16.mxu0 0
        %1427 = vmatmul.mubr.bf16.gmra.mrb[0].mxu0 %v1389
        %v1428 = vpop.f32.mrb[0].mxu0
        %v1429 = vadd.f32 0.0, %v1428
        %v1430 = vpop.f32.mrb[0].mxu0
        %v1431 = vpop.f32.mrb[0].mxu0
        %v1432 = vadd.f32 0.0, %v1431
        %v1433 = vpop.f32.mrb[0].mxu0
        %1434 = vdwg.mxu0
        %v1435 = vsel %vm483, %v1429, -inf
        %1436 = vmax.xlane.f32.xlu0 %v1435
        %v1437 = vpop.xlane.xlu0 %1436
        %v1438 = vsel %vm483, %v1432, -inf
        %1439 = vmax.xlane.f32.xlu0 %v1438
        %v1440 = vpop.xlane.xlu0 %1439
        %v1441 = vsub.f32 %v1429, %v1437
        %v1442 = vsub.f32 %v1432, %v1440
        %v1443 = vmul.f32 %v1441, 1.442695
        %v1444 = vpow.pop %v1443
        %v1445 = vmul.f32 %v1442, 1.442695
        %v1446 = vpow.pop %v1445
        %v1447 = vsel %vm483, %v1444, 0.0
        %1448 = vadd.xlane.f32.xlu0 %v1447
        %v1449 = vpop.xlane.xlu0 %1448
        %v1450 = vsel %vm483, %v1446, 0.0
        %1451 = vadd.xlane.f32.xlu0 %v1450
        %v1452 = vpop.xlane.xlu0 %1451
        %v1453 = vrcp.pop %v1449
        %v1454 = vrcp.pop %v1452
        %v1455 = vmul.f32 %v1444, %v1453
        %v1456 = vmul.f32 %v1446, %v1454
        %v1457 = vpack.c.bf16 %v1456, %v1455
        %v1459 = vsel %vm483, %v1457, 0
        %1461 = vmatprep.subr.bf16.mxu0 0
        %1462 = vmatpush1.bf16.msra.mxu0 %v1382
        %1463 = vmatprep.subr.bf16.mxu0 0
        %1464 = vmatpush1.bf16.msra.mxu0 0
        %1465 = vmatprep.subr.bf16.mxu0 0
        %1466 = vmatpush1.bf16.msra.mxu0 0
        %1467 = vmatprep.subr.bf16.mxu0 0
        %1468 = vmatpush1.bf16.msra.mxu0 0
        %1469 = vmatprep.subr.bf16.mxu0 0
        %1470 = vmatpush1.bf16.msra.mxu0 0
        %1471 = vmatprep.subr.bf16.mxu0 0
        %1472 = vmatpush1.bf16.msra.mxu0 0
        %1473 = vmatprep.subr.bf16.mxu0 0
        %1474 = vmatpush1.bf16.msra.mxu0 0
        %1475 = vmatprep.subr.bf16.mxu0 0
        %1476 = vmatpush1.bf16.msra.mxu0 0
        %1477 = vmatprep.subr.bf16.mxu0 0
        %1478 = vmatpush1.bf16.msra.mxu0 0
        %1479 = vmatprep.subr.bf16.mxu0 0
        %1480 = vmatpush1.bf16.msra.mxu0 0
        %1481 = vmatprep.subr.bf16.mxu0 0
        %1482 = vmatpush1.bf16.msra.mxu0 0
        %1483 = vmatprep.subr.bf16.mxu0 0
        %1484 = vmatpush1.bf16.msra.mxu0 0
        %1485 = vmatprep.subr.bf16.mxu0 0
        %1486 = vmatpush1.bf16.msra.mxu0 0
        %1487 = vmatprep.subr.bf16.mxu0 0
        %1488 = vmatpush1.bf16.msra.mxu0 0
        %1489 = vmatprep.subr.bf16.mxu0 0
        %1490 = vmatpush1.bf16.msra.mxu0 0
        %1491 = vmatprep.subr.bf16.mxu0 0
        %1492 = vmatpush1.bf16.msra.mxu0 0
        %1493 = vmatprep.mubr.bf16.mxu0 0
        %1494 = vmatmul.mubr.bf16.gmra.mrb[0].mxu0 %v1459
        %v1495 = vpop.f32.mrb[0].mxu0
        %v1496 = vadd.f32 0.0, %v1495
        %v1497 = vpop.f32.mrb[0].mxu0
        %v1498 = vpop.f32.mrb[0].mxu0
        %v1499 = vadd.f32 0.0, %v1498
        %v1500 = vpop.f32.mrb[0].mxu0
        %1501 = vdwg.mxu0
        %v1502 = vpack.c.bf16 %v1499, %v1496
        %1504 = vrot.lane.b32.xlu0 %v1380, 120
        %v1505 = vpop.permute.xlu0 %1504
        %1507 = vrot.lane.b32.xlu0 %v1381, 120
        %v1508 = vpop.permute.xlu0 %1507
        %v1510 = vsel %vm435, %v1505, 0
        %v1513 = vsel %vm435, %v1508, 0
        %1515 = vmatprep.subr.bf16.mxu0 0
        %1516 = vmatpush1.bf16.xpose.msra.mxu0 %v1513
        %1517 = vmatprep.subr.bf16.mxu0 0
        %1518 = vmatpush1.bf16.xpose.msra.mxu0 0
        %1519 = vmatprep.subr.bf16.mxu0 0
        %1520 = vmatpush1.bf16.xpose.msra.mxu0 0
        %1521 = vmatprep.subr.bf16.mxu0 0
        %1522 = vmatpush1.bf16.xpose.msra.mxu0 0
        %1523 = vmatprep.subr.bf16.mxu0 0
        %1524 = vmatpush1.bf16.xpose.msra.mxu0 0
        %1525 = vmatprep.subr.bf16.mxu0 0
        %1526 = vmatpush1.bf16.xpose.msra.mxu0 0
        %1527 = vmatprep.subr.bf16.mxu0 0
        %1528 = vmatpush1.bf16.xpose.msra.mxu0 0
        %1529 = vmatprep.subr.bf16.mxu0 0
        %1530 = vmatpush1.bf16.xpose.msra.mxu0 0
        %1531 = vmatprep.subr.bf16.mxu0 0
        %1532 = vmatpush1.bf16.xpose.msra.mxu0 0
        %1533 = vmatprep.subr.bf16.mxu0 0
        %1534 = vmatpush1.bf16.xpose.msra.mxu0 0
        %1535 = vmatprep.subr.bf16.mxu0 0
        %1536 = vmatpush1.bf16.xpose.msra.mxu0 0
        %1537 = vmatprep.subr.bf16.mxu0 0
        %1538 = vmatpush1.bf16.xpose.msra.mxu0 0
        %1539 = vmatprep.subr.bf16.mxu0 0
        %1540 = vmatpush1.bf16.xpose.msra.mxu0 0
        %1541 = vmatprep.subr.bf16.mxu0 0
        %1542 = vmatpush1.bf16.xpose.msra.mxu0 0
        %1543 = vmatprep.subr.bf16.mxu0 0
        %1544 = vmatpush1.bf16.xpose.msra.mxu0 0
        %1545 = vmatprep.subr.bf16.mxu0 0
        %1546 = vmatpush1.bf16.xpose.msra.mxu0 0
        %1547 = vmatprep.mubr.bf16.mxu0 0
        %1548 = vmatmul.mubr.bf16.gmra.mrb[0].mxu0 %v1510
        %v1549 = vpop.f32.mrb[0].mxu0
        %v1550 = vadd.f32 0.0, %v1549
        %v1551 = vpop.f32.mrb[0].mxu0
        %v1552 = vpop.f32.mrb[0].mxu0
        %v1553 = vadd.f32 0.0, %v1552
        %v1554 = vpop.f32.mrb[0].mxu0
        %1555 = vdwg.mxu0
        %v1556 = vsel %vm483, %v1550, -inf
        %1557 = vmax.xlane.f32.xlu0 %v1556
        %v1558 = vpop.xlane.xlu0 %1557
        %v1559 = vsel %vm483, %v1553, -inf
        %1560 = vmax.xlane.f32.xlu0 %v1559
        %v1561 = vpop.xlane.xlu0 %1560
        %v1562 = vsub.f32 %v1550, %v1558
        %v1563 = vsub.f32 %v1553, %v1561
        %v1564 = vmul.f32 %v1562, 1.442695
        %v1565 = vpow.pop %v1564
        %v1566 = vmul.f32 %v1563, 1.442695
        %v1567 = vpow.pop %v1566
        %v1568 = vsel %vm483, %v1565, 0.0
        %1569 = vadd.xlane.f32.xlu0 %v1568
        %v1570 = vpop.xlane.xlu0 %1569
        %v1571 = vsel %vm483, %v1567, 0.0
        %1572 = vadd.xlane.f32.xlu0 %v1571
        %v1573 = vpop.xlane.xlu0 %1572
        %v1574 = vrcp.pop %v1570
        %v1575 = vrcp.pop %v1573
        %v1576 = vmul.f32 %v1565, %v1574
        %v1577 = vmul.f32 %v1567, %v1575
        %v1578 = vpack.c.bf16 %v1577, %v1576
        %1580 = vrot.lane.b32.xlu0 %v1382, 120
        %v1581 = vpop.permute.xlu0 %1580
        %v1584 = vsel %vm483, %v1578, 0
        %1586 = vmatprep.subr.bf16.mxu0 0
        %1587 = vmatpush1.bf16.msra.mxu0 %v1581
        %1588 = vmatprep.subr.bf16.mxu0 0
        %1589 = vmatpush1.bf16.msra.mxu0 0
        %1590 = vmatprep.subr.bf16.mxu0 0
        %1591 = vmatpush1.bf16.msra.mxu0 0
        %1592 = vmatprep.subr.bf16.mxu0 0
        %1593 = vmatpush1.bf16.msra.mxu0 0
        %1594 = vmatprep.subr.bf16.mxu0 0
        %1595 = vmatpush1.bf16.msra.mxu0 0
        %1596 = vmatprep.subr.bf16.mxu0 0
        %1597 = vmatpush1.bf16.msra.mxu0 0
        %1598 = vmatprep.subr.bf16.mxu0 0
        %1599 = vmatpush1.bf16.msra.mxu0 0
        %1600 = vmatprep.subr.bf16.mxu0 0
        %1601 = vmatpush1.bf16.msra.mxu0 0
        %1602 = vmatprep.subr.bf16.mxu0 0
        %1603 = vmatpush1.bf16.msra.mxu0 0
        %1604 = vmatprep.subr.bf16.mxu0 0
        %1605 = vmatpush1.bf16.msra.mxu0 0
        %1606 = vmatprep.subr.bf16.mxu0 0
        %1607 = vmatpush1.bf16.msra.mxu0 0
        %1608 = vmatprep.subr.bf16.mxu0 0
        %1609 = vmatpush1.bf16.msra.mxu0 0
        %1610 = vmatprep.subr.bf16.mxu0 0
        %1611 = vmatpush1.bf16.msra.mxu0 0
        %1612 = vmatprep.subr.bf16.mxu0 0
        %1613 = vmatpush1.bf16.msra.mxu0 0
        %1614 = vmatprep.subr.bf16.mxu0 0
        %1615 = vmatpush1.bf16.msra.mxu0 0
        %1616 = vmatprep.subr.bf16.mxu0 0
        %1617 = vmatpush1.bf16.msra.mxu0 0
        %1618 = vmatprep.mubr.bf16.mxu0 0
        %1619 = vmatmul.mubr.bf16.gmra.mrb[0].mxu0 %v1584
        %v1620 = vpop.f32.mrb[0].mxu0
        %v1621 = vadd.f32 0.0, %v1620
        %v1622 = vpop.f32.mrb[0].mxu0
        %v1623 = vpop.f32.mrb[0].mxu0
        %v1624 = vadd.f32 0.0, %v1623
        %v1625 = vpop.f32.mrb[0].mxu0
        %1626 = vdwg.mxu0
        %v1627 = vpack.c.bf16 %v1624, %v1621
        %v1629 = vsel %vm435, %v1627, 0
        %v1632 = vsel %vm680, %v1385, 0
        %1634 = vmatprep.subr.bf16.mxu0 0
        %1635 = vmatpush1.bf16.msra.mxu0 %v1632
        %1636 = vmatprep.subr.bf16.mxu0 0
        %1637 = vmatpush1.bf16.msra.mxu0 0
        %1638 = vmatprep.subr.bf16.mxu0 0
        %1639 = vmatpush1.bf16.msra.mxu0 0
        %1640 = vmatprep.subr.bf16.mxu0 0
        %1641 = vmatpush1.bf16.msra.mxu0 0
        %1642 = vmatprep.subr.bf16.mxu0 0
        %1643 = vmatpush1.bf16.msra.mxu0 0
        %1644 = vmatprep.subr.bf16.mxu0 0
        %1645 = vmatpush1.bf16.msra.mxu0 0
        %1646 = vmatprep.subr.bf16.mxu0 0
        %1647 = vmatpush1.bf16.msra.mxu0 0
        %1648 = vmatprep.subr.bf16.mxu0 0
        %1649 = vmatpush1.bf16.msra.mxu0 0
        %1650 = vmatprep.subr.bf16.mxu0 0
        %1651 = vmatpush1.bf16.msra.mxu0 0
        %1652 = vmatprep.subr.bf16.mxu0 0
        %1653 = vmatpush1.bf16.msra.mxu0 0
        %1654 = vmatprep.subr.bf16.mxu0 0
        %1655 = vmatpush1.bf16.msra.mxu0 0
        %1656 = vmatprep.subr.bf16.mxu0 0
        %1657 = vmatpush1.bf16.msra.mxu0 0
        %1658 = vmatprep.subr.bf16.mxu0 0
        %1659 = vmatpush1.bf16.msra.mxu0 0
        %1660 = vmatprep.subr.bf16.mxu0 0
        %1661 = vmatpush1.bf16.msra.mxu0 0
        %1662 = vmatprep.subr.bf16.mxu0 0
        %1663 = vmatpush1.bf16.msra.mxu0 0
        %1664 = vmatprep.subr.bf16.mxu0 0
        %1665 = vmatpush1.bf16.msra.mxu0 0
        %1666 = vmatprep.mubr.bf16.mxu0 0
        %1667 = vmatmul.mubr.bf16.gmra.mrb[0].mxu0 %v1629
        %v1668 = vpop.f32.mrb[0].mxu0
        %v1669 = vadd.f32 0.0, %v1668
        %v1670 = vpop.f32.mrb[0].mxu0
        %v1671 = vpop.f32.mrb[0].mxu0
        %v1672 = vadd.f32 0.0, %v1671
        %v1673 = vpop.f32.mrb[0].mxu0
        %1674 = vdwg.mxu0
        %v1676 = vsel %vm435, %v1502, 0
        %v1679 = vsel %vm680, %v1384, 0
        %1681 = vmatprep.subr.bf16.mxu0 0
        %1682 = vmatpush1.bf16.msra.mxu0 %v1679
        %1683 = vmatprep.subr.bf16.mxu0 0
        %1684 = vmatpush1.bf16.msra.mxu0 0
        %1685 = vmatprep.subr.bf16.mxu0 0
        %1686 = vmatpush1.bf16.msra.mxu0 0
        %1687 = vmatprep.subr.bf16.mxu0 0
        %1688 = vmatpush1.bf16.msra.mxu0 0
        %1689 = vmatprep.subr.bf16.mxu0 0
        %1690 = vmatpush1.bf16.msra.mxu0 0
        %1691 = vmatprep.subr.bf16.mxu0 0
        %1692 = vmatpush1.bf16.msra.mxu0 0
        %1693 = vmatprep.subr.bf16.mxu0 0
        %1694 = vmatpush1.bf16.msra.mxu0 0
        %1695 = vmatprep.subr.bf16.mxu0 0
        %1696 = vmatpush1.bf16.msra.mxu0 0
        %1697 = vmatprep.subr.bf16.mxu0 0
        %1698 = vmatpush1.bf16.msra.mxu0 0
        %1699 = vmatprep.subr.bf16.mxu0 0
        %1700 = vmatpush1.bf16.msra.mxu0 0
        %1701 = vmatprep.subr.bf16.mxu0 0
        %1702 = vmatpush1.bf16.msra.mxu0 0
        %1703 = vmatprep.subr.bf16.mxu0 0
        %1704 = vmatpush1.bf16.msra.mxu0 0
        %1705 = vmatprep.subr.bf16.mxu0 0
        %1706 = vmatpush1.bf16.msra.mxu0 0
        %1707 = vmatprep.subr.bf16.mxu0 0
        %1708 = vmatpush1.bf16.msra.mxu0 0
        %1709 = vmatprep.subr.bf16.mxu0 0
        %1710 = vmatpush1.bf16.msra.mxu0 0
        %1711 = vmatprep.subr.bf16.mxu0 0
        %1712 = vmatpush1.bf16.msra.mxu0 0
        %1713 = vmatprep.mubr.bf16.mxu0 0
        %1714 = vmatmul.mubr.bf16.gmra.mrb[0].mxu0 %v1676
        %v1715 = vpop.f32.mrb[0].mxu0
        %v1716 = vadd.f32 %v1669, %v1715
        %v1717 = vpop.f32.mrb[0].mxu0
        %v1718 = vpop.f32.mrb[0].mxu0
        %v1719 = vadd.f32 %v1672, %v1718
        %v1720 = vpop.f32.mrb[0].mxu0
        %1721 = vdwg.mxu0
        %1722 = vrot.lane.b32.xlu0 %v1380, 112
        %v1723 = vpop.permute.xlu0 %1722
        %1724 = vrot.lane.b32.xlu0 %v1381, 112
        %v1725 = vpop.permute.xlu0 %1724
        %v1727 = vsel %vm435, %v1723, 0
        %v1730 = vsel %vm435, %v1725, 0
        %1732 = vmatprep.subr.bf16.mxu0 0
        %1733 = vmatpush1.bf16.xpose.msra.mxu0 %v1730
        %1734 = vmatprep.subr.bf16.mxu0 0
        %1735 = vmatpush1.bf16.xpose.msra.mxu0 0
        %1736 = vmatprep.subr.bf16.mxu0 0
        %1737 = vmatpush1.bf16.xpose.msra.mxu0 0
        %1738 = vmatprep.subr.bf16.mxu0 0
        %1739 = vmatpush1.bf16.xpose.msra.mxu0 0
        %1740 = vmatprep.subr.bf16.mxu0 0
        %1741 = vmatpush1.bf16.xpose.msra.mxu0 0
        %1742 = vmatprep.subr.bf16.mxu0 0
        %1743 = vmatpush1.bf16.xpose.msra.mxu0 0
        %1744 = vmatprep.subr.bf16.mxu0 0
        %1745 = vmatpush1.bf16.xpose.msra.mxu0 0
        %1746 = vmatprep.subr.bf16.mxu0 0
        %1747 = vmatpush1.bf16.xpose.msra.mxu0 0
        %1748 = vmatprep.subr.bf16.mxu0 0
        %1749 = vmatpush1.bf16.xpose.msra.mxu0 0
        %1750 = vmatprep.subr.bf16.mxu0 0
        %1751 = vmatpush1.bf16.xpose.msra.mxu0 0
        %1752 = vmatprep.subr.bf16.mxu0 0
        %1753 = vmatpush1.bf16.xpose.msra.mxu0 0
        %1754 = vmatprep.subr.bf16.mxu0 0
        %1755 = vmatpush1.bf16.xpose.msra.mxu0 0
        %1756 = vmatprep.subr.bf16.mxu0 0
        %1757 = vmatpush1.bf16.xpose.msra.mxu0 0
        %1758 = vmatprep.subr.bf16.mxu0 0
        %1759 = vmatpush1.bf16.xpose.msra.mxu0 0
        %1760 = vmatprep.subr.bf16.mxu0 0
        %1761 = vmatpush1.bf16.xpose.msra.mxu0 0
        %1762 = vmatprep.subr.bf16.mxu0 0
        %1763 = vmatpush1.bf16.xpose.msra.mxu0 0
        %1764 = vmatprep.mubr.bf16.mxu0 0
        %1765 = vmatmul.mubr.bf16.gmra.mrb[0].mxu0 %v1727
        %v1766 = vpop.f32.mrb[0].mxu0
        %v1767 = vadd.f32 0.0, %v1766
        %v1768 = vpop.f32.mrb[0].mxu0
        %v1769 = vpop.f32.mrb[0].mxu0
        %v1770 = vadd.f32 0.0, %v1769
        %v1771 = vpop.f32.mrb[0].mxu0
        %1772 = vdwg.mxu0
        %v1773 = vsel %vm483, %v1767, -inf
        %1774 = vmax.xlane.f32.xlu0 %v1773
        %v1775 = vpop.xlane.xlu0 %1774
        %v1776 = vsel %vm483, %v1770, -inf
        %1777 = vmax.xlane.f32.xlu0 %v1776
        %v1778 = vpop.xlane.xlu0 %1777
        %v1779 = vsub.f32 %v1767, %v1775
        %v1780 = vsub.f32 %v1770, %v1778
        %v1781 = vmul.f32 %v1779, 1.442695
        %v1782 = vpow.pop %v1781
        %v1783 = vmul.f32 %v1780, 1.442695
        %v1784 = vpow.pop %v1783
        %v1785 = vsel %vm483, %v1782, 0.0
        %1786 = vadd.xlane.f32.xlu0 %v1785
        %v1787 = vpop.xlane.xlu0 %1786
        %v1788 = vsel %vm483, %v1784, 0.0
        %1789 = vadd.xlane.f32.xlu0 %v1788
        %v1790 = vpop.xlane.xlu0 %1789
        %v1791 = vrcp.pop %v1787
        %v1792 = vrcp.pop %v1790
        %v1793 = vmul.f32 %v1782, %v1791
        %v1794 = vmul.f32 %v1784, %v1792
        %v1795 = vpack.c.bf16 %v1794, %v1793
        %1796 = vrot.lane.b32.xlu0 %v1382, 112
        %v1797 = vpop.permute.xlu0 %1796
        %v1800 = vsel %vm483, %v1795, 0
        %1802 = vmatprep.subr.bf16.mxu0 0
        %1803 = vmatpush1.bf16.msra.mxu0 %v1797
        %1804 = vmatprep.subr.bf16.mxu0 0
        %1805 = vmatpush1.bf16.msra.mxu0 0
        %1806 = vmatprep.subr.bf16.mxu0 0
        %1807 = vmatpush1.bf16.msra.mxu0 0
        %1808 = vmatprep.subr.bf16.mxu0 0
        %1809 = vmatpush1.bf16.msra.mxu0 0
        %1810 = vmatprep.subr.bf16.mxu0 0
        %1811 = vmatpush1.bf16.msra.mxu0 0
        %1812 = vmatprep.subr.bf16.mxu0 0
        %1813 = vmatpush1.bf16.msra.mxu0 0
        %1814 = vmatprep.subr.bf16.mxu0 0
        %1815 = vmatpush1.bf16.msra.mxu0 0
        %1816 = vmatprep.subr.bf16.mxu0 0
        %1817 = vmatpush1.bf16.msra.mxu0 0
        %1818 = vmatprep.subr.bf16.mxu0 0
        %1819 = vmatpush1.bf16.msra.mxu0 0
        %1820 = vmatprep.subr.bf16.mxu0 0
        %1821 = vmatpush1.bf16.msra.mxu0 0
        %1822 = vmatprep.subr.bf16.mxu0 0
        %1823 = vmatpush1.bf16.msra.mxu0 0
        %1824 = vmatprep.subr.bf16.mxu0 0
        %1825 = vmatpush1.bf16.msra.mxu0 0
        %1826 = vmatprep.subr.bf16.mxu0 0
        %1827 = vmatpush1.bf16.msra.mxu0 0
        %1828 = vmatprep.subr.bf16.mxu0 0
        %1829 = vmatpush1.bf16.msra.mxu0 0
        %1830 = vmatprep.subr.bf16.mxu0 0
        %1831 = vmatpush1.bf16.msra.mxu0 0
        %1832 = vmatprep.subr.bf16.mxu0 0
        %1833 = vmatpush1.bf16.msra.mxu0 0
        %1834 = vmatprep.mubr.bf16.mxu0 0
        %1835 = vmatmul.mubr.bf16.gmra.mrb[0].mxu0 %v1800
        %v1836 = vpop.f32.mrb[0].mxu0
        %v1837 = vadd.f32 0.0, %v1836
        %v1838 = vpop.f32.mrb[0].mxu0
        %v1839 = vpop.f32.mrb[0].mxu0
        %v1840 = vadd.f32 0.0, %v1839
        %v1841 = vpop.f32.mrb[0].mxu0
        %1842 = vdwg.mxu0
        %v1843 = vpack.c.bf16 %v1840, %v1837
        %v1845 = vsel %vm435, %v1843, 0
        %v1848 = vsel %vm680, %v1386, 0
        %1850 = vmatprep.subr.bf16.mxu0 0
        %1851 = vmatpush1.bf16.msra.mxu0 %v1848
        %1852 = vmatprep.subr.bf16.mxu0 0
        %1853 = vmatpush1.bf16.msra.mxu0 0
        %1854 = vmatprep.subr.bf16.mxu0 0
        %1855 = vmatpush1.bf16.msra.mxu0 0
        %1856 = vmatprep.subr.bf16.mxu0 0
        %1857 = vmatpush1.bf16.msra.mxu0 0
        %1858 = vmatprep.subr.bf16.mxu0 0
        %1859 = vmatpush1.bf16.msra.mxu0 0
        %1860 = vmatprep.subr.bf16.mxu0 0
        %1861 = vmatpush1.bf16.msra.mxu0 0
        %1862 = vmatprep.subr.bf16.mxu0 0
        %1863 = vmatpush1.bf16.msra.mxu0 0
        %1864 = vmatprep.subr.bf16.mxu0 0
        %1865 = vmatpush1.bf16.msra.mxu0 0
        %1866 = vmatprep.subr.bf16.mxu0 0
        %1867 = vmatpush1.bf16.msra.mxu0 0
        %1868 = vmatprep.subr.bf16.mxu0 0
        %1869 = vmatpush1.bf16.msra.mxu0 0
        %1870 = vmatprep.subr.bf16.mxu0 0
        %1871 = vmatpush1.bf16.msra.mxu0 0
        %1872 = vmatprep.subr.bf16.mxu0 0
        %1873 = vmatpush1.bf16.msra.mxu0 0
        %1874 = vmatprep.subr.bf16.mxu0 0
        %1875 = vmatpush1.bf16.msra.mxu0 0
        %1876 = vmatprep.subr.bf16.mxu0 0
        %1877 = vmatpush1.bf16.msra.mxu0 0
        %1878 = vmatprep.subr.bf16.mxu0 0
        %1879 = vmatpush1.bf16.msra.mxu0 0
        %1880 = vmatprep.subr.bf16.mxu0 0
        %1881 = vmatpush1.bf16.msra.mxu0 0
        %1882 = vmatprep.mubr.bf16.mxu0 0
        %1883 = vmatmul.mubr.bf16.gmra.mrb[0].mxu0 %v1845
        %v1884 = vpop.f32.mrb[0].mxu0
        %v1885 = vadd.f32 0.0, %v1884
        %v1886 = vpop.f32.mrb[0].mxu0
        %v1887 = vpop.f32.mrb[0].mxu0
        %v1888 = vadd.f32 0.0, %v1887
        %v1889 = vpop.f32.mrb[0].mxu0
        %1890 = vdwg.mxu0
        %v1891 = vadd.f32 %v1716, %v1885
        %v1892 = vadd.f32 %v1719, %v1888
        %1893 = vrot.lane.b32.xlu0 %v1380, 104
        %v1894 = vpop.permute.xlu0 %1893
        %1895 = vrot.lane.b32.xlu0 %v1381, 104
        %v1896 = vpop.permute.xlu0 %1895
        %v1898 = vsel %vm435, %v1894, 0
        %v1901 = vsel %vm435, %v1896, 0
        %1903 = vmatprep.subr.bf16.mxu0 0
        %1904 = vmatpush1.bf16.xpose.msra.mxu0 %v1901
        %1905 = vmatprep.subr.bf16.mxu0 0
        %1906 = vmatpush1.bf16.xpose.msra.mxu0 0
        %1907 = vmatprep.subr.bf16.mxu0 0
        %1908 = vmatpush1.bf16.xpose.msra.mxu0 0
        %1909 = vmatprep.subr.bf16.mxu0 0
        %1910 = vmatpush1.bf16.xpose.msra.mxu0 0
        %1911 = vmatprep.subr.bf16.mxu0 0
        %1912 = vmatpush1.bf16.xpose.msra.mxu0 0
        %1913 = vmatprep.subr.bf16.mxu0 0
        %1914 = vmatpush1.bf16.xpose.msra.mxu0 0
        %1915 = vmatprep.subr.bf16.mxu0 0
        %1916 = vmatpush1.bf16.xpose.msra.mxu0 0
        %1917 = vmatprep.subr.bf16.mxu0 0
        %1918 = vmatpush1.bf16.xpose.msra.mxu0 0
        %1919 = vmatprep.subr.bf16.mxu0 0
        %1920 = vmatpush1.bf16.xpose.msra.mxu0 0
        %1921 = vmatprep.subr.bf16.mxu0 0
        %1922 = vmatpush1.bf16.xpose.msra.mxu0 0
        %1923 = vmatprep.subr.bf16.mxu0 0
        %1924 = vmatpush1.bf16.xpose.msra.mxu0 0
        %1925 = vmatprep.subr.bf16.mxu0 0
        %1926 = vmatpush1.bf16.xpose.msra.mxu0 0
        %1927 = vmatprep.subr.bf16.mxu0 0
        %1928 = vmatpush1.bf16.xpose.msra.mxu0 0
        %1929 = vmatprep.subr.bf16.mxu0 0
        %1930 = vmatpush1.bf16.xpose.msra.mxu0 0
        %1931 = vmatprep.subr.bf16.mxu0 0
        %1932 = vmatpush1.bf16.xpose.msra.mxu0 0
        %1933 = vmatprep.subr.bf16.mxu0 0
        %1934 = vmatpush1.bf16.xpose.msra.mxu0 0
        %1935 = vmatprep.mubr.bf16.mxu0 0
        %1936 = vmatmul.mubr.bf16.gmra.mrb[0].mxu0 %v1898
        %v1937 = vpop.f32.mrb[0].mxu0
        %v1938 = vadd.f32 0.0, %v1937
        %v1939 = vpop.f32.mrb[0].mxu0
        %v1940 = vpop.f32.mrb[0].mxu0
        %v1941 = vadd.f32 0.0, %v1940
        %v1942 = vpop.f32.mrb[0].mxu0
        %1943 = vdwg.mxu0
        %v1944 = vsel %vm483, %v1938, -inf
        %1945 = vmax.xlane.f32.xlu0 %v1944
        %v1946 = vpop.xlane.xlu0 %1945
        %v1947 = vsel %vm483, %v1941, -inf
        %1948 = vmax.xlane.f32.xlu0 %v1947
        %v1949 = vpop.xlane.xlu0 %1948
        %v1950 = vsub.f32 %v1938, %v1946
        %v1951 = vsub.f32 %v1941, %v1949
        %v1952 = vmul.f32 %v1950, 1.442695
        %v1953 = vpow.pop %v1952
        %v1954 = vmul.f32 %v1951, 1.442695
        %v1955 = vpow.pop %v1954
        %v1956 = vsel %vm483, %v1953, 0.0
        %1957 = vadd.xlane.f32.xlu0 %v1956
        %v1958 = vpop.xlane.xlu0 %1957
        %v1959 = vsel %vm483, %v1955, 0.0
        %1960 = vadd.xlane.f32.xlu0 %v1959
        %v1961 = vpop.xlane.xlu0 %1960
        %v1962 = vrcp.pop %v1958
        %v1963 = vrcp.pop %v1961
        %v1964 = vmul.f32 %v1953, %v1962
        %v1965 = vmul.f32 %v1955, %v1963
        %v1966 = vpack.c.bf16 %v1965, %v1964
        %1967 = vrot.lane.b32.xlu0 %v1382, 104
        %v1968 = vpop.permute.xlu0 %1967
        %v1971 = vsel %vm483, %v1966, 0
        %1973 = vmatprep.subr.bf16.mxu0 0
        %1974 = vmatpush1.bf16.msra.mxu0 %v1968
        %1975 = vmatprep.subr.bf16.mxu0 0
        %1976 = vmatpush1.bf16.msra.mxu0 0
        %1977 = vmatprep.subr.bf16.mxu0 0
        %1978 = vmatpush1.bf16.msra.mxu0 0
        %1979 = vmatprep.subr.bf16.mxu0 0
        %1980 = vmatpush1.bf16.msra.mxu0 0
        %1981 = vmatprep.subr.bf16.mxu0 0
        %1982 = vmatpush1.bf16.msra.mxu0 0
        %1983 = vmatprep.subr.bf16.mxu0 0
        %1984 = vmatpush1.bf16.msra.mxu0 0
        %1985 = vmatprep.subr.bf16.mxu0 0
        %1986 = vmatpush1.bf16.msra.mxu0 0
        %1987 = vmatprep.subr.bf16.mxu0 0
        %1988 = vmatpush1.bf16.msra.mxu0 0
        %1989 = vmatprep.subr.bf16.mxu0 0
        %1990 = vmatpush1.bf16.msra.mxu0 0
        %1991 = vmatprep.subr.bf16.mxu0 0
        %1992 = vmatpush1.bf16.msra.mxu0 0
        %1993 = vmatprep.subr.bf16.mxu0 0
        %1994 = vmatpush1.bf16.msra.mxu0 0
        %1995 = vmatprep.subr.bf16.mxu0 0
        %1996 = vmatpush1.bf16.msra.mxu0 0
        %1997 = vmatprep.subr.bf16.mxu0 0
        %1998 = vmatpush1.bf16.msra.mxu0 0
        %1999 = vmatprep.subr.bf16.mxu0 0
        %2000 = vmatpush1.bf16.msra.mxu0 0
        %2001 = vmatprep.subr.bf16.mxu0 0
        %2002 = vmatpush1.bf16.msra.mxu0 0
        %2003 = vmatprep.subr.bf16.mxu0 0
        %2004 = vmatpush1.bf16.msra.mxu0 0
        %2005 = vmatprep.mubr.bf16.mxu0 0
        %2006 = vmatmul.mubr.bf16.gmra.mrb[0].mxu0 %v1971
        %v2007 = vpop.f32.mrb[0].mxu0
        %v2008 = vadd.f32 0.0, %v2007
        %v2009 = vpop.f32.mrb[0].mxu0
        %v2010 = vpop.f32.mrb[0].mxu0
        %v2011 = vadd.f32 0.0, %v2010
        %v2012 = vpop.f32.mrb[0].mxu0
        %2013 = vdwg.mxu0
        %v2014 = vpack.c.bf16 %v2011, %v2008
        %v2016 = vsel %vm435, %v2014, 0
        %v2019 = vsel %vm680, %v1387, 0
        %2021 = vmatprep.subr.bf16.mxu0 0
        %2022 = vmatpush1.bf16.msra.mxu0 %v2019
        %2023 = vmatprep.subr.bf16.mxu0 0
        %2024 = vmatpush1.bf16.msra.mxu0 0
        %2025 = vmatprep.subr.bf16.mxu0 0
        %2026 = vmatpush1.bf16.msra.mxu0 0
        %2027 = vmatprep.subr.bf16.mxu0 0
        %2028 = vmatpush1.bf16.msra.mxu0 0
        %2029 = vmatprep.subr.bf16.mxu0 0
        %2030 = vmatpush1.bf16.msra.mxu0 0
        %2031 = vmatprep.subr.bf16.mxu0 0
        %2032 = vmatpush1.bf16.msra.mxu0 0
        %2033 = vmatprep.subr.bf16.mxu0 0
        %2034 = vmatpush1.bf16.msra.mxu0 0
        %2035 = vmatprep.subr.bf16.mxu0 0
        %2036 = vmatpush1.bf16.msra.mxu0 0
        %2037 = vmatprep.subr.bf16.mxu0 0
        %2038 = vmatpush1.bf16.msra.mxu0 0
        %2039 = vmatprep.subr.bf16.mxu0 0
        %2040 = vmatpush1.bf16.msra.mxu0 0
        %2041 = vmatprep.subr.bf16.mxu0 0
        %2042 = vmatpush1.bf16.msra.mxu0 0
        %2043 = vmatprep.subr.bf16.mxu0 0
        %2044 = vmatpush1.bf16.msra.mxu0 0
        %2045 = vmatprep.subr.bf16.mxu0 0
        %2046 = vmatpush1.bf16.msra.mxu0 0
        %2047 = vmatprep.subr.bf16.mxu0 0
        %2048 = vmatpush1.bf16.msra.mxu0 0
        %2049 = vmatprep.subr.bf16.mxu0 0
        %2050 = vmatpush1.bf16.msra.mxu0 0
        %2051 = vmatprep.subr.bf16.mxu0 0
        %2052 = vmatpush1.bf16.msra.mxu0 0
        %2053 = vmatprep.mubr.bf16.mxu0 0
        %2054 = vmatmul.mubr.bf16.gmra.mrb[0].mxu0 %v2016
        %v2055 = vpop.f32.mrb[0].mxu0
        %v2056 = vadd.f32 0.0, %v2055
        %v2057 = vpop.f32.mrb[0].mxu0
        %v2058 = vpop.f32.mrb[0].mxu0
        %v2059 = vadd.f32 0.0, %v2058
        %v2060 = vpop.f32.mrb[0].mxu0
        %2061 = vdwg.mxu0
        %v2062 = vadd.f32 %v1891, %v2056
        %v2063 = vadd.f32 %v1892, %v2059
        %s2064 = scalar_lea.vmem [#allocation7], 7
        %v2065 = vld [vmem:[%s2064] sm:$0x1]
        %v2067 = vlaneseq
        %v2068 = vshrl.u32 %v2067, 7
        %v2069 = vsub.s32 0, %v2068
        %v2070 = vrot.slane %v2065, %v2069
        %v2072 = vadd.f32 %v2062, %v2070
        %v2073 = vadd.f32 %v2063, %v2070
        %v2074 = vmul.f32 %v2072, 0.5
        %v2075 = vmul.f32 %v2073, 0.5
        %v2076 = vmul.f32 %v2072, 0.70710677
        %v2077 = vmul.f32 %v2073, 0.70710677
        %vm2078 = vcmp.ge.f32.partialorder %v2076, 0.0
        %vm2079 = vcmp.ge.f32.partialorder %v2077, 0.0
        %v2080 = vsel %vm2078, 1.0, -1.0
        %v2081 = vsel %vm2079, 1.0, -1.0
        %v2082 = vand.u32 2147483647, %v2076
        %v2083 = vand.u32 2147483647, %v2077
        %v2084 = vmul.f32 %v2082, 0.3275911
        %v2085 = vmul.f32 %v2083, 0.3275911
        %v2086 = vadd.f32 %v2084, 1.0
        %v2087 = vadd.f32 %v2085, 1.0
        %v2088 = vrcp.pop %v2086
        %v2089 = vrcp.pop %v2087
        %v2090 = vmul.f32 %v2088, 1.0614054
        %v2091 = vmul.f32 %v2089, 1.0614054
        %v2092 = vadd.f32 %v2090, -1.4531521
        %v2093 = vadd.f32 %v2091, -1.4531521
        %v2094 = vmul.f32 %v2092, %v2088
        %v2095 = vmul.f32 %v2093, %v2089
        %v2096 = vadd.f32 %v2094, 1.4214138
        %v2097 = vadd.f32 %v2095, 1.4214138
        %v2098 = vmul.f32 %v2096, %v2088
        %v2099 = vmul.f32 %v2097, %v2089
        %v2100 = vadd.f32 %v2098, -0.28449672
        %v2101 = vadd.f32 %v2099, -0.28449672
        %v2102 = vmul.f32 %v2100, %v2088
        %v2103 = vmul.f32 %v2101, %v2089
        %v2104 = vadd.f32 %v2102, 0.2548296
        %v2105 = vadd.f32 %v2103, 0.2548296
        %v2106 = vmul.f32 %v2104, %v2088
        %v2107 = vmul.f32 %v2105, %v2089
        %v2108 = vsub.f32 0.0, %v2082
        %v2109 = vsub.f32 0.0, %v2083
        %v2110 = vmul.f32 %v2108, %v2082
        %v2111 = vmul.f32 %v2109, %v2083
        %v2112 = vmul.f32 %v2110, 1.442695
        %v2113 = vpow.pop %v2112
        %v2114 = vmul.f32 %v2111, 1.442695
        %v2115 = vpow.pop %v2114
        %v2116 = vmul.f32 %v2106, %v2113
        %v2117 = vmul.f32 %v2107, %v2115
        %v2118 = vsub.f32 1.0, %v2116
        %v2119 = vsub.f32 1.0, %v2117
        %v2120 = vmul.f32 %v2080, %v2118
        %v2121 = vmul.f32 %v2081, %v2119
        %v2122 = vadd.f32 %v2120, 1.0
        %v2123 = vadd.f32 %v2121, 1.0
        %v2124 = vmul.f32 %v2074, %v2122
        %v2125 = vmul.f32 %v2075, %v2123
        %v2126 = vadd.f32 %v218, %v2124
        %v2127 = vadd.f32 %v219, %v2125
        %v2128 = vadd.f32 %v218, %v220
        %v2129 = vadd.f32 %v219, %v221
        %v2130 = vmul.f32 %v2128, 0.5
        %v2131 = vmul.f32 %v2129, 0.5
        %v2132 = vsub.f32 %v2130, %v2126
        %v2133 = vsub.f32 %v2131, %v2127
        %v2135 = vsel %vm247, 0.03125, 0
        %v2138 = vsel %vm247, %v2132, 0
        %v2141 = vsel %vm247, %v2133, 0
        %v2144 = vsel %vm247, %v1176, 0
        %v2147 = vsel %vm247, %v1177, 0
        %2149 = vmatprep.subr.mxu0 0.0
        %2150 = vmatpush1.xpose.msra.mxu0 %v2138
        %2151 = vmatprep.subr.mxu0 0.0
        %2152 = vmatpush1.xpose.msra.mxu0 %v2141
        %2153 = vmatprep.subr.mxu0 0.0
        %2154 = vmatpush1.xpose.msra.mxu0 %v2144
        %2155 = vmatprep.subr.mxu0 0.0
        %2156 = vmatpush1.xpose.msra.mxu0 %v2147
        %2157 = vmatprep.subr.mxu0 0.0
        %2158 = vmatpush1.xpose.msra.mxu0 0.0
        %2159 = vmatprep.subr.mxu0 0.0
        %2160 = vmatpush1.xpose.msra.mxu0 0.0
        %2161 = vmatprep.subr.mxu0 0.0
        %2162 = vmatpush1.xpose.msra.mxu0 0.0
        %2163 = vmatprep.subr.mxu0 0.0
        %2164 = vmatpush1.xpose.msra.mxu0 0.0
        %2165 = vmatprep.subr.mxu0 0.0
        %2166 = vmatpush1.xpose.msra.mxu0 0.0
        %2167 = vmatprep.subr.mxu0 0.0
        %2168 = vmatpush1.xpose.msra.mxu0 0.0
        %2169 = vmatprep.subr.mxu0 0.0
        %2170 = vmatpush1.xpose.msra.mxu0 0.0
        %2171 = vmatprep.subr.mxu0 0.0
        %2172 = vmatpush1.xpose.msra.mxu0 0.0
        %2173 = vmatprep.subr.mxu0 0.0
        %2174 = vmatpush1.xpose.msra.mxu0 0.0
        %2175 = vmatprep.subr.mxu0 0.0
        %2176 = vmatpush1.xpose.msra.mxu0 0.0
        %2177 = vmatprep.subr.mxu0 0.0
        %2178 = vmatpush1.xpose.msra.mxu0 0.0
        %2179 = vmatprep.subr.mxu0 0.0
        %2180 = vmatpush1.xpose.msra.mxu0 0.0
        %2181 = vmatprep.subr.mxu0 0.0
        %2182 = vmatpush1.xpose.msra.mxu0 0.0
        %2183 = vmatprep.subr.mxu0 0.0
        %2184 = vmatpush1.xpose.msra.mxu0 0.0
        %2185 = vmatprep.subr.mxu0 0.0
        %2186 = vmatpush1.xpose.msra.mxu0 0.0
        %2187 = vmatprep.subr.mxu0 0.0
        %2188 = vmatpush1.xpose.msra.mxu0 0.0
        %2189 = vmatprep.subr.mxu0 0.0
        %2190 = vmatpush1.xpose.msra.mxu0 0.0
        %2191 = vmatprep.subr.mxu0 0.0
        %2192 = vmatpush1.xpose.msra.mxu0 0.0
        %2193 = vmatprep.subr.mxu0 0.0
        %2194 = vmatpush1.xpose.msra.mxu0 0.0
        %2195 = vmatprep.subr.mxu0 0.0
        %2196 = vmatpush1.xpose.msra.mxu0 0.0
        %2197 = vmatprep.subr.mxu0 0.0
        %2198 = vmatpush1.xpose.msra.mxu0 0.0
        %2199 = vmatprep.subr.mxu0 0.0
        %2200 = vmatpush1.xpose.msra.mxu0 0.0
        %2201 = vmatprep.subr.mxu0 0.0
        %2202 = vmatpush1.xpose.msra.mxu0 0.0
        %2203 = vmatprep.subr.mxu0 0.0
        %2204 = vmatpush1.xpose.msra.mxu0 0.0
        %2205 = vmatprep.subr.mxu0 0.0
        %2206 = vmatpush1.xpose.msra.mxu0 0.0
        %2207 = vmatprep.subr.mxu0 0.0
        %2208 = vmatpush1.xpose.msra.mxu0 0.0
        %2209 = vmatprep.subr.mxu0 0.0
        %2210 = vmatpush1.xpose.msra.mxu0 0.0
        %2211 = vmatprep.subr.mxu0 0.0
        %2212 = vmatpush1.xpose.msra.mxu0 0.0
        %2213 = vmatprep.mubr.f32.mxu0 0.0
        %2214 = vmatmul.mubr.f32.gmra.mrb[0].mxu0 %v2135
        %v2215 = vpop.f32.mrb[0].mxu0
        %v2216 = vadd.f32 0.0, %v2215
        %v2217 = vpop.f32.mrb[0].mxu0
        %2218 = vdwg.mxu0
        %vm2219 = vcmask 253952
        %2220 = vst.msk [vmem:[%s216] sm:$0x1] %vm2219, %v2216
        %s2221 = sand.u32 %s97, 1
        %s2222 = scalar_lea.sflag [#allocation4], %s2221
        %s2223 = sand.u32 %s97, 1
        %s2224 = scalar_lea.vmem [#allocation8], %s2223
        // Predicated region
        $region45: #{tpu_custom_call.1} parent=31 // pred_check
          %p2225 = pneg %p107
        $region46: #{tpu_custom_call.1} parent=31 // pred_check_branch
          %2227 = sbr.rel (%p2225) target = $region48
        $region47: #{tpu_custom_call.1} parent=31 // pred_region
          %s2229 = ssub.s32 16, 16
          %2230 = vsyncadd %s2222, %s2229
          %s2231 = smul.addr %s21, 16
          %s2232 = scalar_lea.hbm %s3, %s2231
          %s2234 = sshll.u32 %s2224, 4
          %s2235 = int_to_ptr.vmem [resolvable:$true] %s2234
          %2237 = dma.vmem_to_hbm [thread:$0]  %s2235, 16, %s2232, %s2222
        $region48: #{tpu_custom_call.1} parent=31 // pred_fallthru
          _
      $region32: #{tpu_custom_call.1} parent=5 // pred_fallthru
        _
      %p2238 = scmp.le.s32.totalorder 2, %s16
      // Predicated region
      $region49: #{tpu_custom_call.1} parent=5 // pred_check
        %p2239 = pneg %p2238
      $region50: #{tpu_custom_call.1} parent=5 // pred_check_branch
        %2241 = sbr.rel (%p2239) target = $region52
      $region51: #{tpu_custom_call.1} parent=5 // pred_region
        %s2242 = ssub.s32 %s16, 2
        // Predicated region
        $region53: #{tpu_custom_call.1} parent=51 // pred_check
          %p2243 = pneg %p113
        $region54: #{tpu_custom_call.1} parent=51 // pred_check_branch
          %2245 = sbr.rel (%p2243) target = $region56
        $region55: #{tpu_custom_call.1} parent=51 // pred_region
          %s2246 = sand.u32 %s98, 1
          %s2247 = scalar_lea.sflag [#allocation4], %s2246
          %s2248 = sand.u32 %s98, 1
          %s2249 = scalar_lea.vmem [#allocation8], %s2248
          %2250 = dma.done %s2247, 16
        $region56: #{tpu_custom_call.1} parent=51 // pred_fallthru
          _
      $region52: #{tpu_custom_call.1} parent=5 // pred_fallthru
        _
    $region6: #{tpu_custom_call.1} parent=1 // loop_footer
      %s20 = sadd.s32 1, %s16
    $region7: #{tpu_custom_call.1} parent=1 // loop_footer_branch
      %15 = sbr.rel target = $region3
    $region8: #{tpu_custom_call.1} parent=1 // loop_exit
      _
    %2251 = vsyncpa [#allocation3], 1
    %s2252 = scalar_lea.sflag [#allocation3], 1
    %2253 = vsyncpa %s2252, 1
    %2254 = vsyncpa [#allocation6], 1
    %2255 = vsyncpa [#allocation4], 1
    %s2256 = scalar_lea.sflag [#allocation4], 1
    %2257 = vsyncpa %s2256, 1

</llo_original>
